<compile_context>
chip_gen: v5e
topology: v5e:2x2
jax: 0.10.0
libtpu: 0.0.40
codegen_flags: <defaults>
</compile_context>

<pallas_src>
import numpy as np

import jax
import jax.numpy as jnp
from jax import lax
from jax.experimental import pallas as pl
from jax.experimental.pallas import tpu as pltpu

NUM_CLASSES = 10   # stands in for int(sys.argv[1]) in the PyTorch module
B_BLK = 8          # images per grid step (batch folded into the matmul M dim)


# ----------------------------------------------------------------------------
# Fused Pallas kernel: conv1+pool -> conv2+pool -> fc1 -> fc2 -> fc3
# (one block of B_BLK images per grid step)
# ----------------------------------------------------------------------------
def _lenet_block_kernel(x_ref, wt1_ref, b1_ref, wt2_ref, b2_ref,
                        fc1w_ref, fc1b_ref, fc2w_ref, fc2b_ref,
                        fc3w_ref, fc3b_ref,
                        o_ref,
                        p1_ref):
    f32 = jnp.float32
    BB = B_BLK

    # ---- conv1 (5x5 valid) as 5 row-Toeplitz taps, batch folded into M:
    #      (28*BB, 96) @ (96, 256) per tap.  x_ref row = h*BB + b. ----
    acc1 = jnp.dot(x_ref[pl.ds(0, 28 * BB), :], wt1_ref[0],
                   preferred_element_type=f32)
    for di in range(1, 5):
        acc1 = acc1 + jnp.dot(x_ref[pl.ds(di * BB, 28 * BB), :], wt1_ref[di],
                              preferred_element_type=f32)
    # acc1 row = oh*BB + b, lane = (ow%2)*128 + (ow//2)*6 + oc

    # ---- fused 2x2 max-pool + bias + ReLU (pool/bias/relu commute) ----
    b1 = jnp.broadcast_to(b1_ref[...], (BB, 128))            # hoist broadcast
    for ph in range(14):                                     # tile-aligned slices
        h = jnp.maximum(acc1[(2 * ph) * BB:(2 * ph + 1) * BB, :],
                        acc1[(2 * ph + 1) * BB:(2 * ph + 2) * BB, :])
        w = jnp.maximum(h[:, :128], h[:, 128:])              # even-w / odd-w lanes
        p1_ref[pl.ds(ph * BB, BB), :] = jnp.maximum(w + b1, 0.0)
    # p1_ref row = ph*BB + b, lane = pw*6 + c   (14*BB, 128)

    # ---- conv2 (5x5 valid): (10*BB, 128) @ (128, 256) per tap ----
    acc2 = jnp.dot(p1_ref[pl.ds(0, 10 * BB), :], wt2_ref[0],
                   preferred_element_type=f32)
    for di in range(1, 5):
        acc2 = acc2 + jnp.dot(p1_ref[pl.ds(di * BB, 10 * BB), :], wt2_ref[di],
                              preferred_element_type=f32)
    # acc2 row = oh2*BB + b, lane = (ow2%2)*128 + (ow2//2)*16 + oc

    # ---- fused pool2 + bias + ReLU + fc1 (NCHW flatten folded into fc1 rows,
    #      fc1 done as 5 batched (BB,128)@(128,128) block matmuls) ----
    b2 = jnp.broadcast_to(b2_ref[...], (BB, 128))
    f1 = None
    for ph in range(5):
        h = jnp.maximum(acc2[(2 * ph) * BB:(2 * ph + 1) * BB, :],
                        acc2[(2 * ph + 1) * BB:(2 * ph + 2) * BB, :])
        w = jnp.maximum(h[:, :128], h[:, 128:])
        p2 = jnp.maximum(w + b2, 0.0)                        # (BB, 128), lane=pw*16+c
        d = jnp.dot(p2, fc1w_ref[ph], preferred_element_type=f32)
        f1 = d if f1 is None else f1 + d
    f1 = jnp.maximum(f1 + fc1b_ref[...], 0.0)                # (BB, 128)

    # ---- fc2 + relu, fc3 (logits; lanes >= num_classes are zero) ----
    f2 = jnp.maximum(jnp.dot(f1, fc2w_ref[...], preferred_element_type=f32)
                     + fc2b_ref[...], 0.0)
    o_ref[...] = (jnp.dot(f2, fc3w_ref[...], preferred_element_type=f32)
                  + fc3b_ref[...])                           # (BB, 128) dense store


# ----------------------------------------------------------------------------
# Forward wrapper: layout-plumb the input, one pallas_call, slice logits
# ----------------------------------------------------------------------------
@jax.jit
def lenet_forward(kp, x_nchw):
    B = x_nchw.shape[0]
    nb = -(-B // B_BLK)                  # number of image blocks (grid length)
    Bp = nb * B_BLK

    x = x_nchw.astype(jnp.float32)
    if Bp != B:                          # pad batch to a multiple of B_BLK
        x = jnp.pad(x, ((0, Bp - B), (0, 0), (0, 0), (0, 0)))

    # NCHW -> NHWC -> (B, 32, 96) with lane = w*3 + c (no 96->128 pad),
    # then block the batch H-major / batch-minor: row = h*B_BLK + b.
    x = jnp.transpose(x, (0, 2, 3, 1)).reshape(Bp, 32, 96)
    x = x.reshape(nb, B_BLK, 32, 96).transpose(0, 2, 1, 3)
    x = x.reshape(nb, 32 * B_BLK, 96)

    def full(shape):
        return pl.BlockSpec(shape, lambda g, n=len(shape): (0,) * n)

    out = pl.pallas_call(
        _lenet_block_kernel,
        out_shape=jax.ShapeDtypeStruct((nb, B_BLK, 128), jnp.float32),
        grid=(nb,),
        in_specs=[
            pl.BlockSpec((None, 32 * B_BLK, 96), lambda g: (g, 0, 0)),  # input block
            full((5, 96, 256)), full((1, 128)),                 # conv1 Toeplitz + bias
            full((5, 128, 256)), full((1, 128)),                 # conv2 Toeplitz + bias
            full((5, 128, 128)), full((1, 128)),                 # fc1 (per pooled row) + bias
            full((128, 128)), full((1, 128)),                    # fc2 + bias
            full((128, 128)), full((1, 128)),                    # fc3 + bias
        ],
        out_specs=pl.BlockSpec((None, B_BLK, 128), lambda g: (g, 0, 0)),
        scratch_shapes=[
            pltpu.VMEM((14 * B_BLK, 128), jnp.float32),          # pool1 output
        ],
        compiler_params=pltpu.CompilerParams(
            dimension_semantics=("parallel",),                   # v7x: blocks across TCs
            vmem_limit_bytes=16 * 1024 * 1024,                   # actual use ~4 MiB
        ),
    )(x, kp["wt1"], kp["b1"], kp["wt2"], kp["b2"],
      kp["fc1w"], kp["fc1b"], kp["fc2w"], kp["fc2b"], kp["fc3w"], kp["fc3b"])

    return out.reshape(Bp, 128)[:B, :NUM_CLASSES]


# ----------------------------------------------------------------------------
# One-time host-side parameter packing (Toeplitz build, padding, permutations)
# ----------------------------------------------------------------------------
def pack_params(p, num_classes=NUM_CLASSES):
    assert num_classes <= 128
    w1 = np.asarray(p["conv1_w"], np.float32)   # (6, 3, 5, 5)  OIHW
    b1 = np.asarray(p["conv1_b"], np.float32)   # (6,)
    w2 = np.asarray(p["conv2_w"], np.float32)   # (16, 6, 5, 5)
    b2 = np.asarray(p["conv2_b"], np.float32)   # (16,)
    f1w = np.asarray(p["fc1_w"], np.float32)    # (400, 120)  (in, out)
    f1b = np.asarray(p["fc1_b"], np.float32)
    f2w = np.asarray(p["fc2_w"], np.float32)    # (120, 84)
    f2b = np.asarray(p["fc2_b"], np.float32)
    f3w = np.asarray(p["fc3_w"], np.float32)    # (84, NC)
    f3b = np.asarray(p["fc3_b"], np.float32)

    # conv1 Toeplitz: input lane k = w_in*3 + ic  (w_in<32, K=96, no pad),
    # output lane n = (ow%2)*128 + (ow//2)*6 + oc  (even/odd-w split for pooling)
    wt1 = np.zeros((5, 96, 256), np.float32)
    for di in range(5):
        for dj in range(5):
            tap = w1[:, :, di, dj].T            # (ic=3, oc=6)
            for ow in range(28):
                wi = ow + dj
                nb = (ow % 2) * 128 + (ow // 2) * 6
                wt1[di, wi * 3:wi * 3 + 3, nb:nb + 6] = tap
    b1p = np.zeros((1, 128), np.float32)
    b1p[0, :84] = np.tile(b1, 14)               # pooled lane = pw*6 + oc

    # conv2 Toeplitz: input lane k = w_in*6 + ic  (w_in<14),
    # output lane n = (ow%2)*128 + (ow//2)*16 + oc
    wt2 = np.zeros((5, 128, 256), np.float32)
    for di in range(5):
        for dj in range(5):
            tap = w2[:, :, di, dj].T            # (ic=6, oc=16)
            for ow in range(10):
                wi = ow + dj
                nb = (ow % 2) * 128 + (ow // 2) * 16
                wt2[di, wi * 6:wi * 6 + 6, nb:nb + 16] = tap
    b2p = np.zeros((1, 128), np.float32)
    b2p[0, :80] = np.tile(b2, 5)                # pooled lane = pw*16 + oc

    # fc1: fold PyTorch's NCHW flatten (index = c*25 + h*5 + w) into the
    # weight row order (h outer, lane = w*16 + c), pad N 120 -> 128.
    fc1wk = np.zeros((5, 128, 128), np.float32)
    for ph in range(5):
        for pw in range(5):
            for oc in range(16):
                fc1wk[ph, pw * 16 + oc, :120] = f1w[oc * 25 + ph * 5 + pw, :]
    fc1bk = np.zeros((1, 128), np.float32)
    fc1bk[0, :120] = f1b

    fc2wk = np.zeros((128, 128), np.float32)
    fc2wk[:120, :84] = f2w
    fc2bk = np.zeros((1, 128), np.float32)
    fc2bk[0, :84] = f2b

    fc3wk = np.zeros((128, 128), np.float32)
    fc3wk[:84, :num_classes] = f3w
    fc3bk = np.zeros((1, 128), np.float32)
    fc3bk[0, :num_classes] = f3b

    packed = dict(wt1=wt1, b1=b1p, wt2=wt2, b2=b2p,
                  fc1w=fc1wk, fc1b=fc1bk, fc2w=fc2wk, fc2b=fc2bk,
                  fc3w=fc3wk, fc3b=fc3bk)
    return {k: jnp.asarray(v) for k, v in packed.items()}


# ----------------------------------------------------------------------------
# Synthetic parameter init (PyTorch-style fan-in uniform) + pure-JAX reference
# ----------------------------------------------------------------------------
def init_params(key):
    ks = jax.random.split(key, 10)

    def u(k, shape, fan_in):
        bound = 1.0 / np.sqrt(fan_in)
        return jax.random.uniform(k, shape, jnp.float32, -bound, bound)

    return {
        "conv1_w": u(ks[0], (6, 3, 5, 5), 3 * 5 * 5),
        "conv1_b": u(ks[1], (6,), 3 * 5 * 5),
        "conv2_w": u(ks[2], (16, 6, 5, 5), 6 * 5 * 5),
        "conv2_b": u(ks[3], (16,), 6 * 5 * 5),
        "fc1_w": u(ks[4], (400, 120), 400),
        "fc1_b": u(ks[5], (120,), 400),
        "fc2_w": u(ks[6], (120, 84), 120),
        "fc2_b": u(ks[7], (84,), 120),
        "fc3_w": u(ks[8], (84, NUM_CLASSES), 84),
        "fc3_b": u(ks[9], (NUM_CLASSES,), 84),
    }


def reference_forward(p, x_nchw):
    """Plain-JAX (XLA) reference with PyTorch semantics, for verification."""
    dn = ("NCHW", "OIHW", "NCHW")
    hi = lax.Precision.HIGHEST
    x = x_nchw.astype(jnp.float32)
    x = lax.conv_general_dilated(x, p["conv1_w"], (1, 1), "VALID",
                                 dimension_numbers=dn, precision=hi)
    x = jnp.maximum(x + p["conv1_b"][None, :, None, None], 0.0)
    x = lax.reduce_window(x, -jnp.inf, lax.max, (1, 1, 2, 2), (1, 1, 2, 2), "VALID")
    x = lax.conv_general_dilated(x, p["conv2_w"], (1, 1), "VALID",
                                 dimension_numbers=dn, precision=hi)
    x = jnp.maximum(x + p["conv2_b"][None, :, None, None], 0.0)
    x = lax.reduce_window(x, -jnp.inf, lax.max, (1, 1, 2, 2), (1, 1, 2, 2), "VALID")
    x = x.reshape(x.shape[0], 16 * 5 * 5)                 # NCHW flatten, like .view
    x = jnp.maximum(jnp.dot(x, p["fc1_w"], precision=hi) + p["fc1_b"], 0.0)
    x = jnp.maximum(jnp.dot(x, p["fc2_w"], precision=hi) + p["fc2_b"], 0.0)
    return jnp.dot(x, p["fc3_w"], precision=hi) + p["fc3_b"]


if __name__ == "__main__":
    key = jax.random.PRNGKey(0)
    k_param, k_x = jax.random.split(key)
    params = init_params(k_param)
    packed = pack_params(params)

    # Input must be 3x32x32 so the 16*5*5 flatten matches.  batch=16 gives
    # 2 image blocks of B_BLK=8 (grid length 2 -> both v7x TCs get work).
    x = jax.random.normal(k_x, (16, 3, 32, 32), dtype=jnp.float32)

    out = lenet_forward(packed, x)
    jax.block_until_ready(out)
    assert out.shape == (16, NUM_CLASSES)

    # Verify against the plain-JAX reference (same semantics as the PyTorch Net).
    ref = reference_forward(params, x)
    np.testing.assert_allclose(np.asarray(out), np.asarray(ref), rtol=0.0, atol=5e-3)

    print("KERNEL_OK")
</pallas_src>

<mosaic_0001>
module attributes {stable_mosaic.version = 11 : i64} {
  func.func @_lenet_block_kernel(%arg0: i32, %arg1: memref<1x256x96xf32, #tpu.memory_space<vmem>>, %arg2: memref<5x96x256xf32, #tpu.memory_space<vmem>>, %arg3: memref<1x128xf32, #tpu.memory_space<vmem>>, %arg4: memref<5x128x256xf32, #tpu.memory_space<vmem>>, %arg5: memref<1x128xf32, #tpu.memory_space<vmem>>, %arg6: memref<5x128x128xf32, #tpu.memory_space<vmem>>, %arg7: memref<1x128xf32, #tpu.memory_space<vmem>>, %arg8: memref<128x128xf32, #tpu.memory_space<vmem>>, %arg9: memref<1x128xf32, #tpu.memory_space<vmem>>, %arg10: memref<128x128xf32, #tpu.memory_space<vmem>>, %arg11: memref<1x128xf32, #tpu.memory_space<vmem>>, %arg12: memref<1x8x128xf32, #tpu.memory_space<vmem>>, %arg13: memref<112x128xf32, #tpu.memory_space<vmem>>) attributes {dimension_semantics = [#tpu.dimension_semantics<parallel>], iteration_bounds = array<i64: 2>, scalar_prefetch = 0 : i64, scratch_operands = 1 : i64, tpu.core_type = #tpu.core_type<tc>, window_params = [{transform_indices = @transform_0, window_bounds = array<i64: 1, 256, 96>}, {pipeline_mode = #tpu.pipeline_mode<synchronous>, transform_indices = @transform_1, window_bounds = array<i64: 5, 96, 256>}, {pipeline_mode = #tpu.pipeline_mode<synchronous>, transform_indices = @transform_2, window_bounds = array<i64: 1, 128>}, {pipeline_mode = #tpu.pipeline_mode<synchronous>, transform_indices = @transform_3, window_bounds = array<i64: 5, 128, 256>}, {pipeline_mode = #tpu.pipeline_mode<synchronous>, transform_indices = @transform_4, window_bounds = array<i64: 1, 128>}, {pipeline_mode = #tpu.pipeline_mode<synchronous>, transform_indices = @transform_5, window_bounds = array<i64: 5, 128, 128>}, {pipeline_mode = #tpu.pipeline_mode<synchronous>, transform_indices = @transform_6, window_bounds = array<i64: 1, 128>}, {pipeline_mode = #tpu.pipeline_mode<synchronous>, transform_indices = @transform_7, window_bounds = array<i64: 128, 128>}, {pipeline_mode = #tpu.pipeline_mode<synchronous>, transform_indices = @transform_8, window_bounds = array<i64: 1, 128>}, {pipeline_mode = #tpu.pipeline_mode<synchronous>, transform_indices = @transform_9, window_bounds = array<i64: 128, 128>}, {pipeline_mode = #tpu.pipeline_mode<synchronous>, transform_indices = @transform_10, window_bounds = array<i64: 1, 128>}, {transform_indices = @transform_11, window_bounds = array<i64: 1, 8, 128>}]} {
    %c0 = arith.constant 0 : index
    %c0_0 = arith.constant 0 : index
    %c0_1 = arith.constant 0 : index
    %0 = vector.load %arg1[%c0, %c0_0, %c0_1] : memref<1x256x96xf32, #tpu.memory_space<vmem>>, vector<1x224x96xf32>
    %1 = vector.shape_cast %0 : vector<1x224x96xf32> to vector<224x96xf32>
    %c0_2 = arith.constant 0 : index
    %c0_3 = arith.constant 0 : index
    %c0_4 = arith.constant 0 : index
    %2 = vector.load %arg2[%c0_2, %c0_3, %c0_4] : memref<5x96x256xf32, #tpu.memory_space<vmem>>, vector<1x96x256xf32>
    %3 = vector.shape_cast %2 : vector<1x96x256xf32> to vector<96x256xf32>
    %cst = arith.constant dense<0.000000e+00> : vector<224x256xf32>
    %4 = tpu.matmul %1, %3, %cst {dimension_numbers = #tpu.dot_dimension_numbers<[1], [0], [0], [1], [0, 0, 1, 1], [], []>} : vector<224x96xf32>, vector<96x256xf32>, vector<224x256xf32> -> vector<224x256xf32>
    %c0_5 = arith.constant 0 : index
    %c8 = arith.constant 8 : index
    %c0_6 = arith.constant 0 : index
    %5 = vector.load %arg1[%c0_5, %c8, %c0_6] : memref<1x256x96xf32, #tpu.memory_space<vmem>>, vector<1x224x96xf32>
    %6 = vector.shape_cast %5 : vector<1x224x96xf32> to vector<224x96xf32>
    %c1 = arith.constant 1 : index
    %c0_7 = arith.constant 0 : index
    %c0_8 = arith.constant 0 : index
    %7 = vector.load %arg2[%c1, %c0_7, %c0_8] : memref<5x96x256xf32, #tpu.memory_space<vmem>>, vector<1x96x256xf32>
    %8 = vector.shape_cast %7 : vector<1x96x256xf32> to vector<96x256xf32>
    %cst_9 = arith.constant dense<0.000000e+00> : vector<224x256xf32>
    %9 = tpu.matmul %6, %8, %cst_9 {dimension_numbers = #tpu.dot_dimension_numbers<[1], [0], [0], [1], [0, 0, 1, 1], [], []>} : vector<224x96xf32>, vector<96x256xf32>, vector<224x256xf32> -> vector<224x256xf32>
    %10 = arith.addf %4, %9 : vector<224x256xf32>
    %c0_10 = arith.constant 0 : index
    %c16 = arith.constant 16 : index
    %c0_11 = arith.constant 0 : index
    %11 = vector.load %arg1[%c0_10, %c16, %c0_11] : memref<1x256x96xf32, #tpu.memory_space<vmem>>, vector<1x224x96xf32>
    %12 = vector.shape_cast %11 : vector<1x224x96xf32> to vector<224x96xf32>
    %c2 = arith.constant 2 : index
    %c0_12 = arith.constant 0 : index
    %c0_13 = arith.constant 0 : index
    %13 = vector.load %arg2[%c2, %c0_12, %c0_13] : memref<5x96x256xf32, #tpu.memory_space<vmem>>, vector<1x96x256xf32>
    %14 = vector.shape_cast %13 : vector<1x96x256xf32> to vector<96x256xf32>
    %cst_14 = arith.constant dense<0.000000e+00> : vector<224x256xf32>
    %15 = tpu.matmul %12, %14, %cst_14 {dimension_numbers = #tpu.dot_dimension_numbers<[1], [0], [0], [1], [0, 0, 1, 1], [], []>} : vector<224x96xf32>, vector<96x256xf32>, vector<224x256xf32> -> vector<224x256xf32>
    %16 = arith.addf %10, %15 : vector<224x256xf32>
    %c0_15 = arith.constant 0 : index
    %c24 = arith.constant 24 : index
    %c0_16 = arith.constant 0 : index
    %17 = vector.load %arg1[%c0_15, %c24, %c0_16] : memref<1x256x96xf32, #tpu.memory_space<vmem>>, vector<1x224x96xf32>
    %18 = vector.shape_cast %17 : vector<1x224x96xf32> to vector<224x96xf32>
    %c3 = arith.constant 3 : index
    %c0_17 = arith.constant 0 : index
    %c0_18 = arith.constant 0 : index
    %19 = vector.load %arg2[%c3, %c0_17, %c0_18] : memref<5x96x256xf32, #tpu.memory_space<vmem>>, vector<1x96x256xf32>
    %20 = vector.shape_cast %19 : vector<1x96x256xf32> to vector<96x256xf32>
    %cst_19 = arith.constant dense<0.000000e+00> : vector<224x256xf32>
    %21 = tpu.matmul %18, %20, %cst_19 {dimension_numbers = #tpu.dot_dimension_numbers<[1], [0], [0], [1], [0, 0, 1, 1], [], []>} : vector<224x96xf32>, vector<96x256xf32>, vector<224x256xf32> -> vector<224x256xf32>
    %22 = arith.addf %16, %21 : vector<224x256xf32>
    %c0_20 = arith.constant 0 : index
    %c32 = arith.constant 32 : index
    %c0_21 = arith.constant 0 : index
    %23 = vector.load %arg1[%c0_20, %c32, %c0_21] : memref<1x256x96xf32, #tpu.memory_space<vmem>>, vector<1x224x96xf32>
    %24 = vector.shape_cast %23 : vector<1x224x96xf32> to vector<224x96xf32>
    %c4 = arith.constant 4 : index
    %c0_22 = arith.constant 0 : index
    %c0_23 = arith.constant 0 : index
    %25 = vector.load %arg2[%c4, %c0_22, %c0_23] : memref<5x96x256xf32, #tpu.memory_space<vmem>>, vector<1x96x256xf32>
    %26 = vector.shape_cast %25 : vector<1x96x256xf32> to vector<96x256xf32>
    %cst_24 = arith.constant dense<0.000000e+00> : vector<224x256xf32>
    %27 = tpu.matmul %24, %26, %cst_24 {dimension_numbers = #tpu.dot_dimension_numbers<[1], [0], [0], [1], [0, 0, 1, 1], [], []>} : vector<224x96xf32>, vector<96x256xf32>, vector<224x256xf32> -> vector<224x256xf32>
    %28 = arith.addf %22, %27 : vector<224x256xf32>
    %c0_25 = arith.constant 0 : index
    %c0_26 = arith.constant 0 : index
    %29 = vector.load %arg3[%c0_25, %c0_26] : memref<1x128xf32, #tpu.memory_space<vmem>>, vector<1x128xf32>
    %30 = vector.shape_cast %29 : vector<1x128xf32> to vector<1x128xf32>
    %31 = vector.broadcast %30 : vector<1x128xf32> to vector<8x128xf32>
    %32 = vector.extract_strided_slice %28 {offsets = [0, 0], sizes = [8, 256], strides = [1, 1]} : vector<224x256xf32> to vector<8x256xf32>
    %33 = vector.extract_strided_slice %28 {offsets = [8, 0], sizes = [8, 256], strides = [1, 1]} : vector<224x256xf32> to vector<8x256xf32>
    %34 = arith.maximumf %32, %33 : vector<8x256xf32>
    %35 = vector.extract_strided_slice %34 {offsets = [0, 0], sizes = [8, 128], strides = [1, 1]} : vector<8x256xf32> to vector<8x128xf32>
    %36 = vector.extract_strided_slice %34 {offsets = [0, 128], sizes = [8, 128], strides = [1, 1]} : vector<8x256xf32> to vector<8x128xf32>
    %37 = arith.maximumf %35, %36 : vector<8x128xf32>
    %38 = arith.addf %37, %31 : vector<8x128xf32>
    %cst_27 = arith.constant 0.000000e+00 : f32
    %39 = vector.broadcast %cst_27 : f32 to vector<8x128xf32>
    %40 = arith.maximumf %38, %39 : vector<8x128xf32>
    %c0_28 = arith.constant 0 : index
    %c0_29 = arith.constant 0 : index
    %41 = vector.load %arg13[%c0_28, %c0_29] : memref<112x128xf32, #tpu.memory_space<vmem>>, vector<8x128xf32>
    tpu.vector_store %arg13[%c0_28, %c0_29], %40 {strides = array<i32>} : memref<112x128xf32, #tpu.memory_space<vmem>>, vector<8x128xf32>,
    %42 = vector.extract_strided_slice %28 {offsets = [16, 0], sizes = [8, 256], strides = [1, 1]} : vector<224x256xf32> to vector<8x256xf32>
    %43 = vector.extract_strided_slice %28 {offsets = [24, 0], sizes = [8, 256], strides = [1, 1]} : vector<224x256xf32> to vector<8x256xf32>
    %44 = arith.maximumf %42, %43 : vector<8x256xf32>
    %45 = vector.extract_strided_slice %44 {offsets = [0, 0], sizes = [8, 128], strides = [1, 1]} : vector<8x256xf32> to vector<8x128xf32>
    %46 = vector.extract_strided_slice %44 {offsets = [0, 128], sizes = [8, 128], strides = [1, 1]} : vector<8x256xf32> to vector<8x128xf32>
    %47 = arith.maximumf %45, %46 : vector<8x128xf32>
    %48 = arith.addf %47, %31 : vector<8x128xf32>
    %cst_30 = arith.constant 0.000000e+00 : f32
    %49 = vector.broadcast %cst_30 : f32 to vector<8x128xf32>
    %50 = arith.maximumf %48, %49 : vector<8x128xf32>
    %c8_31 = arith.constant 8 : index
    %c0_32 = arith.constant 0 : index
    %51 = vector.load %arg13[%c8_31, %c0_32] : memref<112x128xf32, #tpu.memory_space<vmem>>, vector<8x128xf32>
    tpu.vector_store %arg13[%c8_31, %c0_32], %50 {strides = array<i32>} : memref<112x128xf32, #tpu.memory_space<vmem>>, vector<8x128xf32>,
    %52 = vector.extract_strided_slice %28 {offsets = [32, 0], sizes = [8, 256], strides = [1, 1]} : vector<224x256xf32> to vector<8x256xf32>
    %53 = vector.extract_strided_slice %28 {offsets = [40, 0], sizes = [8, 256], strides = [1, 1]} : vector<224x256xf32> to vector<8x256xf32>
    %54 = arith.maximumf %52, %53 : vector<8x256xf32>
    %55 = vector.extract_strided_slice %54 {offsets = [0, 0], sizes = [8, 128], strides = [1, 1]} : vector<8x256xf32> to vector<8x128xf32>
    %56 = vector.extract_strided_slice %54 {offsets = [0, 128], sizes = [8, 128], strides = [1, 1]} : vector<8x256xf32> to vector<8x128xf32>
    %57 = arith.maximumf %55, %56 : vector<8x128xf32>
    %58 = arith.addf %57, %31 : vector<8x128xf32>
    %cst_33 = arith.constant 0.000000e+00 : f32
    %59 = vector.broadcast %cst_33 : f32 to vector<8x128xf32>
    %60 = arith.maximumf %58, %59 : vector<8x128xf32>
    %c16_34 = arith.constant 16 : index
    %c0_35 = arith.constant 0 : index
    %61 = vector.load %arg13[%c16_34, %c0_35] : memref<112x128xf32, #tpu.memory_space<vmem>>, vector<8x128xf32>
    tpu.vector_store %arg13[%c16_34, %c0_35], %60 {strides = array<i32>} : memref<112x128xf32, #tpu.memory_space<vmem>>, vector<8x128xf32>,
    %62 = vector.extract_strided_slice %28 {offsets = [48, 0], sizes = [8, 256], strides = [1, 1]} : vector<224x256xf32> to vector<8x256xf32>
    %63 = vector.extract_strided_slice %28 {offsets = [56, 0], sizes = [8, 256], strides = [1, 1]} : vector<224x256xf32> to vector<8x256xf32>
    %64 = arith.maximumf %62, %63 : vector<8x256xf32>
    %65 = vector.extract_strided_slice %64 {offsets = [0, 0], sizes = [8, 128], strides = [1, 1]} : vector<8x256xf32> to vector<8x128xf32>
    %66 = vector.extract_strided_slice %64 {offsets = [0, 128], sizes = [8, 128], strides = [1, 1]} : vector<8x256xf32> to vector<8x128xf32>
    %67 = arith.maximumf %65, %66 : vector<8x128xf32>
    %68 = arith.addf %67, %31 : vector<8x128xf32>
    %cst_36 = arith.constant 0.000000e+00 : f32
    %69 = vector.broadcast %cst_36 : f32 to vector<8x128xf32>
    %70 = arith.maximumf %68, %69 : vector<8x128xf32>
    %c24_37 = arith.constant 24 : index
    %c0_38 = arith.constant 0 : index
    %71 = vector.load %arg13[%c24_37, %c0_38] : memref<112x128xf32, #tpu.memory_space<vmem>>, vector<8x128xf32>
    tpu.vector_store %arg13[%c24_37, %c0_38], %70 {strides = array<i32>} : memref<112x128xf32, #tpu.memory_space<vmem>>, vector<8x128xf32>,
    %72 = vector.extract_strided_slice %28 {offsets = [64, 0], sizes = [8, 256], strides = [1, 1]} : vector<224x256xf32> to vector<8x256xf32>
    %73 = vector.extract_strided_slice %28 {offsets = [72, 0], sizes = [8, 256], strides = [1, 1]} : vector<224x256xf32> to vector<8x256xf32>
    %74 = arith.maximumf %72, %73 : vector<8x256xf32>
    %75 = vector.extract_strided_slice %74 {offsets = [0, 0], sizes = [8, 128], strides = [1, 1]} : vector<8x256xf32> to vector<8x128xf32>
    %76 = vector.extract_strided_slice %74 {offsets = [0, 128], sizes = [8, 128], strides = [1, 1]} : vector<8x256xf32> to vector<8x128xf32>
    %77 = arith.maximumf %75, %76 : vector<8x128xf32>
    %78 = arith.addf %77, %31 : vector<8x128xf32>
    %cst_39 = arith.constant 0.000000e+00 : f32
    %79 = vector.broadcast %cst_39 : f32 to vector<8x128xf32>
    %80 = arith.maximumf %78, %79 : vector<8x128xf32>
    %c32_40 = arith.constant 32 : index
    %c0_41 = arith.constant 0 : index
    %81 = vector.load %arg13[%c32_40, %c0_41] : memref<112x128xf32, #tpu.memory_space<vmem>>, vector<8x128xf32>
    tpu.vector_store %arg13[%c32_40, %c0_41], %80 {strides = array<i32>} : memref<112x128xf32, #tpu.memory_space<vmem>>, vector<8x128xf32>,
    %82 = vector.extract_strided_slice %28 {offsets = [80, 0], sizes = [8, 256], strides = [1, 1]} : vector<224x256xf32> to vector<8x256xf32>
    %83 = vector.extract_strided_slice %28 {offsets = [88, 0], sizes = [8, 256], strides = [1, 1]} : vector<224x256xf32> to vector<8x256xf32>
    %84 = arith.maximumf %82, %83 : vector<8x256xf32>
    %85 = vector.extract_strided_slice %84 {offsets = [0, 0], sizes = [8, 128], strides = [1, 1]} : vector<8x256xf32> to vector<8x128xf32>
    %86 = vector.extract_strided_slice %84 {offsets = [0, 128], sizes = [8, 128], strides = [1, 1]} : vector<8x256xf32> to vector<8x128xf32>
    %87 = arith.maximumf %85, %86 : vector<8x128xf32>
    %88 = arith.addf %87, %31 : vector<8x128xf32>
    %cst_42 = arith.constant 0.000000e+00 : f32
    %89 = vector.broadcast %cst_42 : f32 to vector<8x128xf32>
    %90 = arith.maximumf %88, %89 : vector<8x128xf32>
    %c40 = arith.constant 40 : index
    %c0_43 = arith.constant 0 : index
    %91 = vector.load %arg13[%c40, %c0_43] : memref<112x128xf32, #tpu.memory_space<vmem>>, vector<8x128xf32>
    tpu.vector_store %arg13[%c40, %c0_43], %90 {strides = array<i32>} : memref<112x128xf32, #tpu.memory_space<vmem>>, vector<8x128xf32>,
    %92 = vector.extract_strided_slice %28 {offsets = [96, 0], sizes = [8, 256], strides = [1, 1]} : vector<224x256xf32> to vector<8x256xf32>
    %93 = vector.extract_strided_slice %28 {offsets = [104, 0], sizes = [8, 256], strides = [1, 1]} : vector<224x256xf32> to vector<8x256xf32>
    %94 = arith.maximumf %92, %93 : vector<8x256xf32>
    %95 = vector.extract_strided_slice %94 {offsets = [0, 0], sizes = [8, 128], strides = [1, 1]} : vector<8x256xf32> to vector<8x128xf32>
    %96 = vector.extract_strided_slice %94 {offsets = [0, 128], sizes = [8, 128], strides = [1, 1]} : vector<8x256xf32> to vector<8x128xf32>
    %97 = arith.maximumf %95, %96 : vector<8x128xf32>
    %98 = arith.addf %97, %31 : vector<8x128xf32>
    %cst_44 = arith.constant 0.000000e+00 : f32
    %99 = vector.broadcast %cst_44 : f32 to vector<8x128xf32>
    %100 = arith.maximumf %98, %99 : vector<8x128xf32>
    %c48 = arith.constant 48 : index
    %c0_45 = arith.constant 0 : index
    %101 = vector.load %arg13[%c48, %c0_45] : memref<112x128xf32, #tpu.memory_space<vmem>>, vector<8x128xf32>
    tpu.vector_store %arg13[%c48, %c0_45], %100 {strides = array<i32>} : memref<112x128xf32, #tpu.memory_space<vmem>>, vector<8x128xf32>,
    %102 = vector.extract_strided_slice %28 {offsets = [112, 0], sizes = [8, 256], strides = [1, 1]} : vector<224x256xf32> to vector<8x256xf32>
    %103 = vector.extract_strided_slice %28 {offsets = [120, 0], sizes = [8, 256], strides = [1, 1]} : vector<224x256xf32> to vector<8x256xf32>
    %104 = arith.maximumf %102, %103 : vector<8x256xf32>
    %105 = vector.extract_strided_slice %104 {offsets = [0, 0], sizes = [8, 128], strides = [1, 1]} : vector<8x256xf32> to vector<8x128xf32>
    %106 = vector.extract_strided_slice %104 {offsets = [0, 128], sizes = [8, 128], strides = [1, 1]} : vector<8x256xf32> to vector<8x128xf32>
    %107 = arith.maximumf %105, %106 : vector<8x128xf32>
    %108 = arith.addf %107, %31 : vector<8x128xf32>
    %cst_46 = arith.constant 0.000000e+00 : f32
    %109 = vector.broadcast %cst_46 : f32 to vector<8x128xf32>
    %110 = arith.maximumf %108, %109 : vector<8x128xf32>
    %c56 = arith.constant 56 : index
    %c0_47 = arith.constant 0 : index
    %111 = vector.load %arg13[%c56, %c0_47] : memref<112x128xf32, #tpu.memory_space<vmem>>, vector<8x128xf32>
    tpu.vector_store %arg13[%c56, %c0_47], %110 {strides = array<i32>} : memref<112x128xf32, #tpu.memory_space<vmem>>, vector<8x128xf32>,
    %112 = vector.extract_strided_slice %28 {offsets = [128, 0], sizes = [8, 256], strides = [1, 1]} : vector<224x256xf32> to vector<8x256xf32>
    %113 = vector.extract_strided_slice %28 {offsets = [136, 0], sizes = [8, 256], strides = [1, 1]} : vector<224x256xf32> to vector<8x256xf32>
    %114 = arith.maximumf %112, %113 : vector<8x256xf32>
    %115 = vector.extract_strided_slice %114 {offsets = [0, 0], sizes = [8, 128], strides = [1, 1]} : vector<8x256xf32> to vector<8x128xf32>
    %116 = vector.extract_strided_slice %114 {offsets = [0, 128], sizes = [8, 128], strides = [1, 1]} : vector<8x256xf32> to vector<8x128xf32>
    %117 = arith.maximumf %115, %116 : vector<8x128xf32>
    %118 = arith.addf %117, %31 : vector<8x128xf32>
    %cst_48 = arith.constant 0.000000e+00 : f32
    %119 = vector.broadcast %cst_48 : f32 to vector<8x128xf32>
    %120 = arith.maximumf %118, %119 : vector<8x128xf32>
    %c64 = arith.constant 64 : index
    %c0_49 = arith.constant 0 : index
    %121 = vector.load %arg13[%c64, %c0_49] : memref<112x128xf32, #tpu.memory_space<vmem>>, vector<8x128xf32>
    tpu.vector_store %arg13[%c64, %c0_49], %120 {strides = array<i32>} : memref<112x128xf32, #tpu.memory_space<vmem>>, vector<8x128xf32>,
    %122 = vector.extract_strided_slice %28 {offsets = [144, 0], sizes = [8, 256], strides = [1, 1]} : vector<224x256xf32> to vector<8x256xf32>
    %123 = vector.extract_strided_slice %28 {offsets = [152, 0], sizes = [8, 256], strides = [1, 1]} : vector<224x256xf32> to vector<8x256xf32>
    %124 = arith.maximumf %122, %123 : vector<8x256xf32>
    %125 = vector.extract_strided_slice %124 {offsets = [0, 0], sizes = [8, 128], strides = [1, 1]} : vector<8x256xf32> to vector<8x128xf32>
    %126 = vector.extract_strided_slice %124 {offsets = [0, 128], sizes = [8, 128], strides = [1, 1]} : vector<8x256xf32> to vector<8x128xf32>
    %127 = arith.maximumf %125, %126 : vector<8x128xf32>
    %128 = arith.addf %127, %31 : vector<8x128xf32>
    %cst_50 = arith.constant 0.000000e+00 : f32
    %129 = vector.broadcast %cst_50 : f32 to vector<8x128xf32>
    %130 = arith.maximumf %128, %129 : vector<8x128xf32>
    %c72 = arith.constant 72 : index
    %c0_51 = arith.constant 0 : index
    %131 = vector.load %arg13[%c72, %c0_51] : memref<112x128xf32, #tpu.memory_space<vmem>>, vector<8x128xf32>
    tpu.vector_store %arg13[%c72, %c0_51], %130 {strides = array<i32>} : memref<112x128xf32, #tpu.memory_space<vmem>>, vector<8x128xf32>,
    %132 = vector.extract_strided_slice %28 {offsets = [160, 0], sizes = [8, 256], strides = [1, 1]} : vector<224x256xf32> to vector<8x256xf32>
    %133 = vector.extract_strided_slice %28 {offsets = [168, 0], sizes = [8, 256], strides = [1, 1]} : vector<224x256xf32> to vector<8x256xf32>
    %134 = arith.maximumf %132, %133 : vector<8x256xf32>
    %135 = vector.extract_strided_slice %134 {offsets = [0, 0], sizes = [8, 128], strides = [1, 1]} : vector<8x256xf32> to vector<8x128xf32>
    %136 = vector.extract_strided_slice %134 {offsets = [0, 128], sizes = [8, 128], strides = [1, 1]} : vector<8x256xf32> to vector<8x128xf32>
    %137 = arith.maximumf %135, %136 : vector<8x128xf32>
    %138 = arith.addf %137, %31 : vector<8x128xf32>
    %cst_52 = arith.constant 0.000000e+00 : f32
    %139 = vector.broadcast %cst_52 : f32 to vector<8x128xf32>
    %140 = arith.maximumf %138, %139 : vector<8x128xf32>
    %c80 = arith.constant 80 : index
    %c0_53 = arith.constant 0 : index
    %141 = vector.load %arg13[%c80, %c0_53] : memref<112x128xf32, #tpu.memory_space<vmem>>, vector<8x128xf32>
    tpu.vector_store %arg13[%c80, %c0_53], %140 {strides = array<i32>} : memref<112x128xf32, #tpu.memory_space<vmem>>, vector<8x128xf32>,
    %142 = vector.extract_strided_slice %28 {offsets = [176, 0], sizes = [8, 256], strides = [1, 1]} : vector<224x256xf32> to vector<8x256xf32>
    %143 = vector.extract_strided_slice %28 {offsets = [184, 0], sizes = [8, 256], strides = [1, 1]} : vector<224x256xf32> to vector<8x256xf32>
    %144 = arith.maximumf %142, %143 : vector<8x256xf32>
    %145 = vector.extract_strided_slice %144 {offsets = [0, 0], sizes = [8, 128], strides = [1, 1]} : vector<8x256xf32> to vector<8x128xf32>
    %146 = vector.extract_strided_slice %144 {offsets = [0, 128], sizes = [8, 128], strides = [1, 1]} : vector<8x256xf32> to vector<8x128xf32>
    %147 = arith.maximumf %145, %146 : vector<8x128xf32>
    %148 = arith.addf %147, %31 : vector<8x128xf32>
    %cst_54 = arith.constant 0.000000e+00 : f32
    %149 = vector.broadcast %cst_54 : f32 to vector<8x128xf32>
    %150 = arith.maximumf %148, %149 : vector<8x128xf32>
    %c88 = arith.constant 88 : index
    %c0_55 = arith.constant 0 : index
    %151 = vector.load %arg13[%c88, %c0_55] : memref<112x128xf32, #tpu.memory_space<vmem>>, vector<8x128xf32>
    tpu.vector_store %arg13[%c88, %c0_55], %150 {strides = array<i32>} : memref<112x128xf32, #tpu.memory_space<vmem>>, vector<8x128xf32>,
    %152 = vector.extract_strided_slice %28 {offsets = [192, 0], sizes = [8, 256], strides = [1, 1]} : vector<224x256xf32> to vector<8x256xf32>
    %153 = vector.extract_strided_slice %28 {offsets = [200, 0], sizes = [8, 256], strides = [1, 1]} : vector<224x256xf32> to vector<8x256xf32>
    %154 = arith.maximumf %152, %153 : vector<8x256xf32>
    %155 = vector.extract_strided_slice %154 {offsets = [0, 0], sizes = [8, 128], strides = [1, 1]} : vector<8x256xf32> to vector<8x128xf32>
    %156 = vector.extract_strided_slice %154 {offsets = [0, 128], sizes = [8, 128], strides = [1, 1]} : vector<8x256xf32> to vector<8x128xf32>
    %157 = arith.maximumf %155, %156 : vector<8x128xf32>
    %158 = arith.addf %157, %31 : vector<8x128xf32>
    %cst_56 = arith.constant 0.000000e+00 : f32
    %159 = vector.broadcast %cst_56 : f32 to vector<8x128xf32>
    %160 = arith.maximumf %158, %159 : vector<8x128xf32>
    %c96 = arith.constant 96 : index
    %c0_57 = arith.constant 0 : index
    %161 = vector.load %arg13[%c96, %c0_57] : memref<112x128xf32, #tpu.memory_space<vmem>>, vector<8x128xf32>
    tpu.vector_store %arg13[%c96, %c0_57], %160 {strides = array<i32>} : memref<112x128xf32, #tpu.memory_space<vmem>>, vector<8x128xf32>,
    %162 = vector.extract_strided_slice %28 {offsets = [208, 0], sizes = [8, 256], strides = [1, 1]} : vector<224x256xf32> to vector<8x256xf32>
    %163 = vector.extract_strided_slice %28 {offsets = [216, 0], sizes = [8, 256], strides = [1, 1]} : vector<224x256xf32> to vector<8x256xf32>
    %164 = arith.maximumf %162, %163 : vector<8x256xf32>
    %165 = vector.extract_strided_slice %164 {offsets = [0, 0], sizes = [8, 128], strides = [1, 1]} : vector<8x256xf32> to vector<8x128xf32>
    %166 = vector.extract_strided_slice %164 {offsets = [0, 128], sizes = [8, 128], strides = [1, 1]} : vector<8x256xf32> to vector<8x128xf32>
    %167 = arith.maximumf %165, %166 : vector<8x128xf32>
    %168 = arith.addf %167, %31 : vector<8x128xf32>
    %cst_58 = arith.constant 0.000000e+00 : f32
    %169 = vector.broadcast %cst_58 : f32 to vector<8x128xf32>
    %170 = arith.maximumf %168, %169 : vector<8x128xf32>
    %c104 = arith.constant 104 : index
    %c0_59 = arith.constant 0 : index
    %171 = vector.load %arg13[%c104, %c0_59] : memref<112x128xf32, #tpu.memory_space<vmem>>, vector<8x128xf32>
    tpu.vector_store %arg13[%c104, %c0_59], %170 {strides = array<i32>} : memref<112x128xf32, #tpu.memory_space<vmem>>, vector<8x128xf32>,
    %c0_60 = arith.constant 0 : index
    %c0_61 = arith.constant 0 : index
    %172 = vector.load %arg13[%c0_60, %c0_61] : memref<112x128xf32, #tpu.memory_space<vmem>>, vector<80x128xf32>
    %c0_62 = arith.constant 0 : index
    %c0_63 = arith.constant 0 : index
    %c0_64 = arith.constant 0 : index
    %173 = vector.load %arg4[%c0_62, %c0_63, %c0_64] : memref<5x128x256xf32, #tpu.memory_space<vmem>>, vector<1x128x256xf32>
    %174 = vector.shape_cast %173 : vector<1x128x256xf32> to vector<128x256xf32>
    %cst_65 = arith.constant dense<0.000000e+00> : vector<80x256xf32>
    %175 = tpu.matmul %172, %174, %cst_65 {dimension_numbers = #tpu.dot_dimension_numbers<[1], [0], [0], [1], [0, 0, 1, 1], [], []>} : vector<80x128xf32>, vector<128x256xf32>, vector<80x256xf32> -> vector<80x256xf32>
    %c8_66 = arith.constant 8 : index
    %c0_67 = arith.constant 0 : index
    %176 = vector.load %arg13[%c8_66, %c0_67] : memref<112x128xf32, #tpu.memory_space<vmem>>, vector<80x128xf32>
    %c1_68 = arith.constant 1 : index
    %c0_69 = arith.constant 0 : index
    %c0_70 = arith.constant 0 : index
    %177 = vector.load %arg4[%c1_68, %c0_69, %c0_70] : memref<5x128x256xf32, #tpu.memory_space<vmem>>, vector<1x128x256xf32>
    %178 = vector.shape_cast %177 : vector<1x128x256xf32> to vector<128x256xf32>
    %cst_71 = arith.constant dense<0.000000e+00> : vector<80x256xf32>
    %179 = tpu.matmul %176, %178, %cst_71 {dimension_numbers = #tpu.dot_dimension_numbers<[1], [0], [0], [1], [0, 0, 1, 1], [], []>} : vector<80x128xf32>, vector<128x256xf32>, vector<80x256xf32> -> vector<80x256xf32>
    %180 = arith.addf %175, %179 : vector<80x256xf32>
    %c16_72 = arith.constant 16 : index
    %c0_73 = arith.constant 0 : index
    %181 = vector.load %arg13[%c16_72, %c0_73] : memref<112x128xf32, #tpu.memory_space<vmem>>, vector<80x128xf32>
    %c2_74 = arith.constant 2 : index
    %c0_75 = arith.constant 0 : index
    %c0_76 = arith.constant 0 : index
    %182 = vector.load %arg4[%c2_74, %c0_75, %c0_76] : memref<5x128x256xf32, #tpu.memory_space<vmem>>, vector<1x128x256xf32>
    %183 = vector.shape_cast %182 : vector<1x128x256xf32> to vector<128x256xf32>
    %cst_77 = arith.constant dense<0.000000e+00> : vector<80x256xf32>
    %184 = tpu.matmul %181, %183, %cst_77 {dimension_numbers = #tpu.dot_dimension_numbers<[1], [0], [0], [1], [0, 0, 1, 1], [], []>} : vector<80x128xf32>, vector<128x256xf32>, vector<80x256xf32> -> vector<80x256xf32>
    %185 = arith.addf %180, %184 : vector<80x256xf32>
    %c24_78 = arith.constant 24 : index
    %c0_79 = arith.constant 0 : index
    %186 = vector.load %arg13[%c24_78, %c0_79] : memref<112x128xf32, #tpu.memory_space<vmem>>, vector<80x128xf32>
    %c3_80 = arith.constant 3 : index
    %c0_81 = arith.constant 0 : index
    %c0_82 = arith.constant 0 : index
    %187 = vector.load %arg4[%c3_80, %c0_81, %c0_82] : memref<5x128x256xf32, #tpu.memory_space<vmem>>, vector<1x128x256xf32>
    %188 = vector.shape_cast %187 : vector<1x128x256xf32> to vector<128x256xf32>
    %cst_83 = arith.constant dense<0.000000e+00> : vector<80x256xf32>
    %189 = tpu.matmul %186, %188, %cst_83 {dimension_numbers = #tpu.dot_dimension_numbers<[1], [0], [0], [1], [0, 0, 1, 1], [], []>} : vector<80x128xf32>, vector<128x256xf32>, vector<80x256xf32> -> vector<80x256xf32>
    %190 = arith.addf %185, %189 : vector<80x256xf32>
    %c32_84 = arith.constant 32 : index
    %c0_85 = arith.constant 0 : index
    %191 = vector.load %arg13[%c32_84, %c0_85] : memref<112x128xf32, #tpu.memory_space<vmem>>, vector<80x128xf32>
    %c4_86 = arith.constant 4 : index
    %c0_87 = arith.constant 0 : index
    %c0_88 = arith.constant 0 : index
    %192 = vector.load %arg4[%c4_86, %c0_87, %c0_88] : memref<5x128x256xf32, #tpu.memory_space<vmem>>, vector<1x128x256xf32>
    %193 = vector.shape_cast %192 : vector<1x128x256xf32> to vector<128x256xf32>
    %cst_89 = arith.constant dense<0.000000e+00> : vector<80x256xf32>
    %194 = tpu.matmul %191, %193, %cst_89 {dimension_numbers = #tpu.dot_dimension_numbers<[1], [0], [0], [1], [0, 0, 1, 1], [], []>} : vector<80x128xf32>, vector<128x256xf32>, vector<80x256xf32> -> vector<80x256xf32>
    %195 = arith.addf %190, %194 : vector<80x256xf32>
    %c0_90 = arith.constant 0 : index
    %c0_91 = arith.constant 0 : index
    %196 = vector.load %arg5[%c0_90, %c0_91] : memref<1x128xf32, #tpu.memory_space<vmem>>, vector<1x128xf32>
    %197 = vector.shape_cast %196 : vector<1x128xf32> to vector<1x128xf32>
    %198 = vector.broadcast %197 : vector<1x128xf32> to vector<8x128xf32>
    %199 = vector.extract_strided_slice %195 {offsets = [0, 0], sizes = [8, 256], strides = [1, 1]} : vector<80x256xf32> to vector<8x256xf32>
    %200 = vector.extract_strided_slice %195 {offsets = [8, 0], sizes = [8, 256], strides = [1, 1]} : vector<80x256xf32> to vector<8x256xf32>
    %201 = arith.maximumf %199, %200 : vector<8x256xf32>
    %202 = vector.extract_strided_slice %201 {offsets = [0, 0], sizes = [8, 128], strides = [1, 1]} : vector<8x256xf32> to vector<8x128xf32>
    %203 = vector.extract_strided_slice %201 {offsets = [0, 128], sizes = [8, 128], strides = [1, 1]} : vector<8x256xf32> to vector<8x128xf32>
    %204 = arith.maximumf %202, %203 : vector<8x128xf32>
    %205 = arith.addf %204, %198 : vector<8x128xf32>
    %cst_92 = arith.constant 0.000000e+00 : f32
    %206 = vector.broadcast %cst_92 : f32 to vector<8x128xf32>
    %207 = arith.maximumf %205, %206 : vector<8x128xf32>
    %c0_93 = arith.constant 0 : index
    %c0_94 = arith.constant 0 : index
    %c0_95 = arith.constant 0 : index
    %208 = vector.load %arg6[%c0_93, %c0_94, %c0_95] : memref<5x128x128xf32, #tpu.memory_space<vmem>>, vector<1x128x128xf32>
    %209 = vector.shape_cast %208 : vector<1x128x128xf32> to vector<128x128xf32>
    %cst_96 = arith.constant dense<0.000000e+00> : vector<8x128xf32>
    %210 = tpu.matmul %207, %209, %cst_96 {dimension_numbers = #tpu.dot_dimension_numbers<[1], [0], [0], [1], [0, 0, 1, 1], [], []>} : vector<8x128xf32>, vector<128x128xf32>, vector<8x128xf32> -> vector<8x128xf32>
    %211 = vector.extract_strided_slice %195 {offsets = [16, 0], sizes = [8, 256], strides = [1, 1]} : vector<80x256xf32> to vector<8x256xf32>
    %212 = vector.extract_strided_slice %195 {offsets = [24, 0], sizes = [8, 256], strides = [1, 1]} : vector<80x256xf32> to vector<8x256xf32>
    %213 = arith.maximumf %211, %212 : vector<8x256xf32>
    %214 = vector.extract_strided_slice %213 {offsets = [0, 0], sizes = [8, 128], strides = [1, 1]} : vector<8x256xf32> to vector<8x128xf32>
    %215 = vector.extract_strided_slice %213 {offsets = [0, 128], sizes = [8, 128], strides = [1, 1]} : vector<8x256xf32> to vector<8x128xf32>
    %216 = arith.maximumf %214, %215 : vector<8x128xf32>
    %217 = arith.addf %216, %198 : vector<8x128xf32>
    %cst_97 = arith.constant 0.000000e+00 : f32
    %218 = vector.broadcast %cst_97 : f32 to vector<8x128xf32>
    %219 = arith.maximumf %217, %218 : vector<8x128xf32>
    %c1_98 = arith.constant 1 : index
    %c0_99 = arith.constant 0 : index
    %c0_100 = arith.constant 0 : index
    %220 = vector.load %arg6[%c1_98, %c0_99, %c0_100] : memref<5x128x128xf32, #tpu.memory_space<vmem>>, vector<1x128x128xf32>
    %221 = vector.shape_cast %220 : vector<1x128x128xf32> to vector<128x128xf32>
    %cst_101 = arith.constant dense<0.000000e+00> : vector<8x128xf32>
    %222 = tpu.matmul %219, %221, %cst_101 {dimension_numbers = #tpu.dot_dimension_numbers<[1], [0], [0], [1], [0, 0, 1, 1], [], []>} : vector<8x128xf32>, vector<128x128xf32>, vector<8x128xf32> -> vector<8x128xf32>
    %223 = arith.addf %210, %222 : vector<8x128xf32>
    %224 = vector.extract_strided_slice %195 {offsets = [32, 0], sizes = [8, 256], strides = [1, 1]} : vector<80x256xf32> to vector<8x256xf32>
    %225 = vector.extract_strided_slice %195 {offsets = [40, 0], sizes = [8, 256], strides = [1, 1]} : vector<80x256xf32> to vector<8x256xf32>
    %226 = arith.maximumf %224, %225 : vector<8x256xf32>
    %227 = vector.extract_strided_slice %226 {offsets = [0, 0], sizes = [8, 128], strides = [1, 1]} : vector<8x256xf32> to vector<8x128xf32>
    %228 = vector.extract_strided_slice %226 {offsets = [0, 128], sizes = [8, 128], strides = [1, 1]} : vector<8x256xf32> to vector<8x128xf32>
    %229 = arith.maximumf %227, %228 : vector<8x128xf32>
    %230 = arith.addf %229, %198 : vector<8x128xf32>
    %cst_102 = arith.constant 0.000000e+00 : f32
    %231 = vector.broadcast %cst_102 : f32 to vector<8x128xf32>
    %232 = arith.maximumf %230, %231 : vector<8x128xf32>
    %c2_103 = arith.constant 2 : index
    %c0_104 = arith.constant 0 : index
    %c0_105 = arith.constant 0 : index
    %233 = vector.load %arg6[%c2_103, %c0_104, %c0_105] : memref<5x128x128xf32, #tpu.memory_space<vmem>>, vector<1x128x128xf32>
    %234 = vector.shape_cast %233 : vector<1x128x128xf32> to vector<128x128xf32>
    %cst_106 = arith.constant dense<0.000000e+00> : vector<8x128xf32>
    %235 = tpu.matmul %232, %234, %cst_106 {dimension_numbers = #tpu.dot_dimension_numbers<[1], [0], [0], [1], [0, 0, 1, 1], [], []>} : vector<8x128xf32>, vector<128x128xf32>, vector<8x128xf32> -> vector<8x128xf32>
    %236 = arith.addf %223, %235 : vector<8x128xf32>
    %237 = vector.extract_strided_slice %195 {offsets = [48, 0], sizes = [8, 256], strides = [1, 1]} : vector<80x256xf32> to vector<8x256xf32>
    %238 = vector.extract_strided_slice %195 {offsets = [56, 0], sizes = [8, 256], strides = [1, 1]} : vector<80x256xf32> to vector<8x256xf32>
    %239 = arith.maximumf %237, %238 : vector<8x256xf32>
    %240 = vector.extract_strided_slice %239 {offsets = [0, 0], sizes = [8, 128], strides = [1, 1]} : vector<8x256xf32> to vector<8x128xf32>
    %241 = vector.extract_strided_slice %239 {offsets = [0, 128], sizes = [8, 128], strides = [1, 1]} : vector<8x256xf32> to vector<8x128xf32>
    %242 = arith.maximumf %240, %241 : vector<8x128xf32>
    %243 = arith.addf %242, %198 : vector<8x128xf32>
    %cst_107 = arith.constant 0.000000e+00 : f32
    %244 = vector.broadcast %cst_107 : f32 to vector<8x128xf32>
    %245 = arith.maximumf %243, %244 : vector<8x128xf32>
    %c3_108 = arith.constant 3 : index
    %c0_109 = arith.constant 0 : index
    %c0_110 = arith.constant 0 : index
    %246 = vector.load %arg6[%c3_108, %c0_109, %c0_110] : memref<5x128x128xf32, #tpu.memory_space<vmem>>, vector<1x128x128xf32>
    %247 = vector.shape_cast %246 : vector<1x128x128xf32> to vector<128x128xf32>
    %cst_111 = arith.constant dense<0.000000e+00> : vector<8x128xf32>
    %248 = tpu.matmul %245, %247, %cst_111 {dimension_numbers = #tpu.dot_dimension_numbers<[1], [0], [0], [1], [0, 0, 1, 1], [], []>} : vector<8x128xf32>, vector<128x128xf32>, vector<8x128xf32> -> vector<8x128xf32>
    %249 = arith.addf %236, %248 : vector<8x128xf32>
    %250 = vector.extract_strided_slice %195 {offsets = [64, 0], sizes = [8, 256], strides = [1, 1]} : vector<80x256xf32> to vector<8x256xf32>
    %251 = vector.extract_strided_slice %195 {offsets = [72, 0], sizes = [8, 256], strides = [1, 1]} : vector<80x256xf32> to vector<8x256xf32>
    %252 = arith.maximumf %250, %251 : vector<8x256xf32>
    %253 = vector.extract_strided_slice %252 {offsets = [0, 0], sizes = [8, 128], strides = [1, 1]} : vector<8x256xf32> to vector<8x128xf32>
    %254 = vector.extract_strided_slice %252 {offsets = [0, 128], sizes = [8, 128], strides = [1, 1]} : vector<8x256xf32> to vector<8x128xf32>
    %255 = arith.maximumf %253, %254 : vector<8x128xf32>
    %256 = arith.addf %255, %198 : vector<8x128xf32>
    %cst_112 = arith.constant 0.000000e+00 : f32
    %257 = vector.broadcast %cst_112 : f32 to vector<8x128xf32>
    %258 = arith.maximumf %256, %257 : vector<8x128xf32>
    %c4_113 = arith.constant 4 : index
    %c0_114 = arith.constant 0 : index
    %c0_115 = arith.constant 0 : index
    %259 = vector.load %arg6[%c4_113, %c0_114, %c0_115] : memref<5x128x128xf32, #tpu.memory_space<vmem>>, vector<1x128x128xf32>
    %260 = vector.shape_cast %259 : vector<1x128x128xf32> to vector<128x128xf32>
    %cst_116 = arith.constant dense<0.000000e+00> : vector<8x128xf32>
    %261 = tpu.matmul %258, %260, %cst_116 {dimension_numbers = #tpu.dot_dimension_numbers<[1], [0], [0], [1], [0, 0, 1, 1], [], []>} : vector<8x128xf32>, vector<128x128xf32>, vector<8x128xf32> -> vector<8x128xf32>
    %262 = arith.addf %249, %261 : vector<8x128xf32>
    %c0_117 = arith.constant 0 : index
    %c0_118 = arith.constant 0 : index
    %263 = vector.load %arg7[%c0_117, %c0_118] : memref<1x128xf32, #tpu.memory_space<vmem>>, vector<1x128xf32>
    %264 = vector.broadcast %263 : vector<1x128xf32> to vector<8x128xf32>
    %265 = arith.addf %262, %264 : vector<8x128xf32>
    %cst_119 = arith.constant 0.000000e+00 : f32
    %266 = vector.broadcast %cst_119 : f32 to vector<8x128xf32>
    %267 = arith.maximumf %265, %266 : vector<8x128xf32>
    %c0_120 = arith.constant 0 : index
    %c0_121 = arith.constant 0 : index
    %268 = vector.load %arg8[%c0_120, %c0_121] : memref<128x128xf32, #tpu.memory_space<vmem>>, vector<128x128xf32>
    %cst_122 = arith.constant dense<0.000000e+00> : vector<8x128xf32>
    %269 = tpu.matmul %267, %268, %cst_122 {dimension_numbers = #tpu.dot_dimension_numbers<[1], [0], [0], [1], [0, 0, 1, 1], [], []>} : vector<8x128xf32>, vector<128x128xf32>, vector<8x128xf32> -> vector<8x128xf32>
    %c0_123 = arith.constant 0 : index
    %c0_124 = arith.constant 0 : index
    %270 = vector.load %arg9[%c0_123, %c0_124] : memref<1x128xf32, #tpu.memory_space<vmem>>, vector<1x128xf32>
    %271 = vector.broadcast %270 : vector<1x128xf32> to vector<8x128xf32>
    %272 = arith.addf %269, %271 : vector<8x128xf32>
    %cst_125 = arith.constant 0.000000e+00 : f32
    %273 = vector.broadcast %cst_125 : f32 to vector<8x128xf32>
    %274 = arith.maximumf %272, %273 : vector<8x128xf32>
    %c0_126 = arith.constant 0 : index
    %c0_127 = arith.constant 0 : index
    %275 = vector.load %arg10[%c0_126, %c0_127] : memref<128x128xf32, #tpu.memory_space<vmem>>, vector<128x128xf32>
    %cst_128 = arith.constant dense<0.000000e+00> : vector<8x128xf32>
    %276 = tpu.matmul %274, %275, %cst_128 {dimension_numbers = #tpu.dot_dimension_numbers<[1], [0], [0], [1], [0, 0, 1, 1], [], []>} : vector<8x128xf32>, vector<128x128xf32>, vector<8x128xf32> -> vector<8x128xf32>
    %c0_129 = arith.constant 0 : index
    %c0_130 = arith.constant 0 : index
    %277 = vector.load %arg11[%c0_129, %c0_130] : memref<1x128xf32, #tpu.memory_space<vmem>>, vector<1x128xf32>
    %278 = vector.broadcast %277 : vector<1x128xf32> to vector<8x128xf32>
    %279 = arith.addf %276, %278 : vector<8x128xf32>
    %c0_131 = arith.constant 0 : index
    %c0_132 = arith.constant 0 : index
    %c0_133 = arith.constant 0 : index
    %280 = vector.load %arg12[%c0_131, %c0_132, %c0_133] : memref<1x8x128xf32, #tpu.memory_space<vmem>>, vector<1x8x128xf32>
    %281 = vector.shape_cast %280 : vector<1x8x128xf32> to vector<8x128xf32>
    %282 = vector.shape_cast %279 : vector<8x128xf32> to vector<1x8x128xf32>
    tpu.vector_store %arg12[%c0_131, %c0_132, %c0_133], %282 {strides = array<i32>} : memref<1x8x128xf32, #tpu.memory_space<vmem>>, vector<1x8x128xf32>,
    return
  }
  func.func @transform_0(%arg0: i32) -> (i32, i32, i32) {
    %c0_i32 = arith.constant 0 : i32
    %c0_i32_0 = arith.constant 0 : i32
    %c0_i32_1 = arith.constant 0 : i32
    return %arg0, %c0_i32, %c0_i32_0 : i32, i32, i32
  }
  func.func @transform_1(%arg0: i32) -> (i32, i32, i32) {
    %c0_i32 = arith.constant 0 : i32
    %c0_i32_0 = arith.constant 0 : i32
    %c0_i32_1 = arith.constant 0 : i32
    %c0_i32_2 = arith.constant 0 : i32
    return %c0_i32, %c0_i32_0, %c0_i32_1 : i32, i32, i32
  }
  func.func @transform_2(%arg0: i32) -> (i32, i32) {
    %c0_i32 = arith.constant 0 : i32
    %c0_i32_0 = arith.constant 0 : i32
    %c0_i32_1 = arith.constant 0 : i32
    return %c0_i32, %c0_i32_0 : i32, i32
  }
  func.func @transform_3(%arg0: i32) -> (i32, i32, i32) {
    %c0_i32 = arith.constant 0 : i32
    %c0_i32_0 = arith.constant 0 : i32
    %c0_i32_1 = arith.constant 0 : i32
    %c0_i32_2 = arith.constant 0 : i32
    return %c0_i32, %c0_i32_0, %c0_i32_1 : i32, i32, i32
  }
  func.func @transform_4(%arg0: i32) -> (i32, i32) {
    %c0_i32 = arith.constant 0 : i32
    %c0_i32_0 = arith.constant 0 : i32
    %c0_i32_1 = arith.constant 0 : i32
    return %c0_i32, %c0_i32_0 : i32, i32
  }
  func.func @transform_5(%arg0: i32) -> (i32, i32, i32) {
    %c0_i32 = arith.constant 0 : i32
    %c0_i32_0 = arith.constant 0 : i32
    %c0_i32_1 = arith.constant 0 : i32
    %c0_i32_2 = arith.constant 0 : i32
    return %c0_i32, %c0_i32_0, %c0_i32_1 : i32, i32, i32
  }
  func.func @transform_6(%arg0: i32) -> (i32, i32) {
    %c0_i32 = arith.constant 0 : i32
    %c0_i32_0 = arith.constant 0 : i32
    %c0_i32_1 = arith.constant 0 : i32
    return %c0_i32, %c0_i32_0 : i32, i32
  }
  func.func @transform_7(%arg0: i32) -> (i32, i32) {
    %c0_i32 = arith.constant 0 : i32
    %c0_i32_0 = arith.constant 0 : i32
    %c0_i32_1 = arith.constant 0 : i32
    return %c0_i32, %c0_i32_0 : i32, i32
  }
  func.func @transform_8(%arg0: i32) -> (i32, i32) {
    %c0_i32 = arith.constant 0 : i32
    %c0_i32_0 = arith.constant 0 : i32
    %c0_i32_1 = arith.constant 0 : i32
    return %c0_i32, %c0_i32_0 : i32, i32
  }
  func.func @transform_9(%arg0: i32) -> (i32, i32) {
    %c0_i32 = arith.constant 0 : i32
    %c0_i32_0 = arith.constant 0 : i32
    %c0_i32_1 = arith.constant 0 : i32
    return %c0_i32, %c0_i32_0 : i32, i32
  }
  func.func @transform_10(%arg0: i32) -> (i32, i32) {
    %c0_i32 = arith.constant 0 : i32
    %c0_i32_0 = arith.constant 0 : i32
    %c0_i32_1 = arith.constant 0 : i32
    return %c0_i32, %c0_i32_0 : i32, i32
  }
  func.func @transform_11(%arg0: i32) -> (i32, i32, i32) {
    %c0_i32 = arith.constant 0 : i32
    %c0_i32_0 = arith.constant 0 : i32
    %c0_i32_1 = arith.constant 0 : i32
    return %arg0, %c0_i32, %c0_i32_0 : i32, i32, i32
  }
}

</mosaic_0001>

<llo_original>
// kernel: lenet_forward.1
$region0: #{lenet_forward.1}
  #allocation0 [shape = 'u32[]', space=smem, size = 0x4, offset = 0x4, fixed_abs, tag = 'smem constant byte address 0x4 - core index']
  #allocation1 [shape = 'u32[72,128]{1,0:T(1,128)}', space=vmem, size = 0x9000, scoped, tag = 'internal scratch']
  #allocation2 [shape = 'f32[112,128]{1,0:T(8,128)}', space=vmem, size = 0xe000, scoped, tag = 'scratch operand']
  %s0 = inlined_call_operand.vmem [shape: f32[2,256,96], index: 0, kind: input, shape index: {}]
  %s1 = inlined_call_operand.vmem [shape: f32[5,96,256], index: 1, kind: input, shape index: {}]
  %s2 = inlined_call_operand.vmem [shape: f32[1,128], index: 2, kind: input, shape index: {}]
  %s3 = inlined_call_operand.vmem [shape: f32[5,128,256], index: 3, kind: input, shape index: {}]
  %s4 = inlined_call_operand.vmem [shape: f32[1,128], index: 4, kind: input, shape index: {}]
  %s5 = inlined_call_operand.vmem [shape: f32[5,128,128], index: 5, kind: input, shape index: {}]
  %s6 = inlined_call_operand.vmem [shape: f32[1,128], index: 6, kind: input, shape index: {}]
  %s7 = inlined_call_operand.vmem [shape: f32[128,128], index: 7, kind: input, shape index: {}]
  %s8 = inlined_call_operand.vmem [shape: f32[1,128], index: 8, kind: input, shape index: {}]
  %s9 = inlined_call_operand.vmem [shape: f32[128,128], index: 9, kind: input, shape index: {}]
  %s10 = inlined_call_operand.vmem [shape: f32[1,128], index: 10, kind: input, shape index: {}]
  %s11 = inlined_call_operand.hbm [shape: f32[2,8,128], index: 11, kind: output, shape index: {}]
  %s12 = sld [smem:[#allocation0]]
  $region77: #{lenet_forward.1} parent=0
    _
  %s14 = ssub.s32 1, %s12
  %s15 = scalar_select 0, %s14, %s12
  $region1: #{lenet_forward.1} parent=0
    #allocation3 [shape = 'u8[8192]{0}', space=vmem, size = 0x2000, scoped, tag = 'output window, operand 0']
    #allocation4 [shape = 's32[2]{0}', space=sflag, size = 0x8, scoped, tag = 'scoped memory for lenet_forward.1']
    %16 = vsyncpa [#allocation4], 0
    %s17 = scalar_lea.sflag [#allocation4], 1
    %18 = vsyncpa %s17, 0
    loop: start=0, step=1, limit=4
    $region2: #{lenet_forward.1} parent=1 // loop_pre_header
      _
    $region3: #{lenet_forward.1} parent=1 // loop_header
      %s20 = sphi 0, %s24
      %p21 = scmp.ge.s32.totalorder %s20, 4
      %s30 = sphi 0, %s32
      %s33 = sphi 0, %s30
      %s34 = sphi 0, %s33
      %s50 = sphi 0, %s34
      %s54 = sphi 0, %s54
      %s56 = sphi 0, %s54
      %s57 = sphi 0, %s56
      %s71 = sphi 0, %s57
      %s75 = sphi 0, %s75
      %s77 = sphi 0, %s75
      %s78 = sphi 0, %s77
      %s92 = sphi 0, %s78
      %s96 = sphi 0, %s96
      %s98 = sphi 0, %s96
      %s99 = sphi 0, %s98
      %s113 = sphi 0, %s99
      %s117 = sphi 0, %s117
      %s119 = sphi 0, %s117
      %s120 = sphi 0, %s119
      %s134 = sphi 0, %s120
      %s138 = sphi 0, %s138
      %s140 = sphi 0, %s138
      %s141 = sphi 0, %s140
      %s155 = sphi 0, %s141
      %s159 = sphi 0, %s159
      %s161 = sphi 0, %s159
      %s162 = sphi 0, %s161
      %s176 = sphi 0, %s162
      %s180 = sphi 0, %s180
      %s182 = sphi 0, %s180
      %s183 = sphi 0, %s182
      %s197 = sphi 0, %s183
      %s201 = sphi 0, %s201
      %s203 = sphi 0, %s201
      %s204 = sphi 0, %s203
      %s218 = sphi 0, %s204
      %s222 = sphi 0, %s222
      %s224 = sphi 0, %s222
      %s225 = sphi 0, %s224
      %s239 = sphi 0, %s225
      %s243 = sphi 0, %s243
      %s245 = sphi 0, %s243
      %s246 = sphi 0, %s245
      %s260 = sphi 0, %s246
      %s266 = sphi 0, %s268
      %s269 = sphi 0, %s266
      %s270 = sphi 0, %s269
      %s286 = sphi 0, %s270
    $region4: #{lenet_forward.1} parent=1 // loop_header_branch
      %23 = sbr.rel (%p21) target = $region8
    $region5: #{lenet_forward.1} parent=1 // loop_body
      %s25 = ssub.s32 %s20, 1
      %s26 = ssub.s32 %s20, 2
      %s27 = sadd.s32 %s20, 1
      %s28 = ssub.s32 %s20, %s27
      %p29 = scmp.eq.s32.totalorder %s28, 0
      %s31 = sadd.s32 %s30, 1
      %s32 = scalar_select %p29, %s30, %s31
      %p35 = pneg %p29
      %p36 = scmp.eq.s32.totalorder %s20, 1
      %p37 = por %p35, %p36
      %p38 = scmp.ne.s32.totalorder %s30, %s33
      %p39 = scmp.eq.s32.totalorder %s20, 0
      %p40 = por %p38, %p39
      %p41 = scmp.ne.s32.totalorder %s30, %s33
      %p42 = scmp.eq.s32.totalorder %s25, 1
      %p43 = por %p41, %p42
      %p44 = scmp.ne.s32.totalorder %s33, %s34
      %p45 = scmp.eq.s32.totalorder %s25, 0
      %p46 = por %p44, %p45
      %p47 = scmp.ne.s32.totalorder %s33, %s34
      %p48 = scmp.eq.s32.totalorder %s26, 1
      %p49 = por %p47, %p48
      %p51 = scmp.ne.s32.totalorder %s34, %s50
      %p52 = scmp.eq.s32.totalorder %s26, 0
      %p53 = por %p51, %p52
      %s55 = sadd.s32 %s54, 1
      %p58 = scmp.eq.s32.totalorder %s20, 1
      %p59 = scmp.ne.s32.totalorder %s54, %s56
      %p60 = scmp.eq.s32.totalorder %s20, 0
      %p61 = por %p59, %p60
      %p62 = scmp.ne.s32.totalorder %s54, %s56
      %p63 = scmp.eq.s32.totalorder %s25, 1
      %p64 = por %p62, %p63
      %p65 = scmp.ne.s32.totalorder %s56, %s57
      %p66 = scmp.eq.s32.totalorder %s25, 0
      %p67 = por %p65, %p66
      %p68 = scmp.ne.s32.totalorder %s56, %s57
      %p69 = scmp.eq.s32.totalorder %s26, 1
      %p70 = por %p68, %p69
      %p72 = scmp.ne.s32.totalorder %s57, %s71
      %p73 = scmp.eq.s32.totalorder %s26, 0
      %p74 = por %p72, %p73
      %s76 = sadd.s32 %s75, 1
      %p79 = scmp.eq.s32.totalorder %s20, 1
      %p80 = scmp.ne.s32.totalorder %s75, %s77
      %p81 = scmp.eq.s32.totalorder %s20, 0
      %p82 = por %p80, %p81
      %p83 = scmp.ne.s32.totalorder %s75, %s77
      %p84 = scmp.eq.s32.totalorder %s25, 1
      %p85 = por %p83, %p84
      %p86 = scmp.ne.s32.totalorder %s77, %s78
      %p87 = scmp.eq.s32.totalorder %s25, 0
      %p88 = por %p86, %p87
      %p89 = scmp.ne.s32.totalorder %s77, %s78
      %p90 = scmp.eq.s32.totalorder %s26, 1
      %p91 = por %p89, %p90
      %p93 = scmp.ne.s32.totalorder %s78, %s92
      %p94 = scmp.eq.s32.totalorder %s26, 0
      %p95 = por %p93, %p94
      %s97 = sadd.s32 %s96, 1
      %p100 = scmp.eq.s32.totalorder %s20, 1
      %p101 = scmp.ne.s32.totalorder %s96, %s98
      %p102 = scmp.eq.s32.totalorder %s20, 0
      %p103 = por %p101, %p102
      %p104 = scmp.ne.s32.totalorder %s96, %s98
      %p105 = scmp.eq.s32.totalorder %s25, 1
      %p106 = por %p104, %p105
      %p107 = scmp.ne.s32.totalorder %s98, %s99
      %p108 = scmp.eq.s32.totalorder %s25, 0
      %p109 = por %p107, %p108
      %p110 = scmp.ne.s32.totalorder %s98, %s99
      %p111 = scmp.eq.s32.totalorder %s26, 1
      %p112 = por %p110, %p111
      %p114 = scmp.ne.s32.totalorder %s99, %s113
      %p115 = scmp.eq.s32.totalorder %s26, 0
      %p116 = por %p114, %p115
      %s118 = sadd.s32 %s117, 1
      %p121 = scmp.eq.s32.totalorder %s20, 1
      %p122 = scmp.ne.s32.totalorder %s117, %s119
      %p123 = scmp.eq.s32.totalorder %s20, 0
      %p124 = por %p122, %p123
      %p125 = scmp.ne.s32.totalorder %s117, %s119
      %p126 = scmp.eq.s32.totalorder %s25, 1
      %p127 = por %p125, %p126
      %p128 = scmp.ne.s32.totalorder %s119, %s120
      %p129 = scmp.eq.s32.totalorder %s25, 0
      %p130 = por %p128, %p129
      %p131 = scmp.ne.s32.totalorder %s119, %s120
      %p132 = scmp.eq.s32.totalorder %s26, 1
      %p133 = por %p131, %p132
      %p135 = scmp.ne.s32.totalorder %s120, %s134
      %p136 = scmp.eq.s32.totalorder %s26, 0
      %p137 = por %p135, %p136
      %s139 = sadd.s32 %s138, 1
      %p142 = scmp.eq.s32.totalorder %s20, 1
      %p143 = scmp.ne.s32.totalorder %s138, %s140
      %p144 = scmp.eq.s32.totalorder %s20, 0
      %p145 = por %p143, %p144
      %p146 = scmp.ne.s32.totalorder %s138, %s140
      %p147 = scmp.eq.s32.totalorder %s25, 1
      %p148 = por %p146, %p147
      %p149 = scmp.ne.s32.totalorder %s140, %s141
      %p150 = scmp.eq.s32.totalorder %s25, 0
      %p151 = por %p149, %p150
      %p152 = scmp.ne.s32.totalorder %s140, %s141
      %p153 = scmp.eq.s32.totalorder %s26, 1
      %p154 = por %p152, %p153
      %p156 = scmp.ne.s32.totalorder %s141, %s155
      %p157 = scmp.eq.s32.totalorder %s26, 0
      %p158 = por %p156, %p157
      %s160 = sadd.s32 %s159, 1
      %p163 = scmp.eq.s32.totalorder %s20, 1
      %p164 = scmp.ne.s32.totalorder %s159, %s161
      %p165 = scmp.eq.s32.totalorder %s20, 0
      %p166 = por %p164, %p165
      %p167 = scmp.ne.s32.totalorder %s159, %s161
      %p168 = scmp.eq.s32.totalorder %s25, 1
      %p169 = por %p167, %p168
      %p170 = scmp.ne.s32.totalorder %s161, %s162
      %p171 = scmp.eq.s32.totalorder %s25, 0
      %p172 = por %p170, %p171
      %p173 = scmp.ne.s32.totalorder %s161, %s162
      %p174 = scmp.eq.s32.totalorder %s26, 1
      %p175 = por %p173, %p174
      %p177 = scmp.ne.s32.totalorder %s162, %s176
      %p178 = scmp.eq.s32.totalorder %s26, 0
      %p179 = por %p177, %p178
      %s181 = sadd.s32 %s180, 1
      %p184 = scmp.eq.s32.totalorder %s20, 1
      %p185 = scmp.ne.s32.totalorder %s180, %s182
      %p186 = scmp.eq.s32.totalorder %s20, 0
      %p187 = por %p185, %p186
      %p188 = scmp.ne.s32.totalorder %s180, %s182
      %p189 = scmp.eq.s32.totalorder %s25, 1
      %p190 = por %p188, %p189
      %p191 = scmp.ne.s32.totalorder %s182, %s183
      %p192 = scmp.eq.s32.totalorder %s25, 0
      %p193 = por %p191, %p192
      %p194 = scmp.ne.s32.totalorder %s182, %s183
      %p195 = scmp.eq.s32.totalorder %s26, 1
      %p196 = por %p194, %p195
      %p198 = scmp.ne.s32.totalorder %s183, %s197
      %p199 = scmp.eq.s32.totalorder %s26, 0
      %p200 = por %p198, %p199
      %s202 = sadd.s32 %s201, 1
      %p205 = scmp.eq.s32.totalorder %s20, 1
      %p206 = scmp.ne.s32.totalorder %s201, %s203
      %p207 = scmp.eq.s32.totalorder %s20, 0
      %p208 = por %p206, %p207
      %p209 = scmp.ne.s32.totalorder %s201, %s203
      %p210 = scmp.eq.s32.totalorder %s25, 1
      %p211 = por %p209, %p210
      %p212 = scmp.ne.s32.totalorder %s203, %s204
      %p213 = scmp.eq.s32.totalorder %s25, 0
      %p214 = por %p212, %p213
      %p215 = scmp.ne.s32.totalorder %s203, %s204
      %p216 = scmp.eq.s32.totalorder %s26, 1
      %p217 = por %p215, %p216
      %p219 = scmp.ne.s32.totalorder %s204, %s218
      %p220 = scmp.eq.s32.totalorder %s26, 0
      %p221 = por %p219, %p220
      %s223 = sadd.s32 %s222, 1
      %p226 = scmp.eq.s32.totalorder %s20, 1
      %p227 = scmp.ne.s32.totalorder %s222, %s224
      %p228 = scmp.eq.s32.totalorder %s20, 0
      %p229 = por %p227, %p228
      %p230 = scmp.ne.s32.totalorder %s222, %s224
      %p231 = scmp.eq.s32.totalorder %s25, 1
      %p232 = por %p230, %p231
      %p233 = scmp.ne.s32.totalorder %s224, %s225
      %p234 = scmp.eq.s32.totalorder %s25, 0
      %p235 = por %p233, %p234
      %p236 = scmp.ne.s32.totalorder %s224, %s225
      %p237 = scmp.eq.s32.totalorder %s26, 1
      %p238 = por %p236, %p237
      %p240 = scmp.ne.s32.totalorder %s225, %s239
      %p241 = scmp.eq.s32.totalorder %s26, 0
      %p242 = por %p240, %p241
      %s244 = sadd.s32 %s243, 1
      %p247 = scmp.eq.s32.totalorder %s20, 1
      %p248 = scmp.ne.s32.totalorder %s243, %s245
      %p249 = scmp.eq.s32.totalorder %s20, 0
      %p250 = por %p248, %p249
      %p251 = scmp.ne.s32.totalorder %s243, %s245
      %p252 = scmp.eq.s32.totalorder %s25, 1
      %p253 = por %p251, %p252
      %p254 = scmp.ne.s32.totalorder %s245, %s246
      %p255 = scmp.eq.s32.totalorder %s25, 0
      %p256 = por %p254, %p255
      %p257 = scmp.ne.s32.totalorder %s245, %s246
      %p258 = scmp.eq.s32.totalorder %s26, 1
      %p259 = por %p257, %p258
      %p261 = scmp.ne.s32.totalorder %s246, %s260
      %p262 = scmp.eq.s32.totalorder %s26, 0
      %p263 = por %p261, %p262
      %s264 = ssub.s32 %s20, %s27
      %p265 = scmp.eq.s32.totalorder %s264, 0
      %s267 = sadd.s32 %s266, 1
      %s268 = scalar_select %p265, %s266, %s267
      %p271 = pneg %p265
      %p272 = scmp.eq.s32.totalorder %s20, 1
      %p273 = por %p271, %p272
      %p274 = scmp.ne.s32.totalorder %s266, %s269
      %p275 = scmp.eq.s32.totalorder %s20, 0
      %p276 = por %p274, %p275
      %p277 = scmp.ne.s32.totalorder %s266, %s269
      %p278 = scmp.eq.s32.totalorder %s25, 1
      %p279 = por %p277, %p278
      %p280 = scmp.ne.s32.totalorder %s269, %s270
      %p281 = scmp.eq.s32.totalorder %s25, 0
      %p282 = por %p280, %p281
      %p283 = scmp.ne.s32.totalorder %s269, %s270
      %p284 = scmp.eq.s32.totalorder %s26, 1
      %p285 = por %p283, %p284
      %p287 = scmp.ne.s32.totalorder %s270, %s286
      %p288 = scmp.eq.s32.totalorder %s26, 0
      %p289 = por %p287, %p288
      %p290 = scmp.le.s32.totalorder 1, %s20
      %p291 = scmp.lt.s32.totalorder %s20, 3
      %p292 = pnand %p290, %p291
      %p293 = pneg %p292
      // Predicated region
      $region9: #{lenet_forward.1} parent=5 // pred_check
        _
      $region10: #{lenet_forward.1} parent=5 // pred_check_branch
        %295 = sbr.rel (%p292) target = $region12
      $region11: #{lenet_forward.1} parent=5 // pred_region
        %s296 = ssub.s32 %s20, 1
        // Predicated region
        $region13: #{lenet_forward.1} parent=11 // pred_check
          %p297 = pneg %p67
        $region14: #{lenet_forward.1} parent=11 // pred_check_branch
          %299 = sbr.rel (%p297) target = $region16
        $region15: #{lenet_forward.1} parent=11 // pred_region
          _
        $region16: #{lenet_forward.1} parent=11 // pred_fallthru
          _
        // Predicated region
        $region17: #{lenet_forward.1} parent=11 // pred_check
          %p300 = pneg %p88
        $region18: #{lenet_forward.1} parent=11 // pred_check_branch
          %302 = sbr.rel (%p300) target = $region20
        $region19: #{lenet_forward.1} parent=11 // pred_region
          _
        $region20: #{lenet_forward.1} parent=11 // pred_fallthru
          _
        // Predicated region
        $region21: #{lenet_forward.1} parent=11 // pred_check
          %p303 = pneg %p109
        $region22: #{lenet_forward.1} parent=11 // pred_check_branch
          %305 = sbr.rel (%p303) target = $region24
        $region23: #{lenet_forward.1} parent=11 // pred_region
          _
        $region24: #{lenet_forward.1} parent=11 // pred_fallthru
          _
        // Predicated region
        $region25: #{lenet_forward.1} parent=11 // pred_check
          %p306 = pneg %p130
        $region26: #{lenet_forward.1} parent=11 // pred_check_branch
          %308 = sbr.rel (%p306) target = $region28
        $region27: #{lenet_forward.1} parent=11 // pred_region
          _
        $region28: #{lenet_forward.1} parent=11 // pred_fallthru
          _
        // Predicated region
        $region29: #{lenet_forward.1} parent=11 // pred_check
          %p309 = pneg %p151
        $region30: #{lenet_forward.1} parent=11 // pred_check_branch
          %311 = sbr.rel (%p309) target = $region32
        $region31: #{lenet_forward.1} parent=11 // pred_region
          _
        $region32: #{lenet_forward.1} parent=11 // pred_fallthru
          _
        // Predicated region
        $region33: #{lenet_forward.1} parent=11 // pred_check
          %p312 = pneg %p172
        $region34: #{lenet_forward.1} parent=11 // pred_check_branch
          %314 = sbr.rel (%p312) target = $region36
        $region35: #{lenet_forward.1} parent=11 // pred_region
          _
        $region36: #{lenet_forward.1} parent=11 // pred_fallthru
          _
        // Predicated region
        $region37: #{lenet_forward.1} parent=11 // pred_check
          %p315 = pneg %p193
        $region38: #{lenet_forward.1} parent=11 // pred_check_branch
          %317 = sbr.rel (%p315) target = $region40
        $region39: #{lenet_forward.1} parent=11 // pred_region
          _
        $region40: #{lenet_forward.1} parent=11 // pred_fallthru
          _
        // Predicated region
        $region41: #{lenet_forward.1} parent=11 // pred_check
          %p318 = pneg %p214
        $region42: #{lenet_forward.1} parent=11 // pred_check_branch
          %320 = sbr.rel (%p318) target = $region44
        $region43: #{lenet_forward.1} parent=11 // pred_region
          _
        $region44: #{lenet_forward.1} parent=11 // pred_fallthru
          _
        // Predicated region
        $region45: #{lenet_forward.1} parent=11 // pred_check
          %p321 = pneg %p235
        $region46: #{lenet_forward.1} parent=11 // pred_check_branch
          %323 = sbr.rel (%p321) target = $region48
        $region47: #{lenet_forward.1} parent=11 // pred_region
          _
        $region48: #{lenet_forward.1} parent=11 // pred_fallthru
          _
        // Predicated region
        $region49: #{lenet_forward.1} parent=11 // pred_check
          %p324 = pneg %p256
        $region50: #{lenet_forward.1} parent=11 // pred_check_branch
          %326 = sbr.rel (%p324) target = $region52
        $region51: #{lenet_forward.1} parent=11 // pred_region
          _
        $region52: #{lenet_forward.1} parent=11 // pred_fallthru
          _
      $region12: #{lenet_forward.1} parent=5 // pred_fallthru
        _
      %p327 = scmp.lt.s32.totalorder %s20, 2
      // Predicated region
      $region53: #{lenet_forward.1} parent=5 // pred_check
        %p328 = pneg %p327
      $region54: #{lenet_forward.1} parent=5 // pred_check_branch
        %330 = sbr.rel (%p328) target = $region56
      $region55: #{lenet_forward.1} parent=5 // pred_region
        // Predicated region
        $region57: #{lenet_forward.1} parent=55 // pred_check
          %p331 = pneg %p40
        $region58: #{lenet_forward.1} parent=55 // pred_check_branch
          %333 = sbr.rel (%p331) target = $region60
        $region59: #{lenet_forward.1} parent=55 // pred_region
          %p334 = scmp.lt.s32.totalorder %s20, 1
          %s335 = scalar_select %p334, %s20, 1
          %s336 = smul.addr %s335, 32
          %s337 = smul.addr %s336, 8
          %s338 = scalar_lea.vmem %s0, %s337
        $region60: #{lenet_forward.1} parent=55 // pred_fallthru
          _
      $region56: #{lenet_forward.1} parent=5 // pred_fallthru
        _
      %p339 = scmp.le.s32.totalorder 1, %s20
      %p340 = scmp.lt.s32.totalorder %s20, 3
      %p341 = pnand %p339, %p340
      %p342 = pneg %p341
      // Predicated region
      $region61: #{lenet_forward.1} parent=5 // pred_check
        _
      $region62: #{lenet_forward.1} parent=5 // pred_check_branch
        %344 = sbr.rel (%p341) target = $region64
      $region63: #{lenet_forward.1} parent=5 // pred_region
        %s345 = ssub.s32 %s20, 1
        %p346 = scmp.lt.s32.totalorder %s25, 1
        %s347 = scalar_select %p346, %s25, 1
        %s348 = smul.addr %s347, 32
        %s349 = smul.addr %s348, 8
        %s350 = scalar_lea.vmem %s0, %s349
        %p351 = pneg %p46
        %p352 = pneg %p43
        %p353 = pneg %p67
        %p354 = pneg %p64
        %p355 = pneg %p88
        %p356 = pneg %p85
        %p357 = pneg %p109
        %p358 = pneg %p106
        %p359 = pneg %p130
        %p360 = pneg %p127
        %p361 = pneg %p151
        %p362 = pneg %p148
        %p363 = pneg %p172
        %p364 = pneg %p169
        %p365 = pneg %p193
        %p366 = pneg %p190
        %p367 = pneg %p214
        %p368 = pneg %p211
        %p369 = pneg %p235
        %p370 = pneg %p232
        %p371 = pneg %p256
        %p372 = pneg %p253
        %p373 = pneg %p282
        %p374 = pneg %p279
        %s375 = sand.u32 %s269, 1
        %s376 = scalar_lea.sflag [#allocation4], %s375
        %s377 = sand.u32 %s269, 1
        %s378 = smul.addr %s377, 8
        %s379 = scalar_lea.vmem [#allocation3], %s378
        %p380 = scmp.lt.s32.totalorder %s25, 1
        %s381 = scalar_select %p380, %s25, 1
        %s382 = smul.addr %s381, 32
        %s383 = smul.addr %s382, 8
        %s384 = scalar_lea.vmem %s0, %s383
        %v385 = vld [vmem:[%s384] sm:$0xff]
        %v386 = vld [vmem:[%s384 + $0x8] sm:$0xff]
        %v387 = vld [vmem:[%s384 + $0x10] sm:$0xff]
        %v388 = vld [vmem:[%s384 + $0x18] sm:$0xff]
        %v389 = vld [vmem:[%s384 + $0x20] sm:$0xff]
        %v390 = vld [vmem:[%s384 + $0x28] sm:$0xff]
        %v391 = vld [vmem:[%s384 + $0x30] sm:$0xff]
        %v392 = vld [vmem:[%s384 + $0x38] sm:$0xff]
        %v393 = vld [vmem:[%s384 + $0x40] sm:$0xff]
        %v394 = vld [vmem:[%s384 + $0x48] sm:$0xff]
        %v395 = vld [vmem:[%s384 + $0x50] sm:$0xff]
        %v396 = vld [vmem:[%s384 + $0x58] sm:$0xff]
        %v397 = vld [vmem:[%s384 + $0x60] sm:$0xff]
        %v398 = vld [vmem:[%s384 + $0x68] sm:$0xff]
        %v399 = vld [vmem:[%s384 + $0x70] sm:$0xff]
        %v400 = vld [vmem:[%s384 + $0x78] sm:$0xff]
        %v401 = vld [vmem:[%s384 + $0x80] sm:$0xff]
        %v402 = vld [vmem:[%s384 + $0x88] sm:$0xff]
        %v403 = vld [vmem:[%s384 + $0x90] sm:$0xff]
        %v404 = vld [vmem:[%s384 + $0x98] sm:$0xff]
        %v405 = vld [vmem:[%s384 + $0xa0] sm:$0xff]
        %v406 = vld [vmem:[%s384 + $0xa8] sm:$0xff]
        %v407 = vld [vmem:[%s384 + $0xb0] sm:$0xff]
        %v408 = vld [vmem:[%s384 + $0xb8] sm:$0xff]
        %v409 = vld [vmem:[%s384 + $0xc0] sm:$0xff]
        %v410 = vld [vmem:[%s384 + $0xc8] sm:$0xff]
        %v411 = vld [vmem:[%s384 + $0xd0] sm:$0xff]
        %v412 = vld [vmem:[%s384 + $0xd8] sm:$0xff]
        %v413 = vld [vmem:[%s1] sm:$0xff]
        %v414 = vld [vmem:[%s1 + $0x8] sm:$0xff]
        %v415 = vld [vmem:[%s1 + $0x10] sm:$0xff]
        %v416 = vld [vmem:[%s1 + $0x18] sm:$0xff]
        %v417 = vld [vmem:[%s1 + $0x20] sm:$0xff]
        %v418 = vld [vmem:[%s1 + $0x28] sm:$0xff]
        %v419 = vld [vmem:[%s1 + $0x30] sm:$0xff]
        %v420 = vld [vmem:[%s1 + $0x38] sm:$0xff]
        %v421 = vld [vmem:[%s1 + $0x40] sm:$0xff]
        %v422 = vld [vmem:[%s1 + $0x48] sm:$0xff]
        %v423 = vld [vmem:[%s1 + $0x50] sm:$0xff]
        %v424 = vld [vmem:[%s1 + $0x58] sm:$0xff]
        %v425 = vld [vmem:[%s1 + $0x60] sm:$0xff]
        %v426 = vld [vmem:[%s1 + $0x68] sm:$0xff]
        %v427 = vld [vmem:[%s1 + $0x70] sm:$0xff]
        %v428 = vld [vmem:[%s1 + $0x78] sm:$0xff]
        %v429 = vld [vmem:[%s1 + $0x80] sm:$0xff]
        %v430 = vld [vmem:[%s1 + $0x88] sm:$0xff]
        %v431 = vld [vmem:[%s1 + $0x90] sm:$0xff]
        %v432 = vld [vmem:[%s1 + $0x98] sm:$0xff]
        %v433 = vld [vmem:[%s1 + $0xa0] sm:$0xff]
        %v434 = vld [vmem:[%s1 + $0xa8] sm:$0xff]
        %v435 = vld [vmem:[%s1 + $0xb0] sm:$0xff]
        %v436 = vld [vmem:[%s1 + $0xb8] sm:$0xff]
        %v437 = vld [vmem:[%s384 + $0xe0] sm:$0xff]
        %s438 = scalar_lea.vmem %s1, 192
        %v439 = vld [vmem:[%s438] sm:$0xff]
        %v440 = vld [vmem:[%s438 + $0x8] sm:$0xff]
        %v441 = vld [vmem:[%s438 + $0x10] sm:$0xff]
        %v442 = vld [vmem:[%s438 + $0x18] sm:$0xff]
        %v443 = vld [vmem:[%s438 + $0x20] sm:$0xff]
        %v444 = vld [vmem:[%s438 + $0x28] sm:$0xff]
        %v445 = vld [vmem:[%s438 + $0x30] sm:$0xff]
        %v446 = vld [vmem:[%s438 + $0x38] sm:$0xff]
        %v447 = vld [vmem:[%s438 + $0x40] sm:$0xff]
        %v448 = vld [vmem:[%s438 + $0x48] sm:$0xff]
        %v449 = vld [vmem:[%s438 + $0x50] sm:$0xff]
        %v450 = vld [vmem:[%s438 + $0x58] sm:$0xff]
        %v451 = vld [vmem:[%s438 + $0x60] sm:$0xff]
        %v452 = vld [vmem:[%s438 + $0x68] sm:$0xff]
        %v453 = vld [vmem:[%s438 + $0x70] sm:$0xff]
        %v454 = vld [vmem:[%s438 + $0x78] sm:$0xff]
        %v455 = vld [vmem:[%s438 + $0x80] sm:$0xff]
        %v456 = vld [vmem:[%s438 + $0x88] sm:$0xff]
        %v457 = vld [vmem:[%s438 + $0x90] sm:$0xff]
        %v458 = vld [vmem:[%s438 + $0x98] sm:$0xff]
        %v459 = vld [vmem:[%s438 + $0xa0] sm:$0xff]
        %v460 = vld [vmem:[%s438 + $0xa8] sm:$0xff]
        %v461 = vld [vmem:[%s438 + $0xb0] sm:$0xff]
        %v462 = vld [vmem:[%s438 + $0xb8] sm:$0xff]
        %vm463 = vcmask 785408
        %v465 = vsel %vm463, %v386, 0
        %v468 = vsel %vm463, %v387, 0
        %v471 = vsel %vm463, %v388, 0
        %v474 = vsel %vm463, %v389, 0
        %v477 = vsel %vm463, %v390, 0
        %v480 = vsel %vm463, %v391, 0
        %v483 = vsel %vm463, %v392, 0
        %v486 = vsel %vm463, %v393, 0
        %v489 = vsel %vm463, %v394, 0
        %v492 = vsel %vm463, %v395, 0
        %v495 = vsel %vm463, %v396, 0
        %v498 = vsel %vm463, %v397, 0
        %v501 = vsel %vm463, %v398, 0
        %v504 = vsel %vm463, %v399, 0
        %v507 = vsel %vm463, %v400, 0
        %v510 = vsel %vm463, %v401, 0
        %v513 = vsel %vm463, %v402, 0
        %v516 = vsel %vm463, %v403, 0
        %v519 = vsel %vm463, %v404, 0
        %v522 = vsel %vm463, %v405, 0
        %v525 = vsel %vm463, %v406, 0
        %v528 = vsel %vm463, %v407, 0
        %v531 = vsel %vm463, %v408, 0
        %v534 = vsel %vm463, %v409, 0
        %v537 = vsel %vm463, %v410, 0
        %v540 = vsel %vm463, %v411, 0
        %v543 = vsel %vm463, %v412, 0
        %v546 = vsel %vm463, %v437, 0
        %548 = vmatpush.msra.mxu0 0.0
        %549 = vmatpush.msra.mxu0 0.0
        %550 = vmatpush.msra.mxu0 0.0
        %551 = vmatpush.msra.mxu0 0.0
        %552 = vmatpush.msra.mxu0 %v461
        %553 = vmatpush.msra.mxu0 %v459
        %554 = vmatpush.msra.mxu0 %v457
        %555 = vmatpush.msra.mxu0 %v455
        %556 = vmatpush.msra.mxu0 %v453
        %557 = vmatpush.msra.mxu0 %v451
        %558 = vmatpush.msra.mxu0 %v449
        %559 = vmatpush.msra.mxu0 %v447
        %560 = vmatpush.msra.mxu0 %v445
        %561 = vmatpush.msra.mxu0 %v443
        %562 = vmatpush.msra.mxu0 %v441
        %563 = vmatpush.msra.mxu0 %v439
        %564 = vmatmul.f32.gmra.mxu0 %v465
        %v565 = vpop.f32.mrf.mxu0
        %v566 = vadd.f32 0.0, %v565
        %567 = vmatmul.f32.gmra.mxu0 %v468
        %v568 = vpop.f32.mrf.mxu0
        %v569 = vadd.f32 0.0, %v568
        %570 = vmatmul.f32.gmra.mxu0 %v471
        %v571 = vpop.f32.mrf.mxu0
        %v572 = vadd.f32 0.0, %v571
        %573 = vmatmul.f32.gmra.mxu0 %v474
        %v574 = vpop.f32.mrf.mxu0
        %v575 = vadd.f32 0.0, %v574
        %576 = vmatmul.f32.gmra.mxu0 %v477
        %v577 = vpop.f32.mrf.mxu0
        %v578 = vadd.f32 0.0, %v577
        %579 = vmatmul.f32.gmra.mxu0 %v480
        %v580 = vpop.f32.mrf.mxu0
        %v581 = vadd.f32 0.0, %v580
        %582 = vmatmul.f32.gmra.mxu0 %v483
        %v583 = vpop.f32.mrf.mxu0
        %v584 = vadd.f32 0.0, %v583
        %585 = vmatmul.f32.gmra.mxu0 %v486
        %v586 = vpop.f32.mrf.mxu0
        %v587 = vadd.f32 0.0, %v586
        %588 = vmatmul.f32.gmra.mxu0 %v489
        %v589 = vpop.f32.mrf.mxu0
        %v590 = vadd.f32 0.0, %v589
        %591 = vmatmul.f32.gmra.mxu0 %v492
        %v592 = vpop.f32.mrf.mxu0
        %v593 = vadd.f32 0.0, %v592
        %594 = vmatmul.f32.gmra.mxu0 %v495
        %v595 = vpop.f32.mrf.mxu0
        %v596 = vadd.f32 0.0, %v595
        %597 = vmatmul.f32.gmra.mxu0 %v498
        %v598 = vpop.f32.mrf.mxu0
        %v599 = vadd.f32 0.0, %v598
        %600 = vmatmul.f32.gmra.mxu0 %v501
        %v601 = vpop.f32.mrf.mxu0
        %v602 = vadd.f32 0.0, %v601
        %603 = vmatmul.f32.gmra.mxu0 %v504
        %v604 = vpop.f32.mrf.mxu0
        %v605 = vadd.f32 0.0, %v604
        %606 = vmatmul.f32.gmra.mxu0 %v507
        %v607 = vpop.f32.mrf.mxu0
        %v608 = vadd.f32 0.0, %v607
        %609 = vmatmul.f32.gmra.mxu0 %v510
        %v610 = vpop.f32.mrf.mxu0
        %v611 = vadd.f32 0.0, %v610
        %612 = vmatmul.f32.gmra.mxu0 %v513
        %v613 = vpop.f32.mrf.mxu0
        %v614 = vadd.f32 0.0, %v613
        %615 = vmatmul.f32.gmra.mxu0 %v516
        %v616 = vpop.f32.mrf.mxu0
        %v617 = vadd.f32 0.0, %v616
        %618 = vmatmul.f32.gmra.mxu0 %v519
        %v619 = vpop.f32.mrf.mxu0
        %v620 = vadd.f32 0.0, %v619
        %621 = vmatmul.f32.gmra.mxu0 %v522
        %v622 = vpop.f32.mrf.mxu0
        %v623 = vadd.f32 0.0, %v622
        %624 = vmatmul.f32.gmra.mxu0 %v525
        %v625 = vpop.f32.mrf.mxu0
        %v626 = vadd.f32 0.0, %v625
        %627 = vmatmul.f32.gmra.mxu0 %v528
        %v628 = vpop.f32.mrf.mxu0
        %v629 = vadd.f32 0.0, %v628
        %630 = vmatmul.f32.gmra.mxu0 %v531
        %v631 = vpop.f32.mrf.mxu0
        %v632 = vadd.f32 0.0, %v631
        %633 = vmatmul.f32.gmra.mxu0 %v534
        %v634 = vpop.f32.mrf.mxu0
        %v635 = vadd.f32 0.0, %v634
        %636 = vmatmul.f32.gmra.mxu0 %v537
        %v637 = vpop.f32.mrf.mxu0
        %v638 = vadd.f32 0.0, %v637
        %639 = vmatmul.f32.gmra.mxu0 %v540
        %v640 = vpop.f32.mrf.mxu0
        %v641 = vadd.f32 0.0, %v640
        %642 = vmatmul.f32.gmra.mxu0 %v543
        %v643 = vpop.f32.mrf.mxu0
        %v644 = vadd.f32 0.0, %v643
        %645 = vmatmul.f32.gmra.mxu0 %v546
        %v646 = vpop.f32.mrf.mxu0
        %v647 = vadd.f32 0.0, %v646
        %648 = vdwg.mxu0
        %649 = vmatpush.msra.mxu0 0.0
        %650 = vmatpush.msra.mxu0 0.0
        %651 = vmatpush.msra.mxu0 0.0
        %652 = vmatpush.msra.mxu0 0.0
        %653 = vmatpush.msra.mxu0 %v462
        %654 = vmatpush.msra.mxu0 %v460
        %655 = vmatpush.msra.mxu0 %v458
        %656 = vmatpush.msra.mxu0 %v456
        %657 = vmatpush.msra.mxu0 %v454
        %658 = vmatpush.msra.mxu0 %v452
        %659 = vmatpush.msra.mxu0 %v450
        %660 = vmatpush.msra.mxu0 %v448
        %661 = vmatpush.msra.mxu0 %v446
        %662 = vmatpush.msra.mxu0 %v444
        %663 = vmatpush.msra.mxu0 %v442
        %664 = vmatpush.msra.mxu0 %v440
        %665 = vmatmul.f32.gmra.mxu0 %v465
        %v666 = vpop.f32.mrf.mxu0
        %v667 = vadd.f32 0.0, %v666
        %668 = vmatmul.f32.gmra.mxu0 %v468
        %v669 = vpop.f32.mrf.mxu0
        %v670 = vadd.f32 0.0, %v669
        %671 = vmatmul.f32.gmra.mxu0 %v471
        %v672 = vpop.f32.mrf.mxu0
        %v673 = vadd.f32 0.0, %v672
        %674 = vmatmul.f32.gmra.mxu0 %v474
        %v675 = vpop.f32.mrf.mxu0
        %v676 = vadd.f32 0.0, %v675
        %677 = vmatmul.f32.gmra.mxu0 %v477
        %v678 = vpop.f32.mrf.mxu0
        %v679 = vadd.f32 0.0, %v678
        %680 = vmatmul.f32.gmra.mxu0 %v480
        %v681 = vpop.f32.mrf.mxu0
        %v682 = vadd.f32 0.0, %v681
        %683 = vmatmul.f32.gmra.mxu0 %v483
        %v684 = vpop.f32.mrf.mxu0
        %v685 = vadd.f32 0.0, %v684
        %686 = vmatmul.f32.gmra.mxu0 %v486
        %v687 = vpop.f32.mrf.mxu0
        %v688 = vadd.f32 0.0, %v687
        %689 = vmatmul.f32.gmra.mxu0 %v489
        %v690 = vpop.f32.mrf.mxu0
        %v691 = vadd.f32 0.0, %v690
        %692 = vmatmul.f32.gmra.mxu0 %v492
        %v693 = vpop.f32.mrf.mxu0
        %v694 = vadd.f32 0.0, %v693
        %695 = vmatmul.f32.gmra.mxu0 %v495
        %v696 = vpop.f32.mrf.mxu0
        %v697 = vadd.f32 0.0, %v696
        %698 = vmatmul.f32.gmra.mxu0 %v498
        %v699 = vpop.f32.mrf.mxu0
        %v700 = vadd.f32 0.0, %v699
        %701 = vmatmul.f32.gmra.mxu0 %v501
        %v702 = vpop.f32.mrf.mxu0
        %v703 = vadd.f32 0.0, %v702
        %704 = vmatmul.f32.gmra.mxu0 %v504
        %v705 = vpop.f32.mrf.mxu0
        %v706 = vadd.f32 0.0, %v705
        %707 = vmatmul.f32.gmra.mxu0 %v507
        %v708 = vpop.f32.mrf.mxu0
        %v709 = vadd.f32 0.0, %v708
        %710 = vmatmul.f32.gmra.mxu0 %v510
        %v711 = vpop.f32.mrf.mxu0
        %v712 = vadd.f32 0.0, %v711
        %713 = vmatmul.f32.gmra.mxu0 %v513
        %v714 = vpop.f32.mrf.mxu0
        %v715 = vadd.f32 0.0, %v714
        %716 = vmatmul.f32.gmra.mxu0 %v516
        %v717 = vpop.f32.mrf.mxu0
        %v718 = vadd.f32 0.0, %v717
        %719 = vmatmul.f32.gmra.mxu0 %v519
        %v720 = vpop.f32.mrf.mxu0
        %v721 = vadd.f32 0.0, %v720
        %722 = vmatmul.f32.gmra.mxu0 %v522
        %v723 = vpop.f32.mrf.mxu0
        %v724 = vadd.f32 0.0, %v723
        %725 = vmatmul.f32.gmra.mxu0 %v525
        %v726 = vpop.f32.mrf.mxu0
        %v727 = vadd.f32 0.0, %v726
        %728 = vmatmul.f32.gmra.mxu0 %v528
        %v729 = vpop.f32.mrf.mxu0
        %v730 = vadd.f32 0.0, %v729
        %731 = vmatmul.f32.gmra.mxu0 %v531
        %v732 = vpop.f32.mrf.mxu0
        %v733 = vadd.f32 0.0, %v732
        %734 = vmatmul.f32.gmra.mxu0 %v534
        %v735 = vpop.f32.mrf.mxu0
        %v736 = vadd.f32 0.0, %v735
        %737 = vmatmul.f32.gmra.mxu0 %v537
        %v738 = vpop.f32.mrf.mxu0
        %v739 = vadd.f32 0.0, %v738
        %740 = vmatmul.f32.gmra.mxu0 %v540
        %v741 = vpop.f32.mrf.mxu0
        %v742 = vadd.f32 0.0, %v741
        %743 = vmatmul.f32.gmra.mxu0 %v543
        %v744 = vpop.f32.mrf.mxu0
        %v745 = vadd.f32 0.0, %v744
        %746 = vmatmul.f32.gmra.mxu0 %v546
        %v747 = vpop.f32.mrf.mxu0
        %v748 = vadd.f32 0.0, %v747
        %749 = vdwg.mxu0
        %v751 = vsel %vm463, %v385, 0
        %753 = vmatpush.msra.mxu0 0.0
        %754 = vmatpush.msra.mxu0 0.0
        %755 = vmatpush.msra.mxu0 0.0
        %756 = vmatpush.msra.mxu0 0.0
        %757 = vmatpush.msra.mxu0 %v435
        %758 = vmatpush.msra.mxu0 %v433
        %759 = vmatpush.msra.mxu0 %v431
        %760 = vmatpush.msra.mxu0 %v429
        %761 = vmatpush.msra.mxu0 %v427
        %762 = vmatpush.msra.mxu0 %v425
        %763 = vmatpush.msra.mxu0 %v423
        %764 = vmatpush.msra.mxu0 %v421
        %765 = vmatpush.msra.mxu0 %v419
        %766 = vmatpush.msra.mxu0 %v417
        %767 = vmatpush.msra.mxu0 %v415
        %768 = vmatpush.msra.mxu0 %v413
        %769 = vmatmul.f32.gmra.mxu0 %v751
        %v770 = vpop.f32.mrf.mxu0
        %v771 = vadd.f32 %v566, %v770
        %772 = vmatmul.f32.gmra.mxu0 %v465
        %v773 = vpop.f32.mrf.mxu0
        %v774 = vadd.f32 %v569, %v773
        %775 = vmatmul.f32.gmra.mxu0 %v468
        %v776 = vpop.f32.mrf.mxu0
        %v777 = vadd.f32 %v572, %v776
        %778 = vmatmul.f32.gmra.mxu0 %v471
        %v779 = vpop.f32.mrf.mxu0
        %v780 = vadd.f32 %v575, %v779
        %781 = vmatmul.f32.gmra.mxu0 %v474
        %v782 = vpop.f32.mrf.mxu0
        %v783 = vadd.f32 %v578, %v782
        %784 = vmatmul.f32.gmra.mxu0 %v477
        %v785 = vpop.f32.mrf.mxu0
        %v786 = vadd.f32 %v581, %v785
        %787 = vmatmul.f32.gmra.mxu0 %v480
        %v788 = vpop.f32.mrf.mxu0
        %v789 = vadd.f32 %v584, %v788
        %790 = vmatmul.f32.gmra.mxu0 %v483
        %v791 = vpop.f32.mrf.mxu0
        %v792 = vadd.f32 %v587, %v791
        %793 = vmatmul.f32.gmra.mxu0 %v486
        %v794 = vpop.f32.mrf.mxu0
        %v795 = vadd.f32 %v590, %v794
        %796 = vmatmul.f32.gmra.mxu0 %v489
        %v797 = vpop.f32.mrf.mxu0
        %v798 = vadd.f32 %v593, %v797
        %799 = vmatmul.f32.gmra.mxu0 %v492
        %v800 = vpop.f32.mrf.mxu0
        %v801 = vadd.f32 %v596, %v800
        %802 = vmatmul.f32.gmra.mxu0 %v495
        %v803 = vpop.f32.mrf.mxu0
        %v804 = vadd.f32 %v599, %v803
        %805 = vmatmul.f32.gmra.mxu0 %v498
        %v806 = vpop.f32.mrf.mxu0
        %v807 = vadd.f32 %v602, %v806
        %808 = vmatmul.f32.gmra.mxu0 %v501
        %v809 = vpop.f32.mrf.mxu0
        %v810 = vadd.f32 %v605, %v809
        %811 = vmatmul.f32.gmra.mxu0 %v504
        %v812 = vpop.f32.mrf.mxu0
        %v813 = vadd.f32 %v608, %v812
        %814 = vmatmul.f32.gmra.mxu0 %v507
        %v815 = vpop.f32.mrf.mxu0
        %v816 = vadd.f32 %v611, %v815
        %817 = vmatmul.f32.gmra.mxu0 %v510
        %v818 = vpop.f32.mrf.mxu0
        %v819 = vadd.f32 %v614, %v818
        %820 = vmatmul.f32.gmra.mxu0 %v513
        %v821 = vpop.f32.mrf.mxu0
        %v822 = vadd.f32 %v617, %v821
        %823 = vmatmul.f32.gmra.mxu0 %v516
        %v824 = vpop.f32.mrf.mxu0
        %v825 = vadd.f32 %v620, %v824
        %826 = vmatmul.f32.gmra.mxu0 %v519
        %v827 = vpop.f32.mrf.mxu0
        %v828 = vadd.f32 %v623, %v827
        %829 = vmatmul.f32.gmra.mxu0 %v522
        %v830 = vpop.f32.mrf.mxu0
        %v831 = vadd.f32 %v626, %v830
        %832 = vmatmul.f32.gmra.mxu0 %v525
        %v833 = vpop.f32.mrf.mxu0
        %v834 = vadd.f32 %v629, %v833
        %835 = vmatmul.f32.gmra.mxu0 %v528
        %v836 = vpop.f32.mrf.mxu0
        %v837 = vadd.f32 %v632, %v836
        %838 = vmatmul.f32.gmra.mxu0 %v531
        %v839 = vpop.f32.mrf.mxu0
        %v840 = vadd.f32 %v635, %v839
        %841 = vmatmul.f32.gmra.mxu0 %v534
        %v842 = vpop.f32.mrf.mxu0
        %v843 = vadd.f32 %v638, %v842
        %844 = vmatmul.f32.gmra.mxu0 %v537
        %v845 = vpop.f32.mrf.mxu0
        %v846 = vadd.f32 %v641, %v845
        %847 = vmatmul.f32.gmra.mxu0 %v540
        %v848 = vpop.f32.mrf.mxu0
        %v849 = vadd.f32 %v644, %v848
        %850 = vmatmul.f32.gmra.mxu0 %v543
        %v851 = vpop.f32.mrf.mxu0
        %v852 = vadd.f32 %v647, %v851
        %853 = vdwg.mxu0
        %854 = vmatpush.msra.mxu0 0.0
        %855 = vmatpush.msra.mxu0 0.0
        %856 = vmatpush.msra.mxu0 0.0
        %857 = vmatpush.msra.mxu0 0.0
        %858 = vmatpush.msra.mxu0 %v436
        %859 = vmatpush.msra.mxu0 %v434
        %860 = vmatpush.msra.mxu0 %v432
        %861 = vmatpush.msra.mxu0 %v430
        %862 = vmatpush.msra.mxu0 %v428
        %863 = vmatpush.msra.mxu0 %v426
        %864 = vmatpush.msra.mxu0 %v424
        %865 = vmatpush.msra.mxu0 %v422
        %866 = vmatpush.msra.mxu0 %v420
        %867 = vmatpush.msra.mxu0 %v418
        %868 = vmatpush.msra.mxu0 %v416
        %869 = vmatpush.msra.mxu0 %v414
        %870 = vmatmul.f32.gmra.mxu0 %v751
        %v871 = vpop.f32.mrf.mxu0
        %v872 = vadd.f32 %v667, %v871
        %873 = vmatmul.f32.gmra.mxu0 %v465
        %v874 = vpop.f32.mrf.mxu0
        %v875 = vadd.f32 %v670, %v874
        %876 = vmatmul.f32.gmra.mxu0 %v468
        %v877 = vpop.f32.mrf.mxu0
        %v878 = vadd.f32 %v673, %v877
        %879 = vmatmul.f32.gmra.mxu0 %v471
        %v880 = vpop.f32.mrf.mxu0
        %v881 = vadd.f32 %v676, %v880
        %882 = vmatmul.f32.gmra.mxu0 %v474
        %v883 = vpop.f32.mrf.mxu0
        %v884 = vadd.f32 %v679, %v883
        %885 = vmatmul.f32.gmra.mxu0 %v477
        %v886 = vpop.f32.mrf.mxu0
        %v887 = vadd.f32 %v682, %v886
        %888 = vmatmul.f32.gmra.mxu0 %v480
        %v889 = vpop.f32.mrf.mxu0
        %v890 = vadd.f32 %v685, %v889
        %891 = vmatmul.f32.gmra.mxu0 %v483
        %v892 = vpop.f32.mrf.mxu0
        %v893 = vadd.f32 %v688, %v892
        %894 = vmatmul.f32.gmra.mxu0 %v486
        %v895 = vpop.f32.mrf.mxu0
        %v896 = vadd.f32 %v691, %v895
        %897 = vmatmul.f32.gmra.mxu0 %v489
        %v898 = vpop.f32.mrf.mxu0
        %v899 = vadd.f32 %v694, %v898
        %900 = vmatmul.f32.gmra.mxu0 %v492
        %v901 = vpop.f32.mrf.mxu0
        %v902 = vadd.f32 %v697, %v901
        %903 = vmatmul.f32.gmra.mxu0 %v495
        %v904 = vpop.f32.mrf.mxu0
        %v905 = vadd.f32 %v700, %v904
        %906 = vmatmul.f32.gmra.mxu0 %v498
        %v907 = vpop.f32.mrf.mxu0
        %v908 = vadd.f32 %v703, %v907
        %909 = vmatmul.f32.gmra.mxu0 %v501
        %v910 = vpop.f32.mrf.mxu0
        %v911 = vadd.f32 %v706, %v910
        %912 = vmatmul.f32.gmra.mxu0 %v504
        %v913 = vpop.f32.mrf.mxu0
        %v914 = vadd.f32 %v709, %v913
        %915 = vmatmul.f32.gmra.mxu0 %v507
        %v916 = vpop.f32.mrf.mxu0
        %v917 = vadd.f32 %v712, %v916
        %918 = vmatmul.f32.gmra.mxu0 %v510
        %v919 = vpop.f32.mrf.mxu0
        %v920 = vadd.f32 %v715, %v919
        %921 = vmatmul.f32.gmra.mxu0 %v513
        %v922 = vpop.f32.mrf.mxu0
        %v923 = vadd.f32 %v718, %v922
        %924 = vmatmul.f32.gmra.mxu0 %v516
        %v925 = vpop.f32.mrf.mxu0
        %v926 = vadd.f32 %v721, %v925
        %927 = vmatmul.f32.gmra.mxu0 %v519
        %v928 = vpop.f32.mrf.mxu0
        %v929 = vadd.f32 %v724, %v928
        %930 = vmatmul.f32.gmra.mxu0 %v522
        %v931 = vpop.f32.mrf.mxu0
        %v932 = vadd.f32 %v727, %v931
        %933 = vmatmul.f32.gmra.mxu0 %v525
        %v934 = vpop.f32.mrf.mxu0
        %v935 = vadd.f32 %v730, %v934
        %936 = vmatmul.f32.gmra.mxu0 %v528
        %v937 = vpop.f32.mrf.mxu0
        %v938 = vadd.f32 %v733, %v937
        %939 = vmatmul.f32.gmra.mxu0 %v531
        %v940 = vpop.f32.mrf.mxu0
        %v941 = vadd.f32 %v736, %v940
        %942 = vmatmul.f32.gmra.mxu0 %v534
        %v943 = vpop.f32.mrf.mxu0
        %v944 = vadd.f32 %v739, %v943
        %945 = vmatmul.f32.gmra.mxu0 %v537
        %v946 = vpop.f32.mrf.mxu0
        %v947 = vadd.f32 %v742, %v946
        %948 = vmatmul.f32.gmra.mxu0 %v540
        %v949 = vpop.f32.mrf.mxu0
        %v950 = vadd.f32 %v745, %v949
        %951 = vmatmul.f32.gmra.mxu0 %v543
        %v952 = vpop.f32.mrf.mxu0
        %v953 = vadd.f32 %v748, %v952
        %954 = vdwg.mxu0
        %v955 = vld [vmem:[%s384 + $0x10] sm:$0xff]
        %v956 = vld [vmem:[%s384 + $0x18] sm:$0xff]
        %v957 = vld [vmem:[%s384 + $0x20] sm:$0xff]
        %v958 = vld [vmem:[%s384 + $0x28] sm:$0xff]
        %v959 = vld [vmem:[%s384 + $0x30] sm:$0xff]
        %v960 = vld [vmem:[%s384 + $0x38] sm:$0xff]
        %v961 = vld [vmem:[%s384 + $0x40] sm:$0xff]
        %v962 = vld [vmem:[%s384 + $0x48] sm:$0xff]
        %v963 = vld [vmem:[%s384 + $0x50] sm:$0xff]
        %v964 = vld [vmem:[%s384 + $0x58] sm:$0xff]
        %v965 = vld [vmem:[%s384 + $0x60] sm:$0xff]
        %v966 = vld [vmem:[%s384 + $0x68] sm:$0xff]
        %v967 = vld [vmem:[%s384 + $0x70] sm:$0xff]
        %v968 = vld [vmem:[%s384 + $0x78] sm:$0xff]
        %v969 = vld [vmem:[%s384 + $0x80] sm:$0xff]
        %v970 = vld [vmem:[%s384 + $0x88] sm:$0xff]
        %v971 = vld [vmem:[%s384 + $0x90] sm:$0xff]
        %v972 = vld [vmem:[%s384 + $0x98] sm:$0xff]
        %v973 = vld [vmem:[%s384 + $0xa0] sm:$0xff]
        %v974 = vld [vmem:[%s384 + $0xa8] sm:$0xff]
        %v975 = vld [vmem:[%s384 + $0xb0] sm:$0xff]
        %v976 = vld [vmem:[%s384 + $0xb8] sm:$0xff]
        %v977 = vld [vmem:[%s384 + $0xc0] sm:$0xff]
        %v978 = vld [vmem:[%s384 + $0xc8] sm:$0xff]
        %v979 = vld [vmem:[%s384 + $0xd0] sm:$0xff]
        %v980 = vld [vmem:[%s384 + $0xd8] sm:$0xff]
        %v981 = vld [vmem:[%s384 + $0xe0] sm:$0xff]
        %v982 = vld [vmem:[%s384 + $0xe8] sm:$0xff]
        %s983 = scalar_lea.vmem %s1, 384
        %v984 = vld [vmem:[%s983] sm:$0xff]
        %v985 = vld [vmem:[%s983 + $0x8] sm:$0xff]
        %v986 = vld [vmem:[%s983 + $0x10] sm:$0xff]
        %v987 = vld [vmem:[%s983 + $0x18] sm:$0xff]
        %v988 = vld [vmem:[%s983 + $0x20] sm:$0xff]
        %v989 = vld [vmem:[%s983 + $0x28] sm:$0xff]
        %v990 = vld [vmem:[%s983 + $0x30] sm:$0xff]
        %v991 = vld [vmem:[%s983 + $0x38] sm:$0xff]
        %v992 = vld [vmem:[%s983 + $0x40] sm:$0xff]
        %v993 = vld [vmem:[%s983 + $0x48] sm:$0xff]
        %v994 = vld [vmem:[%s983 + $0x50] sm:$0xff]
        %v995 = vld [vmem:[%s983 + $0x58] sm:$0xff]
        %v996 = vld [vmem:[%s983 + $0x60] sm:$0xff]
        %v997 = vld [vmem:[%s983 + $0x68] sm:$0xff]
        %v998 = vld [vmem:[%s983 + $0x70] sm:$0xff]
        %v999 = vld [vmem:[%s983 + $0x78] sm:$0xff]
        %v1000 = vld [vmem:[%s983 + $0x80] sm:$0xff]
        %v1001 = vld [vmem:[%s983 + $0x88] sm:$0xff]
        %v1002 = vld [vmem:[%s983 + $0x90] sm:$0xff]
        %v1003 = vld [vmem:[%s983 + $0x98] sm:$0xff]
        %v1004 = vld [vmem:[%s983 + $0xa0] sm:$0xff]
        %v1005 = vld [vmem:[%s983 + $0xa8] sm:$0xff]
        %v1006 = vld [vmem:[%s983 + $0xb0] sm:$0xff]
        %v1007 = vld [vmem:[%s983 + $0xb8] sm:$0xff]
        %v1009 = vsel %vm463, %v955, 0
        %v1012 = vsel %vm463, %v956, 0
        %v1015 = vsel %vm463, %v957, 0
        %v1018 = vsel %vm463, %v958, 0
        %v1021 = vsel %vm463, %v959, 0
        %v1024 = vsel %vm463, %v960, 0
        %v1027 = vsel %vm463, %v961, 0
        %v1030 = vsel %vm463, %v962, 0
        %v1033 = vsel %vm463, %v963, 0
        %v1036 = vsel %vm463, %v964, 0
        %v1039 = vsel %vm463, %v965, 0
        %v1042 = vsel %vm463, %v966, 0
        %v1045 = vsel %vm463, %v967, 0
        %v1048 = vsel %vm463, %v968, 0
        %v1051 = vsel %vm463, %v969, 0
        %v1054 = vsel %vm463, %v970, 0
        %v1057 = vsel %vm463, %v971, 0
        %v1060 = vsel %vm463, %v972, 0
        %v1063 = vsel %vm463, %v973, 0
        %v1066 = vsel %vm463, %v974, 0
        %v1069 = vsel %vm463, %v975, 0
        %v1072 = vsel %vm463, %v976, 0
        %v1075 = vsel %vm463, %v977, 0
        %v1078 = vsel %vm463, %v978, 0
        %v1081 = vsel %vm463, %v979, 0
        %v1084 = vsel %vm463, %v980, 0
        %v1087 = vsel %vm463, %v981, 0
        %v1090 = vsel %vm463, %v982, 0
        %1092 = vmatpush.msra.mxu0 0.0
        %1093 = vmatpush.msra.mxu0 0.0
        %1094 = vmatpush.msra.mxu0 0.0
        %1095 = vmatpush.msra.mxu0 0.0
        %1096 = vmatpush.msra.mxu0 %v1006
        %1097 = vmatpush.msra.mxu0 %v1004
        %1098 = vmatpush.msra.mxu0 %v1002
        %1099 = vmatpush.msra.mxu0 %v1000
        %1100 = vmatpush.msra.mxu0 %v998
        %1101 = vmatpush.msra.mxu0 %v996
        %1102 = vmatpush.msra.mxu0 %v994
        %1103 = vmatpush.msra.mxu0 %v992
        %1104 = vmatpush.msra.mxu0 %v990
        %1105 = vmatpush.msra.mxu0 %v988
        %1106 = vmatpush.msra.mxu0 %v986
        %1107 = vmatpush.msra.mxu0 %v984
        %1108 = vmatmul.f32.gmra.mxu0 %v1009
        %v1109 = vpop.f32.mrf.mxu0
        %v1110 = vadd.f32 0.0, %v1109
        %1111 = vmatmul.f32.gmra.mxu0 %v1012
        %v1112 = vpop.f32.mrf.mxu0
        %v1113 = vadd.f32 0.0, %v1112
        %1114 = vmatmul.f32.gmra.mxu0 %v1015
        %v1115 = vpop.f32.mrf.mxu0
        %v1116 = vadd.f32 0.0, %v1115
        %1117 = vmatmul.f32.gmra.mxu0 %v1018
        %v1118 = vpop.f32.mrf.mxu0
        %v1119 = vadd.f32 0.0, %v1118
        %1120 = vmatmul.f32.gmra.mxu0 %v1021
        %v1121 = vpop.f32.mrf.mxu0
        %v1122 = vadd.f32 0.0, %v1121
        %1123 = vmatmul.f32.gmra.mxu0 %v1024
        %v1124 = vpop.f32.mrf.mxu0
        %v1125 = vadd.f32 0.0, %v1124
        %1126 = vmatmul.f32.gmra.mxu0 %v1027
        %v1127 = vpop.f32.mrf.mxu0
        %v1128 = vadd.f32 0.0, %v1127
        %1129 = vmatmul.f32.gmra.mxu0 %v1030
        %v1130 = vpop.f32.mrf.mxu0
        %v1131 = vadd.f32 0.0, %v1130
        %1132 = vmatmul.f32.gmra.mxu0 %v1033
        %v1133 = vpop.f32.mrf.mxu0
        %v1134 = vadd.f32 0.0, %v1133
        %1135 = vmatmul.f32.gmra.mxu0 %v1036
        %v1136 = vpop.f32.mrf.mxu0
        %v1137 = vadd.f32 0.0, %v1136
        %1138 = vmatmul.f32.gmra.mxu0 %v1039
        %v1139 = vpop.f32.mrf.mxu0
        %v1140 = vadd.f32 0.0, %v1139
        %1141 = vmatmul.f32.gmra.mxu0 %v1042
        %v1142 = vpop.f32.mrf.mxu0
        %v1143 = vadd.f32 0.0, %v1142
        %1144 = vmatmul.f32.gmra.mxu0 %v1045
        %v1145 = vpop.f32.mrf.mxu0
        %v1146 = vadd.f32 0.0, %v1145
        %1147 = vmatmul.f32.gmra.mxu0 %v1048
        %v1148 = vpop.f32.mrf.mxu0
        %v1149 = vadd.f32 0.0, %v1148
        %1150 = vmatmul.f32.gmra.mxu0 %v1051
        %v1151 = vpop.f32.mrf.mxu0
        %v1152 = vadd.f32 0.0, %v1151
        %1153 = vmatmul.f32.gmra.mxu0 %v1054
        %v1154 = vpop.f32.mrf.mxu0
        %v1155 = vadd.f32 0.0, %v1154
        %1156 = vmatmul.f32.gmra.mxu0 %v1057
        %v1157 = vpop.f32.mrf.mxu0
        %v1158 = vadd.f32 0.0, %v1157
        %1159 = vmatmul.f32.gmra.mxu0 %v1060
        %v1160 = vpop.f32.mrf.mxu0
        %v1161 = vadd.f32 0.0, %v1160
        %1162 = vmatmul.f32.gmra.mxu0 %v1063
        %v1163 = vpop.f32.mrf.mxu0
        %v1164 = vadd.f32 0.0, %v1163
        %1165 = vmatmul.f32.gmra.mxu0 %v1066
        %v1166 = vpop.f32.mrf.mxu0
        %v1167 = vadd.f32 0.0, %v1166
        %1168 = vmatmul.f32.gmra.mxu0 %v1069
        %v1169 = vpop.f32.mrf.mxu0
        %v1170 = vadd.f32 0.0, %v1169
        %1171 = vmatmul.f32.gmra.mxu0 %v1072
        %v1172 = vpop.f32.mrf.mxu0
        %v1173 = vadd.f32 0.0, %v1172
        %1174 = vmatmul.f32.gmra.mxu0 %v1075
        %v1175 = vpop.f32.mrf.mxu0
        %v1176 = vadd.f32 0.0, %v1175
        %1177 = vmatmul.f32.gmra.mxu0 %v1078
        %v1178 = vpop.f32.mrf.mxu0
        %v1179 = vadd.f32 0.0, %v1178
        %1180 = vmatmul.f32.gmra.mxu0 %v1081
        %v1181 = vpop.f32.mrf.mxu0
        %v1182 = vadd.f32 0.0, %v1181
        %1183 = vmatmul.f32.gmra.mxu0 %v1084
        %v1184 = vpop.f32.mrf.mxu0
        %v1185 = vadd.f32 0.0, %v1184
        %1186 = vmatmul.f32.gmra.mxu0 %v1087
        %v1187 = vpop.f32.mrf.mxu0
        %v1188 = vadd.f32 0.0, %v1187
        %1189 = vmatmul.f32.gmra.mxu0 %v1090
        %v1190 = vpop.f32.mrf.mxu0
        %v1191 = vadd.f32 0.0, %v1190
        %1192 = vdwg.mxu0
        %1193 = vmatpush.msra.mxu0 0.0
        %1194 = vmatpush.msra.mxu0 0.0
        %1195 = vmatpush.msra.mxu0 0.0
        %1196 = vmatpush.msra.mxu0 0.0
        %1197 = vmatpush.msra.mxu0 %v1007
        %1198 = vmatpush.msra.mxu0 %v1005
        %1199 = vmatpush.msra.mxu0 %v1003
        %1200 = vmatpush.msra.mxu0 %v1001
        %1201 = vmatpush.msra.mxu0 %v999
        %1202 = vmatpush.msra.mxu0 %v997
        %1203 = vmatpush.msra.mxu0 %v995
        %1204 = vmatpush.msra.mxu0 %v993
        %1205 = vmatpush.msra.mxu0 %v991
        %1206 = vmatpush.msra.mxu0 %v989
        %1207 = vmatpush.msra.mxu0 %v987
        %1208 = vmatpush.msra.mxu0 %v985
        %1209 = vmatmul.f32.gmra.mxu0 %v1009
        %v1210 = vpop.f32.mrf.mxu0
        %v1211 = vadd.f32 0.0, %v1210
        %1212 = vmatmul.f32.gmra.mxu0 %v1012
        %v1213 = vpop.f32.mrf.mxu0
        %v1214 = vadd.f32 0.0, %v1213
        %1215 = vmatmul.f32.gmra.mxu0 %v1015
        %v1216 = vpop.f32.mrf.mxu0
        %v1217 = vadd.f32 0.0, %v1216
        %1218 = vmatmul.f32.gmra.mxu0 %v1018
        %v1219 = vpop.f32.mrf.mxu0
        %v1220 = vadd.f32 0.0, %v1219
        %1221 = vmatmul.f32.gmra.mxu0 %v1021
        %v1222 = vpop.f32.mrf.mxu0
        %v1223 = vadd.f32 0.0, %v1222
        %1224 = vmatmul.f32.gmra.mxu0 %v1024
        %v1225 = vpop.f32.mrf.mxu0
        %v1226 = vadd.f32 0.0, %v1225
        %1227 = vmatmul.f32.gmra.mxu0 %v1027
        %v1228 = vpop.f32.mrf.mxu0
        %v1229 = vadd.f32 0.0, %v1228
        %1230 = vmatmul.f32.gmra.mxu0 %v1030
        %v1231 = vpop.f32.mrf.mxu0
        %v1232 = vadd.f32 0.0, %v1231
        %1233 = vmatmul.f32.gmra.mxu0 %v1033
        %v1234 = vpop.f32.mrf.mxu0
        %v1235 = vadd.f32 0.0, %v1234
        %1236 = vmatmul.f32.gmra.mxu0 %v1036
        %v1237 = vpop.f32.mrf.mxu0
        %v1238 = vadd.f32 0.0, %v1237
        %1239 = vmatmul.f32.gmra.mxu0 %v1039
        %v1240 = vpop.f32.mrf.mxu0
        %v1241 = vadd.f32 0.0, %v1240
        %1242 = vmatmul.f32.gmra.mxu0 %v1042
        %v1243 = vpop.f32.mrf.mxu0
        %v1244 = vadd.f32 0.0, %v1243
        %1245 = vmatmul.f32.gmra.mxu0 %v1045
        %v1246 = vpop.f32.mrf.mxu0
        %v1247 = vadd.f32 0.0, %v1246
        %1248 = vmatmul.f32.gmra.mxu0 %v1048
        %v1249 = vpop.f32.mrf.mxu0
        %v1250 = vadd.f32 0.0, %v1249
        %1251 = vmatmul.f32.gmra.mxu0 %v1051
        %v1252 = vpop.f32.mrf.mxu0
        %v1253 = vadd.f32 0.0, %v1252
        %1254 = vmatmul.f32.gmra.mxu0 %v1054
        %v1255 = vpop.f32.mrf.mxu0
        %v1256 = vadd.f32 0.0, %v1255
        %1257 = vmatmul.f32.gmra.mxu0 %v1057
        %v1258 = vpop.f32.mrf.mxu0
        %v1259 = vadd.f32 0.0, %v1258
        %1260 = vmatmul.f32.gmra.mxu0 %v1060
        %v1261 = vpop.f32.mrf.mxu0
        %v1262 = vadd.f32 0.0, %v1261
        %1263 = vmatmul.f32.gmra.mxu0 %v1063
        %v1264 = vpop.f32.mrf.mxu0
        %v1265 = vadd.f32 0.0, %v1264
        %1266 = vmatmul.f32.gmra.mxu0 %v1066
        %v1267 = vpop.f32.mrf.mxu0
        %v1268 = vadd.f32 0.0, %v1267
        %1269 = vmatmul.f32.gmra.mxu0 %v1069
        %v1270 = vpop.f32.mrf.mxu0
        %v1271 = vadd.f32 0.0, %v1270
        %1272 = vmatmul.f32.gmra.mxu0 %v1072
        %v1273 = vpop.f32.mrf.mxu0
        %v1274 = vadd.f32 0.0, %v1273
        %1275 = vmatmul.f32.gmra.mxu0 %v1075
        %v1276 = vpop.f32.mrf.mxu0
        %v1277 = vadd.f32 0.0, %v1276
        %1278 = vmatmul.f32.gmra.mxu0 %v1078
        %v1279 = vpop.f32.mrf.mxu0
        %v1280 = vadd.f32 0.0, %v1279
        %1281 = vmatmul.f32.gmra.mxu0 %v1081
        %v1282 = vpop.f32.mrf.mxu0
        %v1283 = vadd.f32 0.0, %v1282
        %1284 = vmatmul.f32.gmra.mxu0 %v1084
        %v1285 = vpop.f32.mrf.mxu0
        %v1286 = vadd.f32 0.0, %v1285
        %1287 = vmatmul.f32.gmra.mxu0 %v1087
        %v1288 = vpop.f32.mrf.mxu0
        %v1289 = vadd.f32 0.0, %v1288
        %1290 = vmatmul.f32.gmra.mxu0 %v1090
        %v1291 = vpop.f32.mrf.mxu0
        %v1292 = vadd.f32 0.0, %v1291
        %1293 = vdwg.mxu0
        %v1294 = vadd.f32 %v771, %v1110
        %v1295 = vadd.f32 %v872, %v1211
        %v1296 = vadd.f32 %v774, %v1113
        %v1297 = vadd.f32 %v875, %v1214
        %v1298 = vadd.f32 %v777, %v1116
        %v1299 = vadd.f32 %v878, %v1217
        %v1300 = vadd.f32 %v780, %v1119
        %v1301 = vadd.f32 %v881, %v1220
        %v1302 = vadd.f32 %v783, %v1122
        %v1303 = vadd.f32 %v884, %v1223
        %v1304 = vadd.f32 %v786, %v1125
        %v1305 = vadd.f32 %v887, %v1226
        %v1306 = vadd.f32 %v789, %v1128
        %v1307 = vadd.f32 %v890, %v1229
        %v1308 = vadd.f32 %v792, %v1131
        %v1309 = vadd.f32 %v893, %v1232
        %v1310 = vadd.f32 %v795, %v1134
        %v1311 = vadd.f32 %v896, %v1235
        %v1312 = vadd.f32 %v798, %v1137
        %v1313 = vadd.f32 %v899, %v1238
        %v1314 = vadd.f32 %v801, %v1140
        %v1315 = vadd.f32 %v902, %v1241
        %v1316 = vadd.f32 %v804, %v1143
        %v1317 = vadd.f32 %v905, %v1244
        %v1318 = vadd.f32 %v807, %v1146
        %v1319 = vadd.f32 %v908, %v1247
        %v1320 = vadd.f32 %v810, %v1149
        %v1321 = vadd.f32 %v911, %v1250
        %v1322 = vadd.f32 %v813, %v1152
        %v1323 = vadd.f32 %v914, %v1253
        %v1324 = vadd.f32 %v816, %v1155
        %v1325 = vadd.f32 %v917, %v1256
        %v1326 = vadd.f32 %v819, %v1158
        %v1327 = vadd.f32 %v920, %v1259
        %v1328 = vadd.f32 %v822, %v1161
        %v1329 = vadd.f32 %v923, %v1262
        %v1330 = vadd.f32 %v825, %v1164
        %v1331 = vadd.f32 %v926, %v1265
        %v1332 = vadd.f32 %v828, %v1167
        %v1333 = vadd.f32 %v929, %v1268
        %v1334 = vadd.f32 %v831, %v1170
        %v1335 = vadd.f32 %v932, %v1271
        %v1336 = vadd.f32 %v834, %v1173
        %v1337 = vadd.f32 %v935, %v1274
        %v1338 = vadd.f32 %v837, %v1176
        %v1339 = vadd.f32 %v938, %v1277
        %v1340 = vadd.f32 %v840, %v1179
        %v1341 = vadd.f32 %v941, %v1280
        %v1342 = vadd.f32 %v843, %v1182
        %v1343 = vadd.f32 %v944, %v1283
        %v1344 = vadd.f32 %v846, %v1185
        %v1345 = vadd.f32 %v947, %v1286
        %v1346 = vadd.f32 %v849, %v1188
        %v1347 = vadd.f32 %v950, %v1289
        %v1348 = vadd.f32 %v852, %v1191
        %v1349 = vadd.f32 %v953, %v1292
        %v1350 = vld [vmem:[%s384 + $0x18] sm:$0xff]
        %v1351 = vld [vmem:[%s384 + $0x20] sm:$0xff]
        %v1352 = vld [vmem:[%s384 + $0x28] sm:$0xff]
        %v1353 = vld [vmem:[%s384 + $0x30] sm:$0xff]
        %v1354 = vld [vmem:[%s384 + $0x38] sm:$0xff]
        %v1355 = vld [vmem:[%s384 + $0x40] sm:$0xff]
        %v1356 = vld [vmem:[%s384 + $0x48] sm:$0xff]
        %v1357 = vld [vmem:[%s384 + $0x50] sm:$0xff]
        %v1358 = vld [vmem:[%s384 + $0x58] sm:$0xff]
        %v1359 = vld [vmem:[%s384 + $0x60] sm:$0xff]
        %v1360 = vld [vmem:[%s384 + $0x68] sm:$0xff]
        %v1361 = vld [vmem:[%s384 + $0x70] sm:$0xff]
        %v1362 = vld [vmem:[%s384 + $0x78] sm:$0xff]
        %v1363 = vld [vmem:[%s384 + $0x80] sm:$0xff]
        %v1364 = vld [vmem:[%s384 + $0x88] sm:$0xff]
        %v1365 = vld [vmem:[%s384 + $0x90] sm:$0xff]
        %v1366 = vld [vmem:[%s384 + $0x98] sm:$0xff]
        %v1367 = vld [vmem:[%s384 + $0xa0] sm:$0xff]
        %v1368 = vld [vmem:[%s384 + $0xa8] sm:$0xff]
        %v1369 = vld [vmem:[%s384 + $0xb0] sm:$0xff]
        %v1370 = vld [vmem:[%s384 + $0xb8] sm:$0xff]
        %v1371 = vld [vmem:[%s384 + $0xc0] sm:$0xff]
        %v1372 = vld [vmem:[%s384 + $0xc8] sm:$0xff]
        %v1373 = vld [vmem:[%s384 + $0xd0] sm:$0xff]
        %v1374 = vld [vmem:[%s384 + $0xd8] sm:$0xff]
        %v1375 = vld [vmem:[%s384 + $0xe0] sm:$0xff]
        %v1376 = vld [vmem:[%s384 + $0xe8] sm:$0xff]
        %v1377 = vld [vmem:[%s384 + $0xf0] sm:$0xff]
        %s1378 = scalar_lea.vmem %s1, 576
        %v1379 = vld [vmem:[%s1378] sm:$0xff]
        %v1380 = vld [vmem:[%s1378 + $0x8] sm:$0xff]
        %v1381 = vld [vmem:[%s1378 + $0x10] sm:$0xff]
        %v1382 = vld [vmem:[%s1378 + $0x18] sm:$0xff]
        %v1383 = vld [vmem:[%s1378 + $0x20] sm:$0xff]
        %v1384 = vld [vmem:[%s1378 + $0x28] sm:$0xff]
        %v1385 = vld [vmem:[%s1378 + $0x30] sm:$0xff]
        %v1386 = vld [vmem:[%s1378 + $0x38] sm:$0xff]
        %v1387 = vld [vmem:[%s1378 + $0x40] sm:$0xff]
        %v1388 = vld [vmem:[%s1378 + $0x48] sm:$0xff]
        %v1389 = vld [vmem:[%s1378 + $0x50] sm:$0xff]
        %v1390 = vld [vmem:[%s1378 + $0x58] sm:$0xff]
        %v1391 = vld [vmem:[%s1378 + $0x60] sm:$0xff]
        %v1392 = vld [vmem:[%s1378 + $0x68] sm:$0xff]
        %v1393 = vld [vmem:[%s1378 + $0x70] sm:$0xff]
        %v1394 = vld [vmem:[%s1378 + $0x78] sm:$0xff]
        %v1395 = vld [vmem:[%s1378 + $0x80] sm:$0xff]
        %v1396 = vld [vmem:[%s1378 + $0x88] sm:$0xff]
        %v1397 = vld [vmem:[%s1378 + $0x90] sm:$0xff]
        %v1398 = vld [vmem:[%s1378 + $0x98] sm:$0xff]
        %v1399 = vld [vmem:[%s1378 + $0xa0] sm:$0xff]
        %v1400 = vld [vmem:[%s1378 + $0xa8] sm:$0xff]
        %v1401 = vld [vmem:[%s1378 + $0xb0] sm:$0xff]
        %v1402 = vld [vmem:[%s1378 + $0xb8] sm:$0xff]
        %v1404 = vsel %vm463, %v1350, 0
        %v1407 = vsel %vm463, %v1351, 0
        %v1410 = vsel %vm463, %v1352, 0
        %v1413 = vsel %vm463, %v1353, 0
        %v1416 = vsel %vm463, %v1354, 0
        %v1419 = vsel %vm463, %v1355, 0
        %v1422 = vsel %vm463, %v1356, 0
        %v1425 = vsel %vm463, %v1357, 0
        %v1428 = vsel %vm463, %v1358, 0
        %v1431 = vsel %vm463, %v1359, 0
        %v1434 = vsel %vm463, %v1360, 0
        %v1437 = vsel %vm463, %v1361, 0
        %v1440 = vsel %vm463, %v1362, 0
        %v1443 = vsel %vm463, %v1363, 0
        %v1446 = vsel %vm463, %v1364, 0
        %v1449 = vsel %vm463, %v1365, 0
        %v1452 = vsel %vm463, %v1366, 0
        %v1455 = vsel %vm463, %v1367, 0
        %v1458 = vsel %vm463, %v1368, 0
        %v1461 = vsel %vm463, %v1369, 0
        %v1464 = vsel %vm463, %v1370, 0
        %v1467 = vsel %vm463, %v1371, 0
        %v1470 = vsel %vm463, %v1372, 0
        %v1473 = vsel %vm463, %v1373, 0
        %v1476 = vsel %vm463, %v1374, 0
        %v1479 = vsel %vm463, %v1375, 0
        %v1482 = vsel %vm463, %v1376, 0
        %v1485 = vsel %vm463, %v1377, 0
        %1487 = vmatpush.msra.mxu0 0.0
        %1488 = vmatpush.msra.mxu0 0.0
        %1489 = vmatpush.msra.mxu0 0.0
        %1490 = vmatpush.msra.mxu0 0.0
        %1491 = vmatpush.msra.mxu0 %v1401
        %1492 = vmatpush.msra.mxu0 %v1399
        %1493 = vmatpush.msra.mxu0 %v1397
        %1494 = vmatpush.msra.mxu0 %v1395
        %1495 = vmatpush.msra.mxu0 %v1393
        %1496 = vmatpush.msra.mxu0 %v1391
        %1497 = vmatpush.msra.mxu0 %v1389
        %1498 = vmatpush.msra.mxu0 %v1387
        %1499 = vmatpush.msra.mxu0 %v1385
        %1500 = vmatpush.msra.mxu0 %v1383
        %1501 = vmatpush.msra.mxu0 %v1381
        %1502 = vmatpush.msra.mxu0 %v1379
        %1503 = vmatmul.f32.gmra.mxu0 %v1404
        %v1504 = vpop.f32.mrf.mxu0
        %v1505 = vadd.f32 0.0, %v1504
        %1506 = vmatmul.f32.gmra.mxu0 %v1407
        %v1507 = vpop.f32.mrf.mxu0
        %v1508 = vadd.f32 0.0, %v1507
        %1509 = vmatmul.f32.gmra.mxu0 %v1410
        %v1510 = vpop.f32.mrf.mxu0
        %v1511 = vadd.f32 0.0, %v1510
        %1512 = vmatmul.f32.gmra.mxu0 %v1413
        %v1513 = vpop.f32.mrf.mxu0
        %v1514 = vadd.f32 0.0, %v1513
        %1515 = vmatmul.f32.gmra.mxu0 %v1416
        %v1516 = vpop.f32.mrf.mxu0
        %v1517 = vadd.f32 0.0, %v1516
        %1518 = vmatmul.f32.gmra.mxu0 %v1419
        %v1519 = vpop.f32.mrf.mxu0
        %v1520 = vadd.f32 0.0, %v1519
        %1521 = vmatmul.f32.gmra.mxu0 %v1422
        %v1522 = vpop.f32.mrf.mxu0
        %v1523 = vadd.f32 0.0, %v1522
        %1524 = vmatmul.f32.gmra.mxu0 %v1425
        %v1525 = vpop.f32.mrf.mxu0
        %v1526 = vadd.f32 0.0, %v1525
        %1527 = vmatmul.f32.gmra.mxu0 %v1428
        %v1528 = vpop.f32.mrf.mxu0
        %v1529 = vadd.f32 0.0, %v1528
        %1530 = vmatmul.f32.gmra.mxu0 %v1431
        %v1531 = vpop.f32.mrf.mxu0
        %v1532 = vadd.f32 0.0, %v1531
        %1533 = vmatmul.f32.gmra.mxu0 %v1434
        %v1534 = vpop.f32.mrf.mxu0
        %v1535 = vadd.f32 0.0, %v1534
        %1536 = vmatmul.f32.gmra.mxu0 %v1437
        %v1537 = vpop.f32.mrf.mxu0
        %v1538 = vadd.f32 0.0, %v1537
        %1539 = vmatmul.f32.gmra.mxu0 %v1440
        %v1540 = vpop.f32.mrf.mxu0
        %v1541 = vadd.f32 0.0, %v1540
        %1542 = vmatmul.f32.gmra.mxu0 %v1443
        %v1543 = vpop.f32.mrf.mxu0
        %v1544 = vadd.f32 0.0, %v1543
        %1545 = vmatmul.f32.gmra.mxu0 %v1446
        %v1546 = vpop.f32.mrf.mxu0
        %v1547 = vadd.f32 0.0, %v1546
        %1548 = vmatmul.f32.gmra.mxu0 %v1449
        %v1549 = vpop.f32.mrf.mxu0
        %v1550 = vadd.f32 0.0, %v1549
        %1551 = vmatmul.f32.gmra.mxu0 %v1452
        %v1552 = vpop.f32.mrf.mxu0
        %v1553 = vadd.f32 0.0, %v1552
        %1554 = vmatmul.f32.gmra.mxu0 %v1455
        %v1555 = vpop.f32.mrf.mxu0
        %v1556 = vadd.f32 0.0, %v1555
        %1557 = vmatmul.f32.gmra.mxu0 %v1458
        %v1558 = vpop.f32.mrf.mxu0
        %v1559 = vadd.f32 0.0, %v1558
        %1560 = vmatmul.f32.gmra.mxu0 %v1461
        %v1561 = vpop.f32.mrf.mxu0
        %v1562 = vadd.f32 0.0, %v1561
        %1563 = vmatmul.f32.gmra.mxu0 %v1464
        %v1564 = vpop.f32.mrf.mxu0
        %v1565 = vadd.f32 0.0, %v1564
        %1566 = vmatmul.f32.gmra.mxu0 %v1467
        %v1567 = vpop.f32.mrf.mxu0
        %v1568 = vadd.f32 0.0, %v1567
        %1569 = vmatmul.f32.gmra.mxu0 %v1470
        %v1570 = vpop.f32.mrf.mxu0
        %v1571 = vadd.f32 0.0, %v1570
        %1572 = vmatmul.f32.gmra.mxu0 %v1473
        %v1573 = vpop.f32.mrf.mxu0
        %v1574 = vadd.f32 0.0, %v1573
        %1575 = vmatmul.f32.gmra.mxu0 %v1476
        %v1576 = vpop.f32.mrf.mxu0
        %v1577 = vadd.f32 0.0, %v1576
        %1578 = vmatmul.f32.gmra.mxu0 %v1479
        %v1579 = vpop.f32.mrf.mxu0
        %v1580 = vadd.f32 0.0, %v1579
        %1581 = vmatmul.f32.gmra.mxu0 %v1482
        %v1582 = vpop.f32.mrf.mxu0
        %v1583 = vadd.f32 0.0, %v1582
        %1584 = vmatmul.f32.gmra.mxu0 %v1485
        %v1585 = vpop.f32.mrf.mxu0
        %v1586 = vadd.f32 0.0, %v1585
        %1587 = vdwg.mxu0
        %1588 = vmatpush.msra.mxu0 0.0
        %1589 = vmatpush.msra.mxu0 0.0
        %1590 = vmatpush.msra.mxu0 0.0
        %1591 = vmatpush.msra.mxu0 0.0
        %1592 = vmatpush.msra.mxu0 %v1402
        %1593 = vmatpush.msra.mxu0 %v1400
        %1594 = vmatpush.msra.mxu0 %v1398
        %1595 = vmatpush.msra.mxu0 %v1396
        %1596 = vmatpush.msra.mxu0 %v1394
        %1597 = vmatpush.msra.mxu0 %v1392
        %1598 = vmatpush.msra.mxu0 %v1390
        %1599 = vmatpush.msra.mxu0 %v1388
        %1600 = vmatpush.msra.mxu0 %v1386
        %1601 = vmatpush.msra.mxu0 %v1384
        %1602 = vmatpush.msra.mxu0 %v1382
        %1603 = vmatpush.msra.mxu0 %v1380
        %1604 = vmatmul.f32.gmra.mxu0 %v1404
        %v1605 = vpop.f32.mrf.mxu0
        %v1606 = vadd.f32 0.0, %v1605
        %1607 = vmatmul.f32.gmra.mxu0 %v1407
        %v1608 = vpop.f32.mrf.mxu0
        %v1609 = vadd.f32 0.0, %v1608
        %1610 = vmatmul.f32.gmra.mxu0 %v1410
        %v1611 = vpop.f32.mrf.mxu0
        %v1612 = vadd.f32 0.0, %v1611
        %1613 = vmatmul.f32.gmra.mxu0 %v1413
        %v1614 = vpop.f32.mrf.mxu0
        %v1615 = vadd.f32 0.0, %v1614
        %1616 = vmatmul.f32.gmra.mxu0 %v1416
        %v1617 = vpop.f32.mrf.mxu0
        %v1618 = vadd.f32 0.0, %v1617
        %1619 = vmatmul.f32.gmra.mxu0 %v1419
        %v1620 = vpop.f32.mrf.mxu0
        %v1621 = vadd.f32 0.0, %v1620
        %1622 = vmatmul.f32.gmra.mxu0 %v1422
        %v1623 = vpop.f32.mrf.mxu0
        %v1624 = vadd.f32 0.0, %v1623
        %1625 = vmatmul.f32.gmra.mxu0 %v1425
        %v1626 = vpop.f32.mrf.mxu0
        %v1627 = vadd.f32 0.0, %v1626
        %1628 = vmatmul.f32.gmra.mxu0 %v1428
        %v1629 = vpop.f32.mrf.mxu0
        %v1630 = vadd.f32 0.0, %v1629
        %1631 = vmatmul.f32.gmra.mxu0 %v1431
        %v1632 = vpop.f32.mrf.mxu0
        %v1633 = vadd.f32 0.0, %v1632
        %1634 = vmatmul.f32.gmra.mxu0 %v1434
        %v1635 = vpop.f32.mrf.mxu0
        %v1636 = vadd.f32 0.0, %v1635
        %1637 = vmatmul.f32.gmra.mxu0 %v1437
        %v1638 = vpop.f32.mrf.mxu0
        %v1639 = vadd.f32 0.0, %v1638
        %1640 = vmatmul.f32.gmra.mxu0 %v1440
        %v1641 = vpop.f32.mrf.mxu0
        %v1642 = vadd.f32 0.0, %v1641
        %1643 = vmatmul.f32.gmra.mxu0 %v1443
        %v1644 = vpop.f32.mrf.mxu0
        %v1645 = vadd.f32 0.0, %v1644
        %1646 = vmatmul.f32.gmra.mxu0 %v1446
        %v1647 = vpop.f32.mrf.mxu0
        %v1648 = vadd.f32 0.0, %v1647
        %1649 = vmatmul.f32.gmra.mxu0 %v1449
        %v1650 = vpop.f32.mrf.mxu0
        %v1651 = vadd.f32 0.0, %v1650
        %1652 = vmatmul.f32.gmra.mxu0 %v1452
        %v1653 = vpop.f32.mrf.mxu0
        %v1654 = vadd.f32 0.0, %v1653
        %1655 = vmatmul.f32.gmra.mxu0 %v1455
        %v1656 = vpop.f32.mrf.mxu0
        %v1657 = vadd.f32 0.0, %v1656
        %1658 = vmatmul.f32.gmra.mxu0 %v1458
        %v1659 = vpop.f32.mrf.mxu0
        %v1660 = vadd.f32 0.0, %v1659
        %1661 = vmatmul.f32.gmra.mxu0 %v1461
        %v1662 = vpop.f32.mrf.mxu0
        %v1663 = vadd.f32 0.0, %v1662
        %1664 = vmatmul.f32.gmra.mxu0 %v1464
        %v1665 = vpop.f32.mrf.mxu0
        %v1666 = vadd.f32 0.0, %v1665
        %1667 = vmatmul.f32.gmra.mxu0 %v1467
        %v1668 = vpop.f32.mrf.mxu0
        %v1669 = vadd.f32 0.0, %v1668
        %1670 = vmatmul.f32.gmra.mxu0 %v1470
        %v1671 = vpop.f32.mrf.mxu0
        %v1672 = vadd.f32 0.0, %v1671
        %1673 = vmatmul.f32.gmra.mxu0 %v1473
        %v1674 = vpop.f32.mrf.mxu0
        %v1675 = vadd.f32 0.0, %v1674
        %1676 = vmatmul.f32.gmra.mxu0 %v1476
        %v1677 = vpop.f32.mrf.mxu0
        %v1678 = vadd.f32 0.0, %v1677
        %1679 = vmatmul.f32.gmra.mxu0 %v1479
        %v1680 = vpop.f32.mrf.mxu0
        %v1681 = vadd.f32 0.0, %v1680
        %1682 = vmatmul.f32.gmra.mxu0 %v1482
        %v1683 = vpop.f32.mrf.mxu0
        %v1684 = vadd.f32 0.0, %v1683
        %1685 = vmatmul.f32.gmra.mxu0 %v1485
        %v1686 = vpop.f32.mrf.mxu0
        %v1687 = vadd.f32 0.0, %v1686
        %1688 = vdwg.mxu0
        %v1689 = vadd.f32 %v1294, %v1505
        %v1690 = vadd.f32 %v1295, %v1606
        %v1691 = vadd.f32 %v1296, %v1508
        %v1692 = vadd.f32 %v1297, %v1609
        %v1693 = vadd.f32 %v1298, %v1511
        %v1694 = vadd.f32 %v1299, %v1612
        %v1695 = vadd.f32 %v1300, %v1514
        %v1696 = vadd.f32 %v1301, %v1615
        %v1697 = vadd.f32 %v1302, %v1517
        %v1698 = vadd.f32 %v1303, %v1618
        %v1699 = vadd.f32 %v1304, %v1520
        %v1700 = vadd.f32 %v1305, %v1621
        %v1701 = vadd.f32 %v1306, %v1523
        %v1702 = vadd.f32 %v1307, %v1624
        %v1703 = vadd.f32 %v1308, %v1526
        %v1704 = vadd.f32 %v1309, %v1627
        %v1705 = vadd.f32 %v1310, %v1529
        %v1706 = vadd.f32 %v1311, %v1630
        %v1707 = vadd.f32 %v1312, %v1532
        %v1708 = vadd.f32 %v1313, %v1633
        %v1709 = vadd.f32 %v1314, %v1535
        %v1710 = vadd.f32 %v1315, %v1636
        %v1711 = vadd.f32 %v1316, %v1538
        %v1712 = vadd.f32 %v1317, %v1639
        %v1713 = vadd.f32 %v1318, %v1541
        %v1714 = vadd.f32 %v1319, %v1642
        %v1715 = vadd.f32 %v1320, %v1544
        %v1716 = vadd.f32 %v1321, %v1645
        %v1717 = vadd.f32 %v1322, %v1547
        %v1718 = vadd.f32 %v1323, %v1648
        %v1719 = vadd.f32 %v1324, %v1550
        %v1720 = vadd.f32 %v1325, %v1651
        %v1721 = vadd.f32 %v1326, %v1553
        %v1722 = vadd.f32 %v1327, %v1654
        %v1723 = vadd.f32 %v1328, %v1556
        %v1724 = vadd.f32 %v1329, %v1657
        %v1725 = vadd.f32 %v1330, %v1559
        %v1726 = vadd.f32 %v1331, %v1660
        %v1727 = vadd.f32 %v1332, %v1562
        %v1728 = vadd.f32 %v1333, %v1663
        %v1729 = vadd.f32 %v1334, %v1565
        %v1730 = vadd.f32 %v1335, %v1666
        %v1731 = vadd.f32 %v1336, %v1568
        %v1732 = vadd.f32 %v1337, %v1669
        %v1733 = vadd.f32 %v1338, %v1571
        %v1734 = vadd.f32 %v1339, %v1672
        %v1735 = vadd.f32 %v1340, %v1574
        %v1736 = vadd.f32 %v1341, %v1675
        %v1737 = vadd.f32 %v1342, %v1577
        %v1738 = vadd.f32 %v1343, %v1678
        %v1739 = vadd.f32 %v1344, %v1580
        %v1740 = vadd.f32 %v1345, %v1681
        %v1741 = vadd.f32 %v1346, %v1583
        %v1742 = vadd.f32 %v1347, %v1684
        %v1743 = vadd.f32 %v1348, %v1586
        %v1744 = vadd.f32 %v1349, %v1687
        %v1745 = vld [vmem:[%s384 + $0x20] sm:$0xff]
        %v1746 = vld [vmem:[%s384 + $0x28] sm:$0xff]
        %v1747 = vld [vmem:[%s384 + $0x30] sm:$0xff]
        %v1748 = vld [vmem:[%s384 + $0x38] sm:$0xff]
        %v1749 = vld [vmem:[%s384 + $0x40] sm:$0xff]
        %v1750 = vld [vmem:[%s384 + $0x48] sm:$0xff]
        %v1751 = vld [vmem:[%s384 + $0x50] sm:$0xff]
        %v1752 = vld [vmem:[%s384 + $0x58] sm:$0xff]
        %v1753 = vld [vmem:[%s384 + $0x60] sm:$0xff]
        %v1754 = vld [vmem:[%s384 + $0x68] sm:$0xff]
        %v1755 = vld [vmem:[%s384 + $0x70] sm:$0xff]
        %v1756 = vld [vmem:[%s384 + $0x78] sm:$0xff]
        %v1757 = vld [vmem:[%s384 + $0x80] sm:$0xff]
        %v1758 = vld [vmem:[%s384 + $0x88] sm:$0xff]
        %v1759 = vld [vmem:[%s384 + $0x90] sm:$0xff]
        %v1760 = vld [vmem:[%s384 + $0x98] sm:$0xff]
        %v1761 = vld [vmem:[%s384 + $0xa0] sm:$0xff]
        %v1762 = vld [vmem:[%s384 + $0xa8] sm:$0xff]
        %v1763 = vld [vmem:[%s384 + $0xb0] sm:$0xff]
        %v1764 = vld [vmem:[%s384 + $0xb8] sm:$0xff]
        %v1765 = vld [vmem:[%s384 + $0xc0] sm:$0xff]
        %v1766 = vld [vmem:[%s384 + $0xc8] sm:$0xff]
        %v1767 = vld [vmem:[%s384 + $0xd0] sm:$0xff]
        %v1768 = vld [vmem:[%s384 + $0xd8] sm:$0xff]
        %v1769 = vld [vmem:[%s384 + $0xe0] sm:$0xff]
        %v1770 = vld [vmem:[%s384 + $0xe8] sm:$0xff]
        %v1771 = vld [vmem:[%s384 + $0xf0] sm:$0xff]
        %v1772 = vld [vmem:[%s384 + $0xf8] sm:$0xff]
        %s1773 = scalar_lea.vmem %s1, 768
        %v1774 = vld [vmem:[%s1773] sm:$0xff]
        %v1775 = vld [vmem:[%s1773 + $0x8] sm:$0xff]
        %v1776 = vld [vmem:[%s1773 + $0x10] sm:$0xff]
        %v1777 = vld [vmem:[%s1773 + $0x18] sm:$0xff]
        %v1778 = vld [vmem:[%s1773 + $0x20] sm:$0xff]
        %v1779 = vld [vmem:[%s1773 + $0x28] sm:$0xff]
        %v1780 = vld [vmem:[%s1773 + $0x30] sm:$0xff]
        %v1781 = vld [vmem:[%s1773 + $0x38] sm:$0xff]
        %v1782 = vld [vmem:[%s1773 + $0x40] sm:$0xff]
        %v1783 = vld [vmem:[%s1773 + $0x48] sm:$0xff]
        %v1784 = vld [vmem:[%s1773 + $0x50] sm:$0xff]
        %v1785 = vld [vmem:[%s1773 + $0x58] sm:$0xff]
        %v1786 = vld [vmem:[%s1773 + $0x60] sm:$0xff]
        %v1787 = vld [vmem:[%s1773 + $0x68] sm:$0xff]
        %v1788 = vld [vmem:[%s1773 + $0x70] sm:$0xff]
        %v1789 = vld [vmem:[%s1773 + $0x78] sm:$0xff]
        %v1790 = vld [vmem:[%s1773 + $0x80] sm:$0xff]
        %v1791 = vld [vmem:[%s1773 + $0x88] sm:$0xff]
        %v1792 = vld [vmem:[%s1773 + $0x90] sm:$0xff]
        %v1793 = vld [vmem:[%s1773 + $0x98] sm:$0xff]
        %v1794 = vld [vmem:[%s1773 + $0xa0] sm:$0xff]
        %v1795 = vld [vmem:[%s1773 + $0xa8] sm:$0xff]
        %v1796 = vld [vmem:[%s1773 + $0xb0] sm:$0xff]
        %v1797 = vld [vmem:[%s1773 + $0xb8] sm:$0xff]
        %v1799 = vsel %vm463, %v1745, 0
        %v1802 = vsel %vm463, %v1746, 0
        %v1805 = vsel %vm463, %v1747, 0
        %v1808 = vsel %vm463, %v1748, 0
        %v1811 = vsel %vm463, %v1749, 0
        %v1814 = vsel %vm463, %v1750, 0
        %v1817 = vsel %vm463, %v1751, 0
        %v1820 = vsel %vm463, %v1752, 0
        %v1823 = vsel %vm463, %v1753, 0
        %v1826 = vsel %vm463, %v1754, 0
        %v1829 = vsel %vm463, %v1755, 0
        %v1832 = vsel %vm463, %v1756, 0
        %v1835 = vsel %vm463, %v1757, 0
        %v1838 = vsel %vm463, %v1758, 0
        %v1841 = vsel %vm463, %v1759, 0
        %v1844 = vsel %vm463, %v1760, 0
        %v1847 = vsel %vm463, %v1761, 0
        %v1850 = vsel %vm463, %v1762, 0
        %v1853 = vsel %vm463, %v1763, 0
        %v1856 = vsel %vm463, %v1764, 0
        %v1859 = vsel %vm463, %v1765, 0
        %v1862 = vsel %vm463, %v1766, 0
        %v1865 = vsel %vm463, %v1767, 0
        %v1868 = vsel %vm463, %v1768, 0
        %v1871 = vsel %vm463, %v1769, 0
        %v1874 = vsel %vm463, %v1770, 0
        %v1877 = vsel %vm463, %v1771, 0
        %v1880 = vsel %vm463, %v1772, 0
        %1882 = vmatpush.msra.mxu0 0.0
        %1883 = vmatpush.msra.mxu0 0.0
        %1884 = vmatpush.msra.mxu0 0.0
        %1885 = vmatpush.msra.mxu0 0.0
        %1886 = vmatpush.msra.mxu0 %v1796
        %1887 = vmatpush.msra.mxu0 %v1794
        %1888 = vmatpush.msra.mxu0 %v1792
        %1889 = vmatpush.msra.mxu0 %v1790
        %1890 = vmatpush.msra.mxu0 %v1788
        %1891 = vmatpush.msra.mxu0 %v1786
        %1892 = vmatpush.msra.mxu0 %v1784
        %1893 = vmatpush.msra.mxu0 %v1782
        %1894 = vmatpush.msra.mxu0 %v1780
        %1895 = vmatpush.msra.mxu0 %v1778
        %1896 = vmatpush.msra.mxu0 %v1776
        %1897 = vmatpush.msra.mxu0 %v1774
        %1898 = vmatmul.f32.gmra.mxu0 %v1799
        %v1899 = vpop.f32.mrf.mxu0
        %v1900 = vadd.f32 0.0, %v1899
        %1901 = vmatmul.f32.gmra.mxu0 %v1802
        %v1902 = vpop.f32.mrf.mxu0
        %v1903 = vadd.f32 0.0, %v1902
        %1904 = vmatmul.f32.gmra.mxu0 %v1805
        %v1905 = vpop.f32.mrf.mxu0
        %v1906 = vadd.f32 0.0, %v1905
        %1907 = vmatmul.f32.gmra.mxu0 %v1808
        %v1908 = vpop.f32.mrf.mxu0
        %v1909 = vadd.f32 0.0, %v1908
        %1910 = vmatmul.f32.gmra.mxu0 %v1811
        %v1911 = vpop.f32.mrf.mxu0
        %v1912 = vadd.f32 0.0, %v1911
        %1913 = vmatmul.f32.gmra.mxu0 %v1814
        %v1914 = vpop.f32.mrf.mxu0
        %v1915 = vadd.f32 0.0, %v1914
        %1916 = vmatmul.f32.gmra.mxu0 %v1817
        %v1917 = vpop.f32.mrf.mxu0
        %v1918 = vadd.f32 0.0, %v1917
        %1919 = vmatmul.f32.gmra.mxu0 %v1820
        %v1920 = vpop.f32.mrf.mxu0
        %v1921 = vadd.f32 0.0, %v1920
        %1922 = vmatmul.f32.gmra.mxu0 %v1823
        %v1923 = vpop.f32.mrf.mxu0
        %v1924 = vadd.f32 0.0, %v1923
        %1925 = vmatmul.f32.gmra.mxu0 %v1826
        %v1926 = vpop.f32.mrf.mxu0
        %v1927 = vadd.f32 0.0, %v1926
        %1928 = vmatmul.f32.gmra.mxu0 %v1829
        %v1929 = vpop.f32.mrf.mxu0
        %v1930 = vadd.f32 0.0, %v1929
        %1931 = vmatmul.f32.gmra.mxu0 %v1832
        %v1932 = vpop.f32.mrf.mxu0
        %v1933 = vadd.f32 0.0, %v1932
        %1934 = vmatmul.f32.gmra.mxu0 %v1835
        %v1935 = vpop.f32.mrf.mxu0
        %v1936 = vadd.f32 0.0, %v1935
        %1937 = vmatmul.f32.gmra.mxu0 %v1838
        %v1938 = vpop.f32.mrf.mxu0
        %v1939 = vadd.f32 0.0, %v1938
        %1940 = vmatmul.f32.gmra.mxu0 %v1841
        %v1941 = vpop.f32.mrf.mxu0
        %v1942 = vadd.f32 0.0, %v1941
        %1943 = vmatmul.f32.gmra.mxu0 %v1844
        %v1944 = vpop.f32.mrf.mxu0
        %v1945 = vadd.f32 0.0, %v1944
        %1946 = vmatmul.f32.gmra.mxu0 %v1847
        %v1947 = vpop.f32.mrf.mxu0
        %v1948 = vadd.f32 0.0, %v1947
        %1949 = vmatmul.f32.gmra.mxu0 %v1850
        %v1950 = vpop.f32.mrf.mxu0
        %v1951 = vadd.f32 0.0, %v1950
        %1952 = vmatmul.f32.gmra.mxu0 %v1853
        %v1953 = vpop.f32.mrf.mxu0
        %v1954 = vadd.f32 0.0, %v1953
        %1955 = vmatmul.f32.gmra.mxu0 %v1856
        %v1956 = vpop.f32.mrf.mxu0
        %v1957 = vadd.f32 0.0, %v1956
        %1958 = vmatmul.f32.gmra.mxu0 %v1859
        %v1959 = vpop.f32.mrf.mxu0
        %v1960 = vadd.f32 0.0, %v1959
        %1961 = vmatmul.f32.gmra.mxu0 %v1862
        %v1962 = vpop.f32.mrf.mxu0
        %v1963 = vadd.f32 0.0, %v1962
        %1964 = vmatmul.f32.gmra.mxu0 %v1865
        %v1965 = vpop.f32.mrf.mxu0
        %v1966 = vadd.f32 0.0, %v1965
        %1967 = vmatmul.f32.gmra.mxu0 %v1868
        %v1968 = vpop.f32.mrf.mxu0
        %v1969 = vadd.f32 0.0, %v1968
        %1970 = vmatmul.f32.gmra.mxu0 %v1871
        %v1971 = vpop.f32.mrf.mxu0
        %v1972 = vadd.f32 0.0, %v1971
        %1973 = vmatmul.f32.gmra.mxu0 %v1874
        %v1974 = vpop.f32.mrf.mxu0
        %v1975 = vadd.f32 0.0, %v1974
        %1976 = vmatmul.f32.gmra.mxu0 %v1877
        %v1977 = vpop.f32.mrf.mxu0
        %v1978 = vadd.f32 0.0, %v1977
        %1979 = vmatmul.f32.gmra.mxu0 %v1880
        %v1980 = vpop.f32.mrf.mxu0
        %v1981 = vadd.f32 0.0, %v1980
        %1982 = vdwg.mxu0
        %1983 = vmatpush.msra.mxu0 0.0
        %1984 = vmatpush.msra.mxu0 0.0
        %1985 = vmatpush.msra.mxu0 0.0
        %1986 = vmatpush.msra.mxu0 0.0
        %1987 = vmatpush.msra.mxu0 %v1797
        %1988 = vmatpush.msra.mxu0 %v1795
        %1989 = vmatpush.msra.mxu0 %v1793
        %1990 = vmatpush.msra.mxu0 %v1791
        %1991 = vmatpush.msra.mxu0 %v1789
        %1992 = vmatpush.msra.mxu0 %v1787
        %1993 = vmatpush.msra.mxu0 %v1785
        %1994 = vmatpush.msra.mxu0 %v1783
        %1995 = vmatpush.msra.mxu0 %v1781
        %1996 = vmatpush.msra.mxu0 %v1779
        %1997 = vmatpush.msra.mxu0 %v1777
        %1998 = vmatpush.msra.mxu0 %v1775
        %1999 = vmatmul.f32.gmra.mxu0 %v1799
        %v2000 = vpop.f32.mrf.mxu0
        %v2001 = vadd.f32 0.0, %v2000
        %2002 = vmatmul.f32.gmra.mxu0 %v1802
        %v2003 = vpop.f32.mrf.mxu0
        %v2004 = vadd.f32 0.0, %v2003
        %2005 = vmatmul.f32.gmra.mxu0 %v1805
        %v2006 = vpop.f32.mrf.mxu0
        %v2007 = vadd.f32 0.0, %v2006
        %2008 = vmatmul.f32.gmra.mxu0 %v1808
        %v2009 = vpop.f32.mrf.mxu0
        %v2010 = vadd.f32 0.0, %v2009
        %2011 = vmatmul.f32.gmra.mxu0 %v1811
        %v2012 = vpop.f32.mrf.mxu0
        %v2013 = vadd.f32 0.0, %v2012
        %2014 = vmatmul.f32.gmra.mxu0 %v1814
        %v2015 = vpop.f32.mrf.mxu0
        %v2016 = vadd.f32 0.0, %v2015
        %2017 = vmatmul.f32.gmra.mxu0 %v1817
        %v2018 = vpop.f32.mrf.mxu0
        %v2019 = vadd.f32 0.0, %v2018
        %2020 = vmatmul.f32.gmra.mxu0 %v1820
        %v2021 = vpop.f32.mrf.mxu0
        %v2022 = vadd.f32 0.0, %v2021
        %2023 = vmatmul.f32.gmra.mxu0 %v1823
        %v2024 = vpop.f32.mrf.mxu0
        %v2025 = vadd.f32 0.0, %v2024
        %2026 = vmatmul.f32.gmra.mxu0 %v1826
        %v2027 = vpop.f32.mrf.mxu0
        %v2028 = vadd.f32 0.0, %v2027
        %2029 = vmatmul.f32.gmra.mxu0 %v1829
        %v2030 = vpop.f32.mrf.mxu0
        %v2031 = vadd.f32 0.0, %v2030
        %2032 = vmatmul.f32.gmra.mxu0 %v1832
        %v2033 = vpop.f32.mrf.mxu0
        %v2034 = vadd.f32 0.0, %v2033
        %2035 = vmatmul.f32.gmra.mxu0 %v1835
        %v2036 = vpop.f32.mrf.mxu0
        %v2037 = vadd.f32 0.0, %v2036
        %2038 = vmatmul.f32.gmra.mxu0 %v1838
        %v2039 = vpop.f32.mrf.mxu0
        %v2040 = vadd.f32 0.0, %v2039
        %2041 = vmatmul.f32.gmra.mxu0 %v1841
        %v2042 = vpop.f32.mrf.mxu0
        %v2043 = vadd.f32 0.0, %v2042
        %2044 = vmatmul.f32.gmra.mxu0 %v1844
        %v2045 = vpop.f32.mrf.mxu0
        %v2046 = vadd.f32 0.0, %v2045
        %2047 = vmatmul.f32.gmra.mxu0 %v1847
        %v2048 = vpop.f32.mrf.mxu0
        %v2049 = vadd.f32 0.0, %v2048
        %2050 = vmatmul.f32.gmra.mxu0 %v1850
        %v2051 = vpop.f32.mrf.mxu0
        %v2052 = vadd.f32 0.0, %v2051
        %2053 = vmatmul.f32.gmra.mxu0 %v1853
        %v2054 = vpop.f32.mrf.mxu0
        %v2055 = vadd.f32 0.0, %v2054
        %2056 = vmatmul.f32.gmra.mxu0 %v1856
        %v2057 = vpop.f32.mrf.mxu0
        %v2058 = vadd.f32 0.0, %v2057
        %2059 = vmatmul.f32.gmra.mxu0 %v1859
        %v2060 = vpop.f32.mrf.mxu0
        %v2061 = vadd.f32 0.0, %v2060
        %2062 = vmatmul.f32.gmra.mxu0 %v1862
        %v2063 = vpop.f32.mrf.mxu0
        %v2064 = vadd.f32 0.0, %v2063
        %2065 = vmatmul.f32.gmra.mxu0 %v1865
        %v2066 = vpop.f32.mrf.mxu0
        %v2067 = vadd.f32 0.0, %v2066
        %2068 = vmatmul.f32.gmra.mxu0 %v1868
        %v2069 = vpop.f32.mrf.mxu0
        %v2070 = vadd.f32 0.0, %v2069
        %2071 = vmatmul.f32.gmra.mxu0 %v1871
        %v2072 = vpop.f32.mrf.mxu0
        %v2073 = vadd.f32 0.0, %v2072
        %2074 = vmatmul.f32.gmra.mxu0 %v1874
        %v2075 = vpop.f32.mrf.mxu0
        %v2076 = vadd.f32 0.0, %v2075
        %2077 = vmatmul.f32.gmra.mxu0 %v1877
        %v2078 = vpop.f32.mrf.mxu0
        %v2079 = vadd.f32 0.0, %v2078
        %2080 = vmatmul.f32.gmra.mxu0 %v1880
        %v2081 = vpop.f32.mrf.mxu0
        %v2082 = vadd.f32 0.0, %v2081
        %2083 = vdwg.mxu0
        %v2084 = vadd.f32 %v1689, %v1900
        %v2085 = vadd.f32 %v1690, %v2001
        %v2086 = vadd.f32 %v1691, %v1903
        %v2087 = vadd.f32 %v1692, %v2004
        %v2088 = vadd.f32 %v1693, %v1906
        %v2089 = vadd.f32 %v1694, %v2007
        %v2090 = vadd.f32 %v1695, %v1909
        %v2091 = vadd.f32 %v1696, %v2010
        %v2092 = vadd.f32 %v1697, %v1912
        %v2093 = vadd.f32 %v1698, %v2013
        %v2094 = vadd.f32 %v1699, %v1915
        %v2095 = vadd.f32 %v1700, %v2016
        %v2096 = vadd.f32 %v1701, %v1918
        %v2097 = vadd.f32 %v1702, %v2019
        %v2098 = vadd.f32 %v1703, %v1921
        %v2099 = vadd.f32 %v1704, %v2022
        %v2100 = vadd.f32 %v1705, %v1924
        %v2101 = vadd.f32 %v1706, %v2025
        %v2102 = vadd.f32 %v1707, %v1927
        %v2103 = vadd.f32 %v1708, %v2028
        %v2104 = vadd.f32 %v1709, %v1930
        %v2105 = vadd.f32 %v1710, %v2031
        %v2106 = vadd.f32 %v1711, %v1933
        %v2107 = vadd.f32 %v1712, %v2034
        %v2108 = vadd.f32 %v1713, %v1936
        %v2109 = vadd.f32 %v1714, %v2037
        %v2110 = vadd.f32 %v1715, %v1939
        %v2111 = vadd.f32 %v1716, %v2040
        %v2112 = vadd.f32 %v1717, %v1942
        %v2113 = vadd.f32 %v1718, %v2043
        %v2114 = vadd.f32 %v1719, %v1945
        %v2115 = vadd.f32 %v1720, %v2046
        %v2116 = vadd.f32 %v1721, %v1948
        %v2117 = vadd.f32 %v1722, %v2049
        %v2118 = vadd.f32 %v1723, %v1951
        %v2119 = vadd.f32 %v1724, %v2052
        %v2120 = vadd.f32 %v1725, %v1954
        %v2121 = vadd.f32 %v1726, %v2055
        %v2122 = vadd.f32 %v1727, %v1957
        %v2123 = vadd.f32 %v1728, %v2058
        %v2124 = vadd.f32 %v1729, %v1960
        %v2125 = vadd.f32 %v1730, %v2061
        %v2126 = vadd.f32 %v1731, %v1963
        %v2127 = vadd.f32 %v1732, %v2064
        %v2128 = vadd.f32 %v1733, %v1966
        %v2129 = vadd.f32 %v1734, %v2067
        %v2130 = vadd.f32 %v1735, %v1969
        %v2131 = vadd.f32 %v1736, %v2070
        %v2132 = vadd.f32 %v1737, %v1972
        %v2133 = vadd.f32 %v1738, %v2073
        %v2134 = vadd.f32 %v1739, %v1975
        %v2135 = vadd.f32 %v1740, %v2076
        %v2136 = vadd.f32 %v1741, %v1978
        %v2137 = vadd.f32 %v1742, %v2079
        %v2138 = vadd.f32 %v1743, %v1981
        %v2139 = vadd.f32 %v1744, %v2082
        %v2140 = vld [vmem:[%s2] sm:$0x1]
        %v2142 = vperm.slane %v2140, 0
        %v2144 = vmax.f32 %v2084, %v2086
        %v2145 = vmax.f32 %v2085, %v2087
        %v2146 = vmax.f32 %v2144, %v2145
        %v2147 = vadd.f32 %v2146, %v2142
        %v2148 = vmax.f32 %v2147, 0.0
        %2149 = vst [vmem:[#allocation2] sm:$0xff] %v2148
        %v2150 = vmax.f32 %v2088, %v2090
        %v2151 = vmax.f32 %v2089, %v2091
        %v2152 = vmax.f32 %v2150, %v2151
        %v2153 = vadd.f32 %v2152, %v2142
        %v2154 = vmax.f32 %v2153, 0.0
        %2155 = vst [vmem:[#allocation2 + $0x8] sm:$0xff] %v2154
        %v2156 = vmax.f32 %v2092, %v2094
        %v2157 = vmax.f32 %v2093, %v2095
        %v2158 = vmax.f32 %v2156, %v2157
        %v2159 = vadd.f32 %v2158, %v2142
        %v2160 = vmax.f32 %v2159, 0.0
        %2161 = vst [vmem:[#allocation2 + $0x10] sm:$0xff] %v2160
        %v2162 = vmax.f32 %v2096, %v2098
        %v2163 = vmax.f32 %v2097, %v2099
        %v2164 = vmax.f32 %v2162, %v2163
        %v2165 = vadd.f32 %v2164, %v2142
        %v2166 = vmax.f32 %v2165, 0.0
        %2167 = vst [vmem:[#allocation2 + $0x18] sm:$0xff] %v2166
        %v2168 = vmax.f32 %v2100, %v2102
        %v2169 = vmax.f32 %v2101, %v2103
        %v2170 = vmax.f32 %v2168, %v2169
        %v2171 = vadd.f32 %v2170, %v2142
        %v2172 = vmax.f32 %v2171, 0.0
        %2173 = vst [vmem:[#allocation2 + $0x20] sm:$0xff] %v2172
        %v2174 = vmax.f32 %v2104, %v2106
        %v2175 = vmax.f32 %v2105, %v2107
        %v2176 = vmax.f32 %v2174, %v2175
        %v2177 = vadd.f32 %v2176, %v2142
        %v2178 = vmax.f32 %v2177, 0.0
        %2179 = vst [vmem:[#allocation2 + $0x28] sm:$0xff] %v2178
        %v2180 = vmax.f32 %v2108, %v2110
        %v2181 = vmax.f32 %v2109, %v2111
        %v2182 = vmax.f32 %v2180, %v2181
        %v2183 = vadd.f32 %v2182, %v2142
        %v2184 = vmax.f32 %v2183, 0.0
        %2185 = vst [vmem:[#allocation2 + $0x30] sm:$0xff] %v2184
        %v2186 = vmax.f32 %v2112, %v2114
        %v2187 = vmax.f32 %v2113, %v2115
        %v2188 = vmax.f32 %v2186, %v2187
        %v2189 = vadd.f32 %v2188, %v2142
        %v2190 = vmax.f32 %v2189, 0.0
        %2191 = vst [vmem:[#allocation2 + $0x38] sm:$0xff] %v2190
        %v2192 = vmax.f32 %v2116, %v2118
        %v2193 = vmax.f32 %v2117, %v2119
        %v2194 = vmax.f32 %v2192, %v2193
        %v2195 = vadd.f32 %v2194, %v2142
        %v2196 = vmax.f32 %v2195, 0.0
        %2197 = vst [vmem:[#allocation2 + $0x40] sm:$0xff] %v2196
        %v2198 = vmax.f32 %v2120, %v2122
        %v2199 = vmax.f32 %v2121, %v2123
        %v2200 = vmax.f32 %v2198, %v2199
        %v2201 = vadd.f32 %v2200, %v2142
        %v2202 = vmax.f32 %v2201, 0.0
        %2203 = vst [vmem:[#allocation2 + $0x48] sm:$0xff] %v2202
        %v2204 = vmax.f32 %v2124, %v2126
        %v2205 = vmax.f32 %v2125, %v2127
        %v2206 = vmax.f32 %v2204, %v2205
        %v2207 = vadd.f32 %v2206, %v2142
        %v2208 = vmax.f32 %v2207, 0.0
        %2209 = vst [vmem:[#allocation2 + $0x50] sm:$0xff] %v2208
        %v2210 = vmax.f32 %v2128, %v2130
        %v2211 = vmax.f32 %v2129, %v2131
        %v2212 = vmax.f32 %v2210, %v2211
        %v2213 = vadd.f32 %v2212, %v2142
        %v2214 = vmax.f32 %v2213, 0.0
        %2215 = vst [vmem:[#allocation2 + $0x58] sm:$0xff] %v2214
        %v2216 = vmax.f32 %v2132, %v2134
        %v2217 = vmax.f32 %v2133, %v2135
        %v2218 = vmax.f32 %v2216, %v2217
        %v2219 = vadd.f32 %v2218, %v2142
        %v2220 = vmax.f32 %v2219, 0.0
        %2221 = vst [vmem:[#allocation2 + $0x60] sm:$0xff] %v2220
        %v2222 = vmax.f32 %v2136, %v2138
        %v2223 = vmax.f32 %v2137, %v2139
        %v2224 = vmax.f32 %v2222, %v2223
        %v2225 = vadd.f32 %v2224, %v2142
        %v2226 = vmax.f32 %v2225, 0.0
        %2227 = vst [vmem:[#allocation2 + $0x68] sm:$0xff] %v2226
        %v2228 = vld [vmem:[#allocation2] sm:$0xff]
        %v2229 = vld [vmem:[#allocation2 + $0x8] sm:$0xff]
        %v2230 = vld [vmem:[#allocation2 + $0x10] sm:$0xff]
        %v2231 = vld [vmem:[#allocation2 + $0x18] sm:$0xff]
        %v2232 = vld [vmem:[#allocation2 + $0x20] sm:$0xff]
        %v2233 = vld [vmem:[#allocation2 + $0x28] sm:$0xff]
        %v2234 = vld [vmem:[#allocation2 + $0x30] sm:$0xff]
        %v2235 = vld [vmem:[#allocation2 + $0x38] sm:$0xff]
        %v2236 = vld [vmem:[#allocation2 + $0x40] sm:$0xff]
        %v2237 = vld [vmem:[#allocation2 + $0x48] sm:$0xff]
        %v2238 = vld [vmem:[%s3] sm:$0xff]
        %v2239 = vld [vmem:[%s3 + $0x8] sm:$0xff]
        %v2240 = vld [vmem:[%s3 + $0x10] sm:$0xff]
        %v2241 = vld [vmem:[%s3 + $0x18] sm:$0xff]
        %v2242 = vld [vmem:[%s3 + $0x20] sm:$0xff]
        %v2243 = vld [vmem:[%s3 + $0x28] sm:$0xff]
        %v2244 = vld [vmem:[%s3 + $0x30] sm:$0xff]
        %v2245 = vld [vmem:[%s3 + $0x38] sm:$0xff]
        %v2246 = vld [vmem:[%s3 + $0x40] sm:$0xff]
        %v2247 = vld [vmem:[%s3 + $0x48] sm:$0xff]
        %v2248 = vld [vmem:[%s3 + $0x50] sm:$0xff]
        %v2249 = vld [vmem:[%s3 + $0x58] sm:$0xff]
        %v2250 = vld [vmem:[%s3 + $0x60] sm:$0xff]
        %v2251 = vld [vmem:[%s3 + $0x68] sm:$0xff]
        %v2252 = vld [vmem:[%s3 + $0x70] sm:$0xff]
        %v2253 = vld [vmem:[%s3 + $0x78] sm:$0xff]
        %v2254 = vld [vmem:[%s3 + $0x80] sm:$0xff]
        %v2255 = vld [vmem:[%s3 + $0x88] sm:$0xff]
        %v2256 = vld [vmem:[%s3 + $0x90] sm:$0xff]
        %v2257 = vld [vmem:[%s3 + $0x98] sm:$0xff]
        %v2258 = vld [vmem:[%s3 + $0xa0] sm:$0xff]
        %v2259 = vld [vmem:[%s3 + $0xa8] sm:$0xff]
        %v2260 = vld [vmem:[%s3 + $0xb0] sm:$0xff]
        %v2261 = vld [vmem:[%s3 + $0xb8] sm:$0xff]
        %v2262 = vld [vmem:[%s3 + $0xc0] sm:$0xff]
        %v2263 = vld [vmem:[%s3 + $0xc8] sm:$0xff]
        %v2264 = vld [vmem:[%s3 + $0xd0] sm:$0xff]
        %v2265 = vld [vmem:[%s3 + $0xd8] sm:$0xff]
        %v2266 = vld [vmem:[%s3 + $0xe0] sm:$0xff]
        %v2267 = vld [vmem:[%s3 + $0xe8] sm:$0xff]
        %v2268 = vld [vmem:[%s3 + $0xf0] sm:$0xff]
        %v2269 = vld [vmem:[%s3 + $0xf8] sm:$0xff]
        %v2270 = vld [vmem:[#allocation2 + $0x50] sm:$0xff]
        %s2271 = scalar_lea.vmem %s3, 256
        %v2272 = vld [vmem:[%s2271] sm:$0xff]
        %v2273 = vld [vmem:[%s2271 + $0x8] sm:$0xff]
        %v2274 = vld [vmem:[%s2271 + $0x10] sm:$0xff]
        %v2275 = vld [vmem:[%s2271 + $0x18] sm:$0xff]
        %v2276 = vld [vmem:[%s2271 + $0x20] sm:$0xff]
        %v2277 = vld [vmem:[%s2271 + $0x28] sm:$0xff]
        %v2278 = vld [vmem:[%s2271 + $0x30] sm:$0xff]
        %v2279 = vld [vmem:[%s2271 + $0x38] sm:$0xff]
        %v2280 = vld [vmem:[%s2271 + $0x40] sm:$0xff]
        %v2281 = vld [vmem:[%s2271 + $0x48] sm:$0xff]
        %v2282 = vld [vmem:[%s2271 + $0x50] sm:$0xff]
        %v2283 = vld [vmem:[%s2271 + $0x58] sm:$0xff]
        %v2284 = vld [vmem:[%s2271 + $0x60] sm:$0xff]
        %v2285 = vld [vmem:[%s2271 + $0x68] sm:$0xff]
        %v2286 = vld [vmem:[%s2271 + $0x70] sm:$0xff]
        %v2287 = vld [vmem:[%s2271 + $0x78] sm:$0xff]
        %v2288 = vld [vmem:[%s2271 + $0x80] sm:$0xff]
        %v2289 = vld [vmem:[%s2271 + $0x88] sm:$0xff]
        %v2290 = vld [vmem:[%s2271 + $0x90] sm:$0xff]
        %v2291 = vld [vmem:[%s2271 + $0x98] sm:$0xff]
        %v2292 = vld [vmem:[%s2271 + $0xa0] sm:$0xff]
        %v2293 = vld [vmem:[%s2271 + $0xa8] sm:$0xff]
        %v2294 = vld [vmem:[%s2271 + $0xb0] sm:$0xff]
        %v2295 = vld [vmem:[%s2271 + $0xb8] sm:$0xff]
        %v2296 = vld [vmem:[%s2271 + $0xc0] sm:$0xff]
        %v2297 = vld [vmem:[%s2271 + $0xc8] sm:$0xff]
        %v2298 = vld [vmem:[%s2271 + $0xd0] sm:$0xff]
        %v2299 = vld [vmem:[%s2271 + $0xd8] sm:$0xff]
        %v2300 = vld [vmem:[%s2271 + $0xe0] sm:$0xff]
        %v2301 = vld [vmem:[%s2271 + $0xe8] sm:$0xff]
        %v2302 = vld [vmem:[%s2271 + $0xf0] sm:$0xff]
        %v2303 = vld [vmem:[%s2271 + $0xf8] sm:$0xff]
        %2304 = vmatpush.msra.mxu0 %v2302
        %2305 = vmatpush.msra.mxu0 %v2300
        %2306 = vmatpush.msra.mxu0 %v2298
        %2307 = vmatpush.msra.mxu0 %v2296
        %2308 = vmatpush.msra.mxu0 %v2294
        %2309 = vmatpush.msra.mxu0 %v2292
        %2310 = vmatpush.msra.mxu0 %v2290
        %2311 = vmatpush.msra.mxu0 %v2288
        %2312 = vmatpush.msra.mxu0 %v2286
        %2313 = vmatpush.msra.mxu0 %v2284
        %2314 = vmatpush.msra.mxu0 %v2282
        %2315 = vmatpush.msra.mxu0 %v2280
        %2316 = vmatpush.msra.mxu0 %v2278
        %2317 = vmatpush.msra.mxu0 %v2276
        %2318 = vmatpush.msra.mxu0 %v2274
        %2319 = vmatpush.msra.mxu0 %v2272
        %2320 = vmatmul.f32.gmra.mxu0 %v2229
        %v2321 = vpop.f32.mrf.mxu0
        %v2322 = vadd.f32 0.0, %v2321
        %2323 = vmatmul.f32.gmra.mxu0 %v2230
        %v2324 = vpop.f32.mrf.mxu0
        %v2325 = vadd.f32 0.0, %v2324
        %2326 = vmatmul.f32.gmra.mxu0 %v2231
        %v2327 = vpop.f32.mrf.mxu0
        %v2328 = vadd.f32 0.0, %v2327
        %2329 = vmatmul.f32.gmra.mxu0 %v2232
        %v2330 = vpop.f32.mrf.mxu0
        %v2331 = vadd.f32 0.0, %v2330
        %2332 = vmatmul.f32.gmra.mxu0 %v2233
        %v2333 = vpop.f32.mrf.mxu0
        %v2334 = vadd.f32 0.0, %v2333
        %2335 = vmatmul.f32.gmra.mxu0 %v2234
        %v2336 = vpop.f32.mrf.mxu0
        %v2337 = vadd.f32 0.0, %v2336
        %2338 = vmatmul.f32.gmra.mxu0 %v2235
        %v2339 = vpop.f32.mrf.mxu0
        %v2340 = vadd.f32 0.0, %v2339
        %2341 = vmatmul.f32.gmra.mxu0 %v2236
        %v2342 = vpop.f32.mrf.mxu0
        %v2343 = vadd.f32 0.0, %v2342
        %2344 = vmatmul.f32.gmra.mxu0 %v2237
        %v2345 = vpop.f32.mrf.mxu0
        %v2346 = vadd.f32 0.0, %v2345
        %2347 = vmatmul.f32.gmra.mxu0 %v2270
        %v2348 = vpop.f32.mrf.mxu0
        %v2349 = vadd.f32 0.0, %v2348
        %2350 = vdwg.mxu0
        %2351 = vmatpush.msra.mxu0 %v2303
        %2352 = vmatpush.msra.mxu0 %v2301
        %2353 = vmatpush.msra.mxu0 %v2299
        %2354 = vmatpush.msra.mxu0 %v2297
        %2355 = vmatpush.msra.mxu0 %v2295
        %2356 = vmatpush.msra.mxu0 %v2293
        %2357 = vmatpush.msra.mxu0 %v2291
        %2358 = vmatpush.msra.mxu0 %v2289
        %2359 = vmatpush.msra.mxu0 %v2287
        %2360 = vmatpush.msra.mxu0 %v2285
        %2361 = vmatpush.msra.mxu0 %v2283
        %2362 = vmatpush.msra.mxu0 %v2281
        %2363 = vmatpush.msra.mxu0 %v2279
        %2364 = vmatpush.msra.mxu0 %v2277
        %2365 = vmatpush.msra.mxu0 %v2275
        %2366 = vmatpush.msra.mxu0 %v2273
        %2367 = vmatmul.f32.gmra.mxu0 %v2229
        %v2368 = vpop.f32.mrf.mxu0
        %v2369 = vadd.f32 0.0, %v2368
        %2370 = vmatmul.f32.gmra.mxu0 %v2230
        %v2371 = vpop.f32.mrf.mxu0
        %v2372 = vadd.f32 0.0, %v2371
        %2373 = vmatmul.f32.gmra.mxu0 %v2231
        %v2374 = vpop.f32.mrf.mxu0
        %v2375 = vadd.f32 0.0, %v2374
        %2376 = vmatmul.f32.gmra.mxu0 %v2232
        %v2377 = vpop.f32.mrf.mxu0
        %v2378 = vadd.f32 0.0, %v2377
        %2379 = vmatmul.f32.gmra.mxu0 %v2233
        %v2380 = vpop.f32.mrf.mxu0
        %v2381 = vadd.f32 0.0, %v2380
        %2382 = vmatmul.f32.gmra.mxu0 %v2234
        %v2383 = vpop.f32.mrf.mxu0
        %v2384 = vadd.f32 0.0, %v2383
        %2385 = vmatmul.f32.gmra.mxu0 %v2235
        %v2386 = vpop.f32.mrf.mxu0
        %v2387 = vadd.f32 0.0, %v2386
        %2388 = vmatmul.f32.gmra.mxu0 %v2236
        %v2389 = vpop.f32.mrf.mxu0
        %v2390 = vadd.f32 0.0, %v2389
        %2391 = vmatmul.f32.gmra.mxu0 %v2237
        %v2392 = vpop.f32.mrf.mxu0
        %v2393 = vadd.f32 0.0, %v2392
        %2394 = vmatmul.f32.gmra.mxu0 %v2270
        %v2395 = vpop.f32.mrf.mxu0
        %v2396 = vadd.f32 0.0, %v2395
        %2397 = vdwg.mxu0
        %2398 = vmatpush.msra.mxu0 %v2268
        %2399 = vmatpush.msra.mxu0 %v2266
        %2400 = vmatpush.msra.mxu0 %v2264
        %2401 = vmatpush.msra.mxu0 %v2262
        %2402 = vmatpush.msra.mxu0 %v2260
        %2403 = vmatpush.msra.mxu0 %v2258
        %2404 = vmatpush.msra.mxu0 %v2256
        %2405 = vmatpush.msra.mxu0 %v2254
        %2406 = vmatpush.msra.mxu0 %v2252
        %2407 = vmatpush.msra.mxu0 %v2250
        %2408 = vmatpush.msra.mxu0 %v2248
        %2409 = vmatpush.msra.mxu0 %v2246
        %2410 = vmatpush.msra.mxu0 %v2244
        %2411 = vmatpush.msra.mxu0 %v2242
        %2412 = vmatpush.msra.mxu0 %v2240
        %2413 = vmatpush.msra.mxu0 %v2238
        %2414 = vmatmul.f32.gmra.mxu0 %v2228
        %v2415 = vpop.f32.mrf.mxu0
        %v2416 = vadd.f32 %v2322, %v2415
        %2417 = vmatmul.f32.gmra.mxu0 %v2229
        %v2418 = vpop.f32.mrf.mxu0
        %v2419 = vadd.f32 %v2325, %v2418
        %2420 = vmatmul.f32.gmra.mxu0 %v2230
        %v2421 = vpop.f32.mrf.mxu0
        %v2422 = vadd.f32 %v2328, %v2421
        %2423 = vmatmul.f32.gmra.mxu0 %v2231
        %v2424 = vpop.f32.mrf.mxu0
        %v2425 = vadd.f32 %v2331, %v2424
        %2426 = vmatmul.f32.gmra.mxu0 %v2232
        %v2427 = vpop.f32.mrf.mxu0
        %v2428 = vadd.f32 %v2334, %v2427
        %2429 = vmatmul.f32.gmra.mxu0 %v2233
        %v2430 = vpop.f32.mrf.mxu0
        %v2431 = vadd.f32 %v2337, %v2430
        %2432 = vmatmul.f32.gmra.mxu0 %v2234
        %v2433 = vpop.f32.mrf.mxu0
        %v2434 = vadd.f32 %v2340, %v2433
        %2435 = vmatmul.f32.gmra.mxu0 %v2235
        %v2436 = vpop.f32.mrf.mxu0
        %v2437 = vadd.f32 %v2343, %v2436
        %2438 = vmatmul.f32.gmra.mxu0 %v2236
        %v2439 = vpop.f32.mrf.mxu0
        %v2440 = vadd.f32 %v2346, %v2439
        %2441 = vmatmul.f32.gmra.mxu0 %v2237
        %v2442 = vpop.f32.mrf.mxu0
        %v2443 = vadd.f32 %v2349, %v2442
        %2444 = vdwg.mxu0
        %2445 = vmatpush.msra.mxu0 %v2269
        %2446 = vmatpush.msra.mxu0 %v2267
        %2447 = vmatpush.msra.mxu0 %v2265
        %2448 = vmatpush.msra.mxu0 %v2263
        %2449 = vmatpush.msra.mxu0 %v2261
        %2450 = vmatpush.msra.mxu0 %v2259
        %2451 = vmatpush.msra.mxu0 %v2257
        %2452 = vmatpush.msra.mxu0 %v2255
        %2453 = vmatpush.msra.mxu0 %v2253
        %2454 = vmatpush.msra.mxu0 %v2251
        %2455 = vmatpush.msra.mxu0 %v2249
        %2456 = vmatpush.msra.mxu0 %v2247
        %2457 = vmatpush.msra.mxu0 %v2245
        %2458 = vmatpush.msra.mxu0 %v2243
        %2459 = vmatpush.msra.mxu0 %v2241
        %2460 = vmatpush.msra.mxu0 %v2239
        %2461 = vmatmul.f32.gmra.mxu0 %v2228
        %v2462 = vpop.f32.mrf.mxu0
        %v2463 = vadd.f32 %v2369, %v2462
        %2464 = vmatmul.f32.gmra.mxu0 %v2229
        %v2465 = vpop.f32.mrf.mxu0
        %v2466 = vadd.f32 %v2372, %v2465
        %2467 = vmatmul.f32.gmra.mxu0 %v2230
        %v2468 = vpop.f32.mrf.mxu0
        %v2469 = vadd.f32 %v2375, %v2468
        %2470 = vmatmul.f32.gmra.mxu0 %v2231
        %v2471 = vpop.f32.mrf.mxu0
        %v2472 = vadd.f32 %v2378, %v2471
        %2473 = vmatmul.f32.gmra.mxu0 %v2232
        %v2474 = vpop.f32.mrf.mxu0
        %v2475 = vadd.f32 %v2381, %v2474
        %2476 = vmatmul.f32.gmra.mxu0 %v2233
        %v2477 = vpop.f32.mrf.mxu0
        %v2478 = vadd.f32 %v2384, %v2477
        %2479 = vmatmul.f32.gmra.mxu0 %v2234
        %v2480 = vpop.f32.mrf.mxu0
        %v2481 = vadd.f32 %v2387, %v2480
        %2482 = vmatmul.f32.gmra.mxu0 %v2235
        %v2483 = vpop.f32.mrf.mxu0
        %v2484 = vadd.f32 %v2390, %v2483
        %2485 = vmatmul.f32.gmra.mxu0 %v2236
        %v2486 = vpop.f32.mrf.mxu0
        %v2487 = vadd.f32 %v2393, %v2486
        %2488 = vmatmul.f32.gmra.mxu0 %v2237
        %v2489 = vpop.f32.mrf.mxu0
        %v2490 = vadd.f32 %v2396, %v2489
        %2491 = vdwg.mxu0
        %v2492 = vld [vmem:[#allocation2 + $0x10] sm:$0xff]
        %v2493 = vld [vmem:[#allocation2 + $0x18] sm:$0xff]
        %v2494 = vld [vmem:[#allocation2 + $0x20] sm:$0xff]
        %v2495 = vld [vmem:[#allocation2 + $0x28] sm:$0xff]
        %v2496 = vld [vmem:[#allocation2 + $0x30] sm:$0xff]
        %v2497 = vld [vmem:[#allocation2 + $0x38] sm:$0xff]
        %v2498 = vld [vmem:[#allocation2 + $0x40] sm:$0xff]
        %v2499 = vld [vmem:[#allocation2 + $0x48] sm:$0xff]
        %v2500 = vld [vmem:[#allocation2 + $0x50] sm:$0xff]
        %v2501 = vld [vmem:[#allocation2 + $0x58] sm:$0xff]
        %s2502 = scalar_lea.vmem %s3, 512
        %v2503 = vld [vmem:[%s2502] sm:$0xff]
        %v2504 = vld [vmem:[%s2502 + $0x8] sm:$0xff]
        %v2505 = vld [vmem:[%s2502 + $0x10] sm:$0xff]
        %v2506 = vld [vmem:[%s2502 + $0x18] sm:$0xff]
        %v2507 = vld [vmem:[%s2502 + $0x20] sm:$0xff]
        %v2508 = vld [vmem:[%s2502 + $0x28] sm:$0xff]
        %v2509 = vld [vmem:[%s2502 + $0x30] sm:$0xff]
        %v2510 = vld [vmem:[%s2502 + $0x38] sm:$0xff]
        %v2511 = vld [vmem:[%s2502 + $0x40] sm:$0xff]
        %v2512 = vld [vmem:[%s2502 + $0x48] sm:$0xff]
        %v2513 = vld [vmem:[%s2502 + $0x50] sm:$0xff]
        %v2514 = vld [vmem:[%s2502 + $0x58] sm:$0xff]
        %v2515 = vld [vmem:[%s2502 + $0x60] sm:$0xff]
        %v2516 = vld [vmem:[%s2502 + $0x68] sm:$0xff]
        %v2517 = vld [vmem:[%s2502 + $0x70] sm:$0xff]
        %v2518 = vld [vmem:[%s2502 + $0x78] sm:$0xff]
        %v2519 = vld [vmem:[%s2502 + $0x80] sm:$0xff]
        %v2520 = vld [vmem:[%s2502 + $0x88] sm:$0xff]
        %v2521 = vld [vmem:[%s2502 + $0x90] sm:$0xff]
        %v2522 = vld [vmem:[%s2502 + $0x98] sm:$0xff]
        %v2523 = vld [vmem:[%s2502 + $0xa0] sm:$0xff]
        %v2524 = vld [vmem:[%s2502 + $0xa8] sm:$0xff]
        %v2525 = vld [vmem:[%s2502 + $0xb0] sm:$0xff]
        %v2526 = vld [vmem:[%s2502 + $0xb8] sm:$0xff]
        %v2527 = vld [vmem:[%s2502 + $0xc0] sm:$0xff]
        %v2528 = vld [vmem:[%s2502 + $0xc8] sm:$0xff]
        %v2529 = vld [vmem:[%s2502 + $0xd0] sm:$0xff]
        %v2530 = vld [vmem:[%s2502 + $0xd8] sm:$0xff]
        %v2531 = vld [vmem:[%s2502 + $0xe0] sm:$0xff]
        %v2532 = vld [vmem:[%s2502 + $0xe8] sm:$0xff]
        %v2533 = vld [vmem:[%s2502 + $0xf0] sm:$0xff]
        %v2534 = vld [vmem:[%s2502 + $0xf8] sm:$0xff]
        %2535 = vmatpush.msra.mxu0 %v2533
        %2536 = vmatpush.msra.mxu0 %v2531
        %2537 = vmatpush.msra.mxu0 %v2529
        %2538 = vmatpush.msra.mxu0 %v2527
        %2539 = vmatpush.msra.mxu0 %v2525
        %2540 = vmatpush.msra.mxu0 %v2523
        %2541 = vmatpush.msra.mxu0 %v2521
        %2542 = vmatpush.msra.mxu0 %v2519
        %2543 = vmatpush.msra.mxu0 %v2517
        %2544 = vmatpush.msra.mxu0 %v2515
        %2545 = vmatpush.msra.mxu0 %v2513
        %2546 = vmatpush.msra.mxu0 %v2511
        %2547 = vmatpush.msra.mxu0 %v2509
        %2548 = vmatpush.msra.mxu0 %v2507
        %2549 = vmatpush.msra.mxu0 %v2505
        %2550 = vmatpush.msra.mxu0 %v2503
        %2551 = vmatmul.f32.gmra.mxu0 %v2492
        %v2552 = vpop.f32.mrf.mxu0
        %v2553 = vadd.f32 0.0, %v2552
        %2554 = vmatmul.f32.gmra.mxu0 %v2493
        %v2555 = vpop.f32.mrf.mxu0
        %v2556 = vadd.f32 0.0, %v2555
        %2557 = vmatmul.f32.gmra.mxu0 %v2494
        %v2558 = vpop.f32.mrf.mxu0
        %v2559 = vadd.f32 0.0, %v2558
        %2560 = vmatmul.f32.gmra.mxu0 %v2495
        %v2561 = vpop.f32.mrf.mxu0
        %v2562 = vadd.f32 0.0, %v2561
        %2563 = vmatmul.f32.gmra.mxu0 %v2496
        %v2564 = vpop.f32.mrf.mxu0
        %v2565 = vadd.f32 0.0, %v2564
        %2566 = vmatmul.f32.gmra.mxu0 %v2497
        %v2567 = vpop.f32.mrf.mxu0
        %v2568 = vadd.f32 0.0, %v2567
        %2569 = vmatmul.f32.gmra.mxu0 %v2498
        %v2570 = vpop.f32.mrf.mxu0
        %v2571 = vadd.f32 0.0, %v2570
        %2572 = vmatmul.f32.gmra.mxu0 %v2499
        %v2573 = vpop.f32.mrf.mxu0
        %v2574 = vadd.f32 0.0, %v2573
        %2575 = vmatmul.f32.gmra.mxu0 %v2500
        %v2576 = vpop.f32.mrf.mxu0
        %v2577 = vadd.f32 0.0, %v2576
        %2578 = vmatmul.f32.gmra.mxu0 %v2501
        %v2579 = vpop.f32.mrf.mxu0
        %v2580 = vadd.f32 0.0, %v2579
        %2581 = vdwg.mxu0
        %2582 = vmatpush.msra.mxu0 %v2534
        %2583 = vmatpush.msra.mxu0 %v2532
        %2584 = vmatpush.msra.mxu0 %v2530
        %2585 = vmatpush.msra.mxu0 %v2528
        %2586 = vmatpush.msra.mxu0 %v2526
        %2587 = vmatpush.msra.mxu0 %v2524
        %2588 = vmatpush.msra.mxu0 %v2522
        %2589 = vmatpush.msra.mxu0 %v2520
        %2590 = vmatpush.msra.mxu0 %v2518
        %2591 = vmatpush.msra.mxu0 %v2516
        %2592 = vmatpush.msra.mxu0 %v2514
        %2593 = vmatpush.msra.mxu0 %v2512
        %2594 = vmatpush.msra.mxu0 %v2510
        %2595 = vmatpush.msra.mxu0 %v2508
        %2596 = vmatpush.msra.mxu0 %v2506
        %2597 = vmatpush.msra.mxu0 %v2504
        %2598 = vmatmul.f32.gmra.mxu0 %v2492
        %v2599 = vpop.f32.mrf.mxu0
        %v2600 = vadd.f32 0.0, %v2599
        %2601 = vmatmul.f32.gmra.mxu0 %v2493
        %v2602 = vpop.f32.mrf.mxu0
        %v2603 = vadd.f32 0.0, %v2602
        %2604 = vmatmul.f32.gmra.mxu0 %v2494
        %v2605 = vpop.f32.mrf.mxu0
        %v2606 = vadd.f32 0.0, %v2605
        %2607 = vmatmul.f32.gmra.mxu0 %v2495
        %v2608 = vpop.f32.mrf.mxu0
        %v2609 = vadd.f32 0.0, %v2608
        %2610 = vmatmul.f32.gmra.mxu0 %v2496
        %v2611 = vpop.f32.mrf.mxu0
        %v2612 = vadd.f32 0.0, %v2611
        %2613 = vmatmul.f32.gmra.mxu0 %v2497
        %v2614 = vpop.f32.mrf.mxu0
        %v2615 = vadd.f32 0.0, %v2614
        %2616 = vmatmul.f32.gmra.mxu0 %v2498
        %v2617 = vpop.f32.mrf.mxu0
        %v2618 = vadd.f32 0.0, %v2617
        %2619 = vmatmul.f32.gmra.mxu0 %v2499
        %v2620 = vpop.f32.mrf.mxu0
        %v2621 = vadd.f32 0.0, %v2620
        %2622 = vmatmul.f32.gmra.mxu0 %v2500
        %v2623 = vpop.f32.mrf.mxu0
        %v2624 = vadd.f32 0.0, %v2623
        %2625 = vmatmul.f32.gmra.mxu0 %v2501
        %v2626 = vpop.f32.mrf.mxu0
        %v2627 = vadd.f32 0.0, %v2626
        %2628 = vdwg.mxu0
        %v2629 = vadd.f32 %v2416, %v2553
        %v2630 = vadd.f32 %v2463, %v2600
        %v2631 = vadd.f32 %v2419, %v2556
        %v2632 = vadd.f32 %v2466, %v2603
        %v2633 = vadd.f32 %v2422, %v2559
        %v2634 = vadd.f32 %v2469, %v2606
        %v2635 = vadd.f32 %v2425, %v2562
        %v2636 = vadd.f32 %v2472, %v2609
        %v2637 = vadd.f32 %v2428, %v2565
        %v2638 = vadd.f32 %v2475, %v2612
        %v2639 = vadd.f32 %v2431, %v2568
        %v2640 = vadd.f32 %v2478, %v2615
        %v2641 = vadd.f32 %v2434, %v2571
        %v2642 = vadd.f32 %v2481, %v2618
        %v2643 = vadd.f32 %v2437, %v2574
        %v2644 = vadd.f32 %v2484, %v2621
        %v2645 = vadd.f32 %v2440, %v2577
        %v2646 = vadd.f32 %v2487, %v2624
        %v2647 = vadd.f32 %v2443, %v2580
        %v2648 = vadd.f32 %v2490, %v2627
        %v2649 = vld [vmem:[#allocation2 + $0x18] sm:$0xff]
        %v2650 = vld [vmem:[#allocation2 + $0x20] sm:$0xff]
        %v2651 = vld [vmem:[#allocation2 + $0x28] sm:$0xff]
        %v2652 = vld [vmem:[#allocation2 + $0x30] sm:$0xff]
        %v2653 = vld [vmem:[#allocation2 + $0x38] sm:$0xff]
        %v2654 = vld [vmem:[#allocation2 + $0x40] sm:$0xff]
        %v2655 = vld [vmem:[#allocation2 + $0x48] sm:$0xff]
        %v2656 = vld [vmem:[#allocation2 + $0x50] sm:$0xff]
        %v2657 = vld [vmem:[#allocation2 + $0x58] sm:$0xff]
        %v2658 = vld [vmem:[#allocation2 + $0x60] sm:$0xff]
        %s2659 = scalar_lea.vmem %s3, 768
        %v2660 = vld [vmem:[%s2659] sm:$0xff]
        %v2661 = vld [vmem:[%s2659 + $0x8] sm:$0xff]
        %v2662 = vld [vmem:[%s2659 + $0x10] sm:$0xff]
        %v2663 = vld [vmem:[%s2659 + $0x18] sm:$0xff]
        %v2664 = vld [vmem:[%s2659 + $0x20] sm:$0xff]
        %v2665 = vld [vmem:[%s2659 + $0x28] sm:$0xff]
        %v2666 = vld [vmem:[%s2659 + $0x30] sm:$0xff]
        %v2667 = vld [vmem:[%s2659 + $0x38] sm:$0xff]
        %v2668 = vld [vmem:[%s2659 + $0x40] sm:$0xff]
        %v2669 = vld [vmem:[%s2659 + $0x48] sm:$0xff]
        %v2670 = vld [vmem:[%s2659 + $0x50] sm:$0xff]
        %v2671 = vld [vmem:[%s2659 + $0x58] sm:$0xff]
        %v2672 = vld [vmem:[%s2659 + $0x60] sm:$0xff]
        %v2673 = vld [vmem:[%s2659 + $0x68] sm:$0xff]
        %v2674 = vld [vmem:[%s2659 + $0x70] sm:$0xff]
        %v2675 = vld [vmem:[%s2659 + $0x78] sm:$0xff]
        %v2676 = vld [vmem:[%s2659 + $0x80] sm:$0xff]
        %v2677 = vld [vmem:[%s2659 + $0x88] sm:$0xff]
        %v2678 = vld [vmem:[%s2659 + $0x90] sm:$0xff]
        %v2679 = vld [vmem:[%s2659 + $0x98] sm:$0xff]
        %v2680 = vld [vmem:[%s2659 + $0xa0] sm:$0xff]
        %v2681 = vld [vmem:[%s2659 + $0xa8] sm:$0xff]
        %v2682 = vld [vmem:[%s2659 + $0xb0] sm:$0xff]
        %v2683 = vld [vmem:[%s2659 + $0xb8] sm:$0xff]
        %v2684 = vld [vmem:[%s2659 + $0xc0] sm:$0xff]
        %v2685 = vld [vmem:[%s2659 + $0xc8] sm:$0xff]
        %v2686 = vld [vmem:[%s2659 + $0xd0] sm:$0xff]
        %v2687 = vld [vmem:[%s2659 + $0xd8] sm:$0xff]
        %v2688 = vld [vmem:[%s2659 + $0xe0] sm:$0xff]
        %v2689 = vld [vmem:[%s2659 + $0xe8] sm:$0xff]
        %v2690 = vld [vmem:[%s2659 + $0xf0] sm:$0xff]
        %v2691 = vld [vmem:[%s2659 + $0xf8] sm:$0xff]
        %2692 = vmatpush.msra.mxu0 %v2690
        %2693 = vmatpush.msra.mxu0 %v2688
        %2694 = vmatpush.msra.mxu0 %v2686
        %2695 = vmatpush.msra.mxu0 %v2684
        %2696 = vmatpush.msra.mxu0 %v2682
        %2697 = vmatpush.msra.mxu0 %v2680
        %2698 = vmatpush.msra.mxu0 %v2678
        %2699 = vmatpush.msra.mxu0 %v2676
        %2700 = vmatpush.msra.mxu0 %v2674
        %2701 = vmatpush.msra.mxu0 %v2672
        %2702 = vmatpush.msra.mxu0 %v2670
        %2703 = vmatpush.msra.mxu0 %v2668
        %2704 = vmatpush.msra.mxu0 %v2666
        %2705 = vmatpush.msra.mxu0 %v2664
        %2706 = vmatpush.msra.mxu0 %v2662
        %2707 = vmatpush.msra.mxu0 %v2660
        %2708 = vmatmul.f32.gmra.mxu0 %v2649
        %v2709 = vpop.f32.mrf.mxu0
        %v2710 = vadd.f32 0.0, %v2709
        %2711 = vmatmul.f32.gmra.mxu0 %v2650
        %v2712 = vpop.f32.mrf.mxu0
        %v2713 = vadd.f32 0.0, %v2712
        %2714 = vmatmul.f32.gmra.mxu0 %v2651
        %v2715 = vpop.f32.mrf.mxu0
        %v2716 = vadd.f32 0.0, %v2715
        %2717 = vmatmul.f32.gmra.mxu0 %v2652
        %v2718 = vpop.f32.mrf.mxu0
        %v2719 = vadd.f32 0.0, %v2718
        %2720 = vmatmul.f32.gmra.mxu0 %v2653
        %v2721 = vpop.f32.mrf.mxu0
        %v2722 = vadd.f32 0.0, %v2721
        %2723 = vmatmul.f32.gmra.mxu0 %v2654
        %v2724 = vpop.f32.mrf.mxu0
        %v2725 = vadd.f32 0.0, %v2724
        %2726 = vmatmul.f32.gmra.mxu0 %v2655
        %v2727 = vpop.f32.mrf.mxu0
        %v2728 = vadd.f32 0.0, %v2727
        %2729 = vmatmul.f32.gmra.mxu0 %v2656
        %v2730 = vpop.f32.mrf.mxu0
        %v2731 = vadd.f32 0.0, %v2730
        %2732 = vmatmul.f32.gmra.mxu0 %v2657
        %v2733 = vpop.f32.mrf.mxu0
        %v2734 = vadd.f32 0.0, %v2733
        %2735 = vmatmul.f32.gmra.mxu0 %v2658
        %v2736 = vpop.f32.mrf.mxu0
        %v2737 = vadd.f32 0.0, %v2736
        %2738 = vdwg.mxu0
        %2739 = vmatpush.msra.mxu0 %v2691
        %2740 = vmatpush.msra.mxu0 %v2689
        %2741 = vmatpush.msra.mxu0 %v2687
        %2742 = vmatpush.msra.mxu0 %v2685
        %2743 = vmatpush.msra.mxu0 %v2683
        %2744 = vmatpush.msra.mxu0 %v2681
        %2745 = vmatpush.msra.mxu0 %v2679
        %2746 = vmatpush.msra.mxu0 %v2677
        %2747 = vmatpush.msra.mxu0 %v2675
        %2748 = vmatpush.msra.mxu0 %v2673
        %2749 = vmatpush.msra.mxu0 %v2671
        %2750 = vmatpush.msra.mxu0 %v2669
        %2751 = vmatpush.msra.mxu0 %v2667
        %2752 = vmatpush.msra.mxu0 %v2665
        %2753 = vmatpush.msra.mxu0 %v2663
        %2754 = vmatpush.msra.mxu0 %v2661
        %2755 = vmatmul.f32.gmra.mxu0 %v2649
        %v2756 = vpop.f32.mrf.mxu0
        %v2757 = vadd.f32 0.0, %v2756
        %2758 = vmatmul.f32.gmra.mxu0 %v2650
        %v2759 = vpop.f32.mrf.mxu0
        %v2760 = vadd.f32 0.0, %v2759
        %2761 = vmatmul.f32.gmra.mxu0 %v2651
        %v2762 = vpop.f32.mrf.mxu0
        %v2763 = vadd.f32 0.0, %v2762
        %2764 = vmatmul.f32.gmra.mxu0 %v2652
        %v2765 = vpop.f32.mrf.mxu0
        %v2766 = vadd.f32 0.0, %v2765
        %2767 = vmatmul.f32.gmra.mxu0 %v2653
        %v2768 = vpop.f32.mrf.mxu0
        %v2769 = vadd.f32 0.0, %v2768
        %2770 = vmatmul.f32.gmra.mxu0 %v2654
        %v2771 = vpop.f32.mrf.mxu0
        %v2772 = vadd.f32 0.0, %v2771
        %2773 = vmatmul.f32.gmra.mxu0 %v2655
        %v2774 = vpop.f32.mrf.mxu0
        %v2775 = vadd.f32 0.0, %v2774
        %2776 = vmatmul.f32.gmra.mxu0 %v2656
        %v2777 = vpop.f32.mrf.mxu0
        %v2778 = vadd.f32 0.0, %v2777
        %2779 = vmatmul.f32.gmra.mxu0 %v2657
        %v2780 = vpop.f32.mrf.mxu0
        %v2781 = vadd.f32 0.0, %v2780
        %2782 = vmatmul.f32.gmra.mxu0 %v2658
        %v2783 = vpop.f32.mrf.mxu0
        %v2784 = vadd.f32 0.0, %v2783
        %2785 = vdwg.mxu0
        %v2786 = vadd.f32 %v2629, %v2710
        %v2787 = vadd.f32 %v2630, %v2757
        %v2788 = vadd.f32 %v2631, %v2713
        %v2789 = vadd.f32 %v2632, %v2760
        %v2790 = vadd.f32 %v2633, %v2716
        %v2791 = vadd.f32 %v2634, %v2763
        %v2792 = vadd.f32 %v2635, %v2719
        %v2793 = vadd.f32 %v2636, %v2766
        %v2794 = vadd.f32 %v2637, %v2722
        %v2795 = vadd.f32 %v2638, %v2769
        %v2796 = vadd.f32 %v2639, %v2725
        %v2797 = vadd.f32 %v2640, %v2772
        %v2798 = vadd.f32 %v2641, %v2728
        %v2799 = vadd.f32 %v2642, %v2775
        %v2800 = vadd.f32 %v2643, %v2731
        %v2801 = vadd.f32 %v2644, %v2778
        %v2802 = vadd.f32 %v2645, %v2734
        %v2803 = vadd.f32 %v2646, %v2781
        %v2804 = vadd.f32 %v2647, %v2737
        %v2805 = vadd.f32 %v2648, %v2784
        %v2806 = vld [vmem:[#allocation2 + $0x20] sm:$0xff]
        %v2807 = vld [vmem:[#allocation2 + $0x28] sm:$0xff]
        %v2808 = vld [vmem:[#allocation2 + $0x30] sm:$0xff]
        %v2809 = vld [vmem:[#allocation2 + $0x38] sm:$0xff]
        %v2810 = vld [vmem:[#allocation2 + $0x40] sm:$0xff]
        %v2811 = vld [vmem:[#allocation2 + $0x48] sm:$0xff]
        %v2812 = vld [vmem:[#allocation2 + $0x50] sm:$0xff]
        %v2813 = vld [vmem:[#allocation2 + $0x58] sm:$0xff]
        %v2814 = vld [vmem:[#allocation2 + $0x60] sm:$0xff]
        %v2815 = vld [vmem:[#allocation2 + $0x68] sm:$0xff]
        %s2816 = scalar_lea.vmem %s3, 1024
        %v2817 = vld [vmem:[%s2816] sm:$0xff]
        %v2818 = vld [vmem:[%s2816 + $0x8] sm:$0xff]
        %v2819 = vld [vmem:[%s2816 + $0x10] sm:$0xff]
        %v2820 = vld [vmem:[%s2816 + $0x18] sm:$0xff]
        %v2821 = vld [vmem:[%s2816 + $0x20] sm:$0xff]
        %v2822 = vld [vmem:[%s2816 + $0x28] sm:$0xff]
        %v2823 = vld [vmem:[%s2816 + $0x30] sm:$0xff]
        %v2824 = vld [vmem:[%s2816 + $0x38] sm:$0xff]
        %v2825 = vld [vmem:[%s2816 + $0x40] sm:$0xff]
        %v2826 = vld [vmem:[%s2816 + $0x48] sm:$0xff]
        %v2827 = vld [vmem:[%s2816 + $0x50] sm:$0xff]
        %v2828 = vld [vmem:[%s2816 + $0x58] sm:$0xff]
        %v2829 = vld [vmem:[%s2816 + $0x60] sm:$0xff]
        %v2830 = vld [vmem:[%s2816 + $0x68] sm:$0xff]
        %v2831 = vld [vmem:[%s2816 + $0x70] sm:$0xff]
        %v2832 = vld [vmem:[%s2816 + $0x78] sm:$0xff]
        %v2833 = vld [vmem:[%s2816 + $0x80] sm:$0xff]
        %v2834 = vld [vmem:[%s2816 + $0x88] sm:$0xff]
        %v2835 = vld [vmem:[%s2816 + $0x90] sm:$0xff]
        %v2836 = vld [vmem:[%s2816 + $0x98] sm:$0xff]
        %v2837 = vld [vmem:[%s2816 + $0xa0] sm:$0xff]
        %v2838 = vld [vmem:[%s2816 + $0xa8] sm:$0xff]
        %v2839 = vld [vmem:[%s2816 + $0xb0] sm:$0xff]
        %v2840 = vld [vmem:[%s2816 + $0xb8] sm:$0xff]
        %v2841 = vld [vmem:[%s2816 + $0xc0] sm:$0xff]
        %v2842 = vld [vmem:[%s2816 + $0xc8] sm:$0xff]
        %v2843 = vld [vmem:[%s2816 + $0xd0] sm:$0xff]
        %v2844 = vld [vmem:[%s2816 + $0xd8] sm:$0xff]
        %v2845 = vld [vmem:[%s2816 + $0xe0] sm:$0xff]
        %v2846 = vld [vmem:[%s2816 + $0xe8] sm:$0xff]
        %v2847 = vld [vmem:[%s2816 + $0xf0] sm:$0xff]
        %v2848 = vld [vmem:[%s2816 + $0xf8] sm:$0xff]
        %2849 = vmatpush.msra.mxu0 %v2847
        %2850 = vmatpush.msra.mxu0 %v2845
        %2851 = vmatpush.msra.mxu0 %v2843
        %2852 = vmatpush.msra.mxu0 %v2841
        %2853 = vmatpush.msra.mxu0 %v2839
        %2854 = vmatpush.msra.mxu0 %v2837
        %2855 = vmatpush.msra.mxu0 %v2835
        %2856 = vmatpush.msra.mxu0 %v2833
        %2857 = vmatpush.msra.mxu0 %v2831
        %2858 = vmatpush.msra.mxu0 %v2829
        %2859 = vmatpush.msra.mxu0 %v2827
        %2860 = vmatpush.msra.mxu0 %v2825
        %2861 = vmatpush.msra.mxu0 %v2823
        %2862 = vmatpush.msra.mxu0 %v2821
        %2863 = vmatpush.msra.mxu0 %v2819
        %2864 = vmatpush.msra.mxu0 %v2817
        %2865 = vmatmul.f32.gmra.mxu0 %v2806
        %v2866 = vpop.f32.mrf.mxu0
        %v2867 = vadd.f32 0.0, %v2866
        %2868 = vmatmul.f32.gmra.mxu0 %v2807
        %v2869 = vpop.f32.mrf.mxu0
        %v2870 = vadd.f32 0.0, %v2869
        %2871 = vmatmul.f32.gmra.mxu0 %v2808
        %v2872 = vpop.f32.mrf.mxu0
        %v2873 = vadd.f32 0.0, %v2872
        %2874 = vmatmul.f32.gmra.mxu0 %v2809
        %v2875 = vpop.f32.mrf.mxu0
        %v2876 = vadd.f32 0.0, %v2875
        %2877 = vmatmul.f32.gmra.mxu0 %v2810
        %v2878 = vpop.f32.mrf.mxu0
        %v2879 = vadd.f32 0.0, %v2878
        %2880 = vmatmul.f32.gmra.mxu0 %v2811
        %v2881 = vpop.f32.mrf.mxu0
        %v2882 = vadd.f32 0.0, %v2881
        %2883 = vmatmul.f32.gmra.mxu0 %v2812
        %v2884 = vpop.f32.mrf.mxu0
        %v2885 = vadd.f32 0.0, %v2884
        %2886 = vmatmul.f32.gmra.mxu0 %v2813
        %v2887 = vpop.f32.mrf.mxu0
        %v2888 = vadd.f32 0.0, %v2887
        %2889 = vmatmul.f32.gmra.mxu0 %v2814
        %v2890 = vpop.f32.mrf.mxu0
        %v2891 = vadd.f32 0.0, %v2890
        %2892 = vmatmul.f32.gmra.mxu0 %v2815
        %v2893 = vpop.f32.mrf.mxu0
        %v2894 = vadd.f32 0.0, %v2893
        %2895 = vdwg.mxu0
        %2896 = vmatpush.msra.mxu0 %v2848
        %2897 = vmatpush.msra.mxu0 %v2846
        %2898 = vmatpush.msra.mxu0 %v2844
        %2899 = vmatpush.msra.mxu0 %v2842
        %2900 = vmatpush.msra.mxu0 %v2840
        %2901 = vmatpush.msra.mxu0 %v2838
        %2902 = vmatpush.msra.mxu0 %v2836
        %2903 = vmatpush.msra.mxu0 %v2834
        %2904 = vmatpush.msra.mxu0 %v2832
        %2905 = vmatpush.msra.mxu0 %v2830
        %2906 = vmatpush.msra.mxu0 %v2828
        %2907 = vmatpush.msra.mxu0 %v2826
        %2908 = vmatpush.msra.mxu0 %v2824
        %2909 = vmatpush.msra.mxu0 %v2822
        %2910 = vmatpush.msra.mxu0 %v2820
        %2911 = vmatpush.msra.mxu0 %v2818
        %2912 = vmatmul.f32.gmra.mxu0 %v2806
        %v2913 = vpop.f32.mrf.mxu0
        %v2914 = vadd.f32 0.0, %v2913
        %2915 = vmatmul.f32.gmra.mxu0 %v2807
        %v2916 = vpop.f32.mrf.mxu0
        %v2917 = vadd.f32 0.0, %v2916
        %2918 = vmatmul.f32.gmra.mxu0 %v2808
        %v2919 = vpop.f32.mrf.mxu0
        %v2920 = vadd.f32 0.0, %v2919
        %2921 = vmatmul.f32.gmra.mxu0 %v2809
        %v2922 = vpop.f32.mrf.mxu0
        %v2923 = vadd.f32 0.0, %v2922
        %2924 = vmatmul.f32.gmra.mxu0 %v2810
        %v2925 = vpop.f32.mrf.mxu0
        %v2926 = vadd.f32 0.0, %v2925
        %2927 = vmatmul.f32.gmra.mxu0 %v2811
        %v2928 = vpop.f32.mrf.mxu0
        %v2929 = vadd.f32 0.0, %v2928
        %2930 = vmatmul.f32.gmra.mxu0 %v2812
        %v2931 = vpop.f32.mrf.mxu0
        %v2932 = vadd.f32 0.0, %v2931
        %2933 = vmatmul.f32.gmra.mxu0 %v2813
        %v2934 = vpop.f32.mrf.mxu0
        %v2935 = vadd.f32 0.0, %v2934
        %2936 = vmatmul.f32.gmra.mxu0 %v2814
        %v2937 = vpop.f32.mrf.mxu0
        %v2938 = vadd.f32 0.0, %v2937
        %2939 = vmatmul.f32.gmra.mxu0 %v2815
        %v2940 = vpop.f32.mrf.mxu0
        %v2941 = vadd.f32 0.0, %v2940
        %2942 = vdwg.mxu0
        %v2943 = vadd.f32 %v2786, %v2867
        %v2944 = vadd.f32 %v2787, %v2914
        %v2945 = vadd.f32 %v2788, %v2870
        %v2946 = vadd.f32 %v2789, %v2917
        %v2947 = vadd.f32 %v2790, %v2873
        %v2948 = vadd.f32 %v2791, %v2920
        %v2949 = vadd.f32 %v2792, %v2876
        %v2950 = vadd.f32 %v2793, %v2923
        %v2951 = vadd.f32 %v2794, %v2879
        %v2952 = vadd.f32 %v2795, %v2926
        %v2953 = vadd.f32 %v2796, %v2882
        %v2954 = vadd.f32 %v2797, %v2929
        %v2955 = vadd.f32 %v2798, %v2885
        %v2956 = vadd.f32 %v2799, %v2932
        %v2957 = vadd.f32 %v2800, %v2888
        %v2958 = vadd.f32 %v2801, %v2935
        %v2959 = vadd.f32 %v2802, %v2891
        %v2960 = vadd.f32 %v2803, %v2938
        %v2961 = vadd.f32 %v2804, %v2894
        %v2962 = vadd.f32 %v2805, %v2941
        %v2963 = vld [vmem:[%s4] sm:$0x1]
        %v2965 = vperm.slane %v2963, 0
        %v2967 = vmax.f32 %v2943, %v2945
        %v2968 = vmax.f32 %v2944, %v2946
        %v2969 = vmax.f32 %v2967, %v2968
        %v2970 = vadd.f32 %v2969, %v2965
        %v2971 = vmax.f32 %v2970, 0.0
        %v2972 = vld [vmem:[%s5] sm:$0xff]
        %v2973 = vld [vmem:[%s5 + $0x8] sm:$0xff]
        %v2974 = vld [vmem:[%s5 + $0x10] sm:$0xff]
        %v2975 = vld [vmem:[%s5 + $0x18] sm:$0xff]
        %v2976 = vld [vmem:[%s5 + $0x20] sm:$0xff]
        %v2977 = vld [vmem:[%s5 + $0x28] sm:$0xff]
        %v2978 = vld [vmem:[%s5 + $0x30] sm:$0xff]
        %v2979 = vld [vmem:[%s5 + $0x38] sm:$0xff]
        %v2980 = vld [vmem:[%s5 + $0x40] sm:$0xff]
        %v2981 = vld [vmem:[%s5 + $0x48] sm:$0xff]
        %v2982 = vld [vmem:[%s5 + $0x50] sm:$0xff]
        %v2983 = vld [vmem:[%s5 + $0x58] sm:$0xff]
        %v2984 = vld [vmem:[%s5 + $0x60] sm:$0xff]
        %v2985 = vld [vmem:[%s5 + $0x68] sm:$0xff]
        %v2986 = vld [vmem:[%s5 + $0x70] sm:$0xff]
        %v2987 = vld [vmem:[%s5 + $0x78] sm:$0xff]
        %v2988 = vmax.f32 %v2947, %v2949
        %v2989 = vmax.f32 %v2948, %v2950
        %v2990 = vmax.f32 %v2988, %v2989
        %v2991 = vadd.f32 %v2990, %v2965
        %v2992 = vmax.f32 %v2991, 0.0
        %s2993 = scalar_lea.vmem %s5, 128
        %v2994 = vld [vmem:[%s2993] sm:$0xff]
        %v2995 = vld [vmem:[%s2993 + $0x8] sm:$0xff]
        %v2996 = vld [vmem:[%s2993 + $0x10] sm:$0xff]
        %v2997 = vld [vmem:[%s2993 + $0x18] sm:$0xff]
        %v2998 = vld [vmem:[%s2993 + $0x20] sm:$0xff]
        %v2999 = vld [vmem:[%s2993 + $0x28] sm:$0xff]
        %v3000 = vld [vmem:[%s2993 + $0x30] sm:$0xff]
        %v3001 = vld [vmem:[%s2993 + $0x38] sm:$0xff]
        %v3002 = vld [vmem:[%s2993 + $0x40] sm:$0xff]
        %v3003 = vld [vmem:[%s2993 + $0x48] sm:$0xff]
        %v3004 = vld [vmem:[%s2993 + $0x50] sm:$0xff]
        %v3005 = vld [vmem:[%s2993 + $0x58] sm:$0xff]
        %v3006 = vld [vmem:[%s2993 + $0x60] sm:$0xff]
        %v3007 = vld [vmem:[%s2993 + $0x68] sm:$0xff]
        %v3008 = vld [vmem:[%s2993 + $0x70] sm:$0xff]
        %v3009 = vld [vmem:[%s2993 + $0x78] sm:$0xff]
        %3010 = vmatpush.msra.mxu0 %v3009
        %3011 = vmatpush.msra.mxu0 %v3008
        %3012 = vmatpush.msra.mxu0 %v3007
        %3013 = vmatpush.msra.mxu0 %v3006
        %3014 = vmatpush.msra.mxu0 %v3005
        %3015 = vmatpush.msra.mxu0 %v3004
        %3016 = vmatpush.msra.mxu0 %v3003
        %3017 = vmatpush.msra.mxu0 %v3002
        %3018 = vmatpush.msra.mxu0 %v3001
        %3019 = vmatpush.msra.mxu0 %v3000
        %3020 = vmatpush.msra.mxu0 %v2999
        %3021 = vmatpush.msra.mxu0 %v2998
        %3022 = vmatpush.msra.mxu0 %v2997
        %3023 = vmatpush.msra.mxu0 %v2996
        %3024 = vmatpush.msra.mxu0 %v2995
        %3025 = vmatpush.msra.mxu0 %v2994
        %3026 = vmatmul.f32.gmra.mxu0 %v2992
        %v3027 = vpop.f32.mrf.mxu0
        %v3028 = vadd.f32 0.0, %v3027
        %3029 = vdwg.mxu0
        %3030 = vmatpush.msra.mxu0 %v2987
        %3031 = vmatpush.msra.mxu0 %v2986
        %3032 = vmatpush.msra.mxu0 %v2985
        %3033 = vmatpush.msra.mxu0 %v2984
        %3034 = vmatpush.msra.mxu0 %v2983
        %3035 = vmatpush.msra.mxu0 %v2982
        %3036 = vmatpush.msra.mxu0 %v2981
        %3037 = vmatpush.msra.mxu0 %v2980
        %3038 = vmatpush.msra.mxu0 %v2979
        %3039 = vmatpush.msra.mxu0 %v2978
        %3040 = vmatpush.msra.mxu0 %v2977
        %3041 = vmatpush.msra.mxu0 %v2976
        %3042 = vmatpush.msra.mxu0 %v2975
        %3043 = vmatpush.msra.mxu0 %v2974
        %3044 = vmatpush.msra.mxu0 %v2973
        %3045 = vmatpush.msra.mxu0 %v2972
        %3046 = vmatmul.f32.gmra.mxu0 %v2971
        %v3047 = vpop.f32.mrf.mxu0
        %v3048 = vadd.f32 %v3028, %v3047
        %3049 = vdwg.mxu0
        %v3050 = vmax.f32 %v2951, %v2953
        %v3051 = vmax.f32 %v2952, %v2954
        %v3052 = vmax.f32 %v3050, %v3051
        %v3053 = vadd.f32 %v3052, %v2965
        %v3054 = vmax.f32 %v3053, 0.0
        %s3055 = scalar_lea.vmem %s5, 256
        %v3056 = vld [vmem:[%s3055] sm:$0xff]
        %v3057 = vld [vmem:[%s3055 + $0x8] sm:$0xff]
        %v3058 = vld [vmem:[%s3055 + $0x10] sm:$0xff]
        %v3059 = vld [vmem:[%s3055 + $0x18] sm:$0xff]
        %v3060 = vld [vmem:[%s3055 + $0x20] sm:$0xff]
        %v3061 = vld [vmem:[%s3055 + $0x28] sm:$0xff]
        %v3062 = vld [vmem:[%s3055 + $0x30] sm:$0xff]
        %v3063 = vld [vmem:[%s3055 + $0x38] sm:$0xff]
        %v3064 = vld [vmem:[%s3055 + $0x40] sm:$0xff]
        %v3065 = vld [vmem:[%s3055 + $0x48] sm:$0xff]
        %v3066 = vld [vmem:[%s3055 + $0x50] sm:$0xff]
        %v3067 = vld [vmem:[%s3055 + $0x58] sm:$0xff]
        %v3068 = vld [vmem:[%s3055 + $0x60] sm:$0xff]
        %v3069 = vld [vmem:[%s3055 + $0x68] sm:$0xff]
        %v3070 = vld [vmem:[%s3055 + $0x70] sm:$0xff]
        %v3071 = vld [vmem:[%s3055 + $0x78] sm:$0xff]
        %3072 = vmatpush.msra.mxu0 %v3071
        %3073 = vmatpush.msra.mxu0 %v3070
        %3074 = vmatpush.msra.mxu0 %v3069
        %3075 = vmatpush.msra.mxu0 %v3068
        %3076 = vmatpush.msra.mxu0 %v3067
        %3077 = vmatpush.msra.mxu0 %v3066
        %3078 = vmatpush.msra.mxu0 %v3065
        %3079 = vmatpush.msra.mxu0 %v3064
        %3080 = vmatpush.msra.mxu0 %v3063
        %3081 = vmatpush.msra.mxu0 %v3062
        %3082 = vmatpush.msra.mxu0 %v3061
        %3083 = vmatpush.msra.mxu0 %v3060
        %3084 = vmatpush.msra.mxu0 %v3059
        %3085 = vmatpush.msra.mxu0 %v3058
        %3086 = vmatpush.msra.mxu0 %v3057
        %3087 = vmatpush.msra.mxu0 %v3056
        %3088 = vmatmul.f32.gmra.mxu0 %v3054
        %v3089 = vpop.f32.mrf.mxu0
        %v3090 = vadd.f32 0.0, %v3089
        %3091 = vdwg.mxu0
        %v3092 = vadd.f32 %v3048, %v3090
        %v3093 = vmax.f32 %v2955, %v2957
        %v3094 = vmax.f32 %v2956, %v2958
        %v3095 = vmax.f32 %v3093, %v3094
        %v3096 = vadd.f32 %v3095, %v2965
        %v3097 = vmax.f32 %v3096, 0.0
        %s3098 = scalar_lea.vmem %s5, 384
        %v3099 = vld [vmem:[%s3098] sm:$0xff]
        %v3100 = vld [vmem:[%s3098 + $0x8] sm:$0xff]
        %v3101 = vld [vmem:[%s3098 + $0x10] sm:$0xff]
        %v3102 = vld [vmem:[%s3098 + $0x18] sm:$0xff]
        %v3103 = vld [vmem:[%s3098 + $0x20] sm:$0xff]
        %v3104 = vld [vmem:[%s3098 + $0x28] sm:$0xff]
        %v3105 = vld [vmem:[%s3098 + $0x30] sm:$0xff]
        %v3106 = vld [vmem:[%s3098 + $0x38] sm:$0xff]
        %v3107 = vld [vmem:[%s3098 + $0x40] sm:$0xff]
        %v3108 = vld [vmem:[%s3098 + $0x48] sm:$0xff]
        %v3109 = vld [vmem:[%s3098 + $0x50] sm:$0xff]
        %v3110 = vld [vmem:[%s3098 + $0x58] sm:$0xff]
        %v3111 = vld [vmem:[%s3098 + $0x60] sm:$0xff]
        %v3112 = vld [vmem:[%s3098 + $0x68] sm:$0xff]
        %v3113 = vld [vmem:[%s3098 + $0x70] sm:$0xff]
        %v3114 = vld [vmem:[%s3098 + $0x78] sm:$0xff]
        %3115 = vmatpush.msra.mxu0 %v3114
        %3116 = vmatpush.msra.mxu0 %v3113
        %3117 = vmatpush.msra.mxu0 %v3112
        %3118 = vmatpush.msra.mxu0 %v3111
        %3119 = vmatpush.msra.mxu0 %v3110
        %3120 = vmatpush.msra.mxu0 %v3109
        %3121 = vmatpush.msra.mxu0 %v3108
        %3122 = vmatpush.msra.mxu0 %v3107
        %3123 = vmatpush.msra.mxu0 %v3106
        %3124 = vmatpush.msra.mxu0 %v3105
        %3125 = vmatpush.msra.mxu0 %v3104
        %3126 = vmatpush.msra.mxu0 %v3103
        %3127 = vmatpush.msra.mxu0 %v3102
        %3128 = vmatpush.msra.mxu0 %v3101
        %3129 = vmatpush.msra.mxu0 %v3100
        %3130 = vmatpush.msra.mxu0 %v3099
        %3131 = vmatmul.f32.gmra.mxu0 %v3097
        %v3132 = vpop.f32.mrf.mxu0
        %v3133 = vadd.f32 0.0, %v3132
        %3134 = vdwg.mxu0
        %v3135 = vadd.f32 %v3092, %v3133
        %v3136 = vmax.f32 %v2959, %v2961
        %v3137 = vmax.f32 %v2960, %v2962
        %v3138 = vmax.f32 %v3136, %v3137
        %v3139 = vadd.f32 %v3138, %v2965
        %v3140 = vmax.f32 %v3139, 0.0
        %s3141 = scalar_lea.vmem %s5, 512
        %v3142 = vld [vmem:[%s3141] sm:$0xff]
        %v3143 = vld [vmem:[%s3141 + $0x8] sm:$0xff]
        %v3144 = vld [vmem:[%s3141 + $0x10] sm:$0xff]
        %v3145 = vld [vmem:[%s3141 + $0x18] sm:$0xff]
        %v3146 = vld [vmem:[%s3141 + $0x20] sm:$0xff]
        %v3147 = vld [vmem:[%s3141 + $0x28] sm:$0xff]
        %v3148 = vld [vmem:[%s3141 + $0x30] sm:$0xff]
        %v3149 = vld [vmem:[%s3141 + $0x38] sm:$0xff]
        %v3150 = vld [vmem:[%s3141 + $0x40] sm:$0xff]
        %v3151 = vld [vmem:[%s3141 + $0x48] sm:$0xff]
        %v3152 = vld [vmem:[%s3141 + $0x50] sm:$0xff]
        %v3153 = vld [vmem:[%s3141 + $0x58] sm:$0xff]
        %v3154 = vld [vmem:[%s3141 + $0x60] sm:$0xff]
        %v3155 = vld [vmem:[%s3141 + $0x68] sm:$0xff]
        %v3156 = vld [vmem:[%s3141 + $0x70] sm:$0xff]
        %v3157 = vld [vmem:[%s3141 + $0x78] sm:$0xff]
        %3158 = vmatpush.msra.mxu0 %v3157
        %3159 = vmatpush.msra.mxu0 %v3156
        %3160 = vmatpush.msra.mxu0 %v3155
        %3161 = vmatpush.msra.mxu0 %v3154
        %3162 = vmatpush.msra.mxu0 %v3153
        %3163 = vmatpush.msra.mxu0 %v3152
        %3164 = vmatpush.msra.mxu0 %v3151
        %3165 = vmatpush.msra.mxu0 %v3150
        %3166 = vmatpush.msra.mxu0 %v3149
        %3167 = vmatpush.msra.mxu0 %v3148
        %3168 = vmatpush.msra.mxu0 %v3147
        %3169 = vmatpush.msra.mxu0 %v3146
        %3170 = vmatpush.msra.mxu0 %v3145
        %3171 = vmatpush.msra.mxu0 %v3144
        %3172 = vmatpush.msra.mxu0 %v3143
        %3173 = vmatpush.msra.mxu0 %v3142
        %3174 = vmatmul.f32.gmra.mxu0 %v3140
        %v3175 = vpop.f32.mrf.mxu0
        %v3176 = vadd.f32 0.0, %v3175
        %3177 = vdwg.mxu0
        %v3178 = vadd.f32 %v3135, %v3176
        %v3179 = vld [vmem:[%s6] sm:$0x1]
        %v3181 = vperm.slane %v3179, 0
        %v3183 = vadd.f32 %v3178, %v3181
        %v3184 = vmax.f32 %v3183, 0.0
        %v3185 = vld [vmem:[%s7] sm:$0xff]
        %v3186 = vld [vmem:[%s7 + $0x8] sm:$0xff]
        %v3187 = vld [vmem:[%s7 + $0x10] sm:$0xff]
        %v3188 = vld [vmem:[%s7 + $0x18] sm:$0xff]
        %v3189 = vld [vmem:[%s7 + $0x20] sm:$0xff]
        %v3190 = vld [vmem:[%s7 + $0x28] sm:$0xff]
        %v3191 = vld [vmem:[%s7 + $0x30] sm:$0xff]
        %v3192 = vld [vmem:[%s7 + $0x38] sm:$0xff]
        %v3193 = vld [vmem:[%s7 + $0x40] sm:$0xff]
        %v3194 = vld [vmem:[%s7 + $0x48] sm:$0xff]
        %v3195 = vld [vmem:[%s7 + $0x50] sm:$0xff]
        %v3196 = vld [vmem:[%s7 + $0x58] sm:$0xff]
        %v3197 = vld [vmem:[%s7 + $0x60] sm:$0xff]
        %v3198 = vld [vmem:[%s7 + $0x68] sm:$0xff]
        %v3199 = vld [vmem:[%s7 + $0x70] sm:$0xff]
        %v3200 = vld [vmem:[%s7 + $0x78] sm:$0xff]
        %v3201 = vld [vmem:[%s8] sm:$0x1]
        %v3203 = vperm.slane %v3201, 0
        %3205 = vmatpush.msra.mxu0 %v3200
        %3206 = vmatpush.msra.mxu0 %v3199
        %3207 = vmatpush.msra.mxu0 %v3198
        %3208 = vmatpush.msra.mxu0 %v3197
        %3209 = vmatpush.msra.mxu0 %v3196
        %3210 = vmatpush.msra.mxu0 %v3195
        %3211 = vmatpush.msra.mxu0 %v3194
        %3212 = vmatpush.msra.mxu0 %v3193
        %3213 = vmatpush.msra.mxu0 %v3192
        %3214 = vmatpush.msra.mxu0 %v3191
        %3215 = vmatpush.msra.mxu0 %v3190
        %3216 = vmatpush.msra.mxu0 %v3189
        %3217 = vmatpush.msra.mxu0 %v3188
        %3218 = vmatpush.msra.mxu0 %v3187
        %3219 = vmatpush.msra.mxu0 %v3186
        %3220 = vmatpush.msra.mxu0 %v3185
        %3221 = vmatmul.f32.gmra.mxu0 %v3184
        %v3222 = vpop.f32.mrf.mxu0
        %v3223 = vadd.f32 %v3203, %v3222
        %3224 = vdwg.mxu0
        %v3225 = vmax.f32 %v3223, 0.0
        %v3226 = vld [vmem:[%s9] sm:$0xff]
        %v3227 = vld [vmem:[%s9 + $0x8] sm:$0xff]
        %v3228 = vld [vmem:[%s9 + $0x10] sm:$0xff]
        %v3229 = vld [vmem:[%s9 + $0x18] sm:$0xff]
        %v3230 = vld [vmem:[%s9 + $0x20] sm:$0xff]
        %v3231 = vld [vmem:[%s9 + $0x28] sm:$0xff]
        %v3232 = vld [vmem:[%s9 + $0x30] sm:$0xff]
        %v3233 = vld [vmem:[%s9 + $0x38] sm:$0xff]
        %v3234 = vld [vmem:[%s9 + $0x40] sm:$0xff]
        %v3235 = vld [vmem:[%s9 + $0x48] sm:$0xff]
        %v3236 = vld [vmem:[%s9 + $0x50] sm:$0xff]
        %v3237 = vld [vmem:[%s9 + $0x58] sm:$0xff]
        %v3238 = vld [vmem:[%s9 + $0x60] sm:$0xff]
        %v3239 = vld [vmem:[%s9 + $0x68] sm:$0xff]
        %v3240 = vld [vmem:[%s9 + $0x70] sm:$0xff]
        %v3241 = vld [vmem:[%s9 + $0x78] sm:$0xff]
        %v3242 = vld [vmem:[%s10] sm:$0x1]
        %v3244 = vperm.slane %v3242, 0
        %3246 = vmatpush.msra.mxu0 %v3241
        %3247 = vmatpush.msra.mxu0 %v3240
        %3248 = vmatpush.msra.mxu0 %v3239
        %3249 = vmatpush.msra.mxu0 %v3238
        %3250 = vmatpush.msra.mxu0 %v3237
        %3251 = vmatpush.msra.mxu0 %v3236
        %3252 = vmatpush.msra.mxu0 %v3235
        %3253 = vmatpush.msra.mxu0 %v3234
        %3254 = vmatpush.msra.mxu0 %v3233
        %3255 = vmatpush.msra.mxu0 %v3232
        %3256 = vmatpush.msra.mxu0 %v3231
        %3257 = vmatpush.msra.mxu0 %v3230
        %3258 = vmatpush.msra.mxu0 %v3229
        %3259 = vmatpush.msra.mxu0 %v3228
        %3260 = vmatpush.msra.mxu0 %v3227
        %3261 = vmatpush.msra.mxu0 %v3226
        %3262 = vmatmul.f32.gmra.mxu0 %v3225
        %v3263 = vpop.f32.mrf.mxu0
        %v3264 = vadd.f32 %v3244, %v3263
        %3265 = vdwg.mxu0
        %3266 = vst [vmem:[%s379] sm:$0xff] %v3264
        %s3267 = sand.u32 %s269, 1
        %s3268 = scalar_lea.sflag [#allocation4], %s3267
        %s3269 = sand.u32 %s269, 1
        %s3270 = smul.addr %s3269, 8
        %s3271 = scalar_lea.vmem [#allocation3], %s3270
        // Predicated region
        $region65: #{lenet_forward.1} parent=63 // pred_check
          %p3272 = pneg %p279
        $region66: #{lenet_forward.1} parent=63 // pred_check_branch
          %3274 = sbr.rel (%p3272) target = $region68
        $region67: #{lenet_forward.1} parent=63 // pred_region
          %3276 = vsyncadd %s3268, 0
          %s3277 = smul.addr %s25, 8
          %s3278 = scalar_lea.hbm %s11, %s3277
          %s3280 = sshll.u32 %s3271, 4
          %s3281 = int_to_ptr.vmem [resolvable:$true] %s3280
          %s3282 = sshll.u32 %s3278, 4
          %s3283 = int_to_ptr.hbm [resolvable:$true] %s3282
          %3285 = dma.vmem_to_hbm [thread:$0]  %s3281, 128, %s3283, %s3268
        $region68: #{lenet_forward.1} parent=63 // pred_fallthru
          _
      $region64: #{lenet_forward.1} parent=5 // pred_fallthru
        _
      %p3286 = scmp.le.s32.totalorder 2, %s20
      // Predicated region
      $region69: #{lenet_forward.1} parent=5 // pred_check
        %p3287 = pneg %p3286
      $region70: #{lenet_forward.1} parent=5 // pred_check_branch
        %3289 = sbr.rel (%p3287) target = $region72
      $region71: #{lenet_forward.1} parent=5 // pred_region
        %s3290 = ssub.s32 %s20, 2
        // Predicated region
        $region73: #{lenet_forward.1} parent=71 // pred_check
          %p3291 = pneg %p285
        $region74: #{lenet_forward.1} parent=71 // pred_check_branch
          %3293 = sbr.rel (%p3291) target = $region76
        $region75: #{lenet_forward.1} parent=71 // pred_region
          %s3294 = sand.u32 %s270, 1
          %s3295 = scalar_lea.sflag [#allocation4], %s3294
          %s3296 = sand.u32 %s270, 1
          %s3297 = smul.addr %s3296, 8
          %s3298 = scalar_lea.vmem [#allocation3], %s3297
          %3300 = dma.done %s3295, 128
        $region76: #{lenet_forward.1} parent=71 // pred_fallthru
          _
      $region72: #{lenet_forward.1} parent=5 // pred_fallthru
        _
    $region6: #{lenet_forward.1} parent=1 // loop_footer
      %s24 = sadd.s32 1, %s20
    $region7: #{lenet_forward.1} parent=1 // loop_footer_branch
      %19 = sbr.rel target = $region3
    $region8: #{lenet_forward.1} parent=1 // loop_exit
      _
    %3301 = vsyncpa [#allocation4], 1
    %s3302 = scalar_lea.sflag [#allocation4], 1
    %3303 = vsyncpa %s3302, 1

</llo_original>
